<compile_context>
chip_gen: v6e
topology: v6e:2x2x1
jax: 0.10.0
libtpu: 0.0.40
codegen_flags: <defaults>
</compile_context>

<pallas_src>
import jax
import jax.numpy as jnp
from jax.experimental import pallas as pl
from jax.experimental.pallas import tpu as pltpu


def _round_up(x, m):
    return (x + m - 1) // m * m


_GATHER_UNROLL = 8  # divides tile_b (tile_b is always a multiple of 8)


def _neuralcf_kernel(uid_ref, iid_ref,               # scalar-prefetch indices (SMEM)
                     uemb_hbm, iemb_hbm,             # embedding tables (HBM, pl.ANY)
                     w1u_ref, w1v_ref, b1_ref,       # VMEM weights (bf16) / biases (f32)
                     w2_ref, b2_ref, w3t_ref,
                     out_ref,                        # (1, tile_b) f32, lane-dense
                     ubuf, vbuf, sem):               # scratch: 2-slot gather bufs + DMA sems
    tile_b = out_ref.shape[1]
    i = pl.program_id(0)
    n = pl.num_programs(0)
    slot = i % 2                                     # slot holding THIS tile's rows

    def issue_gather(tile_idx, dst_slot):
        base = tile_idx * tile_b                     # first batch row of that tile
        row0 = dst_slot * tile_b                     # first scratch row of that slot

        @pl.loop(0, tile_b // _GATHER_UNROLL)
        def _issue(blk):
            r0 = blk * _GATHER_UNROLL
            for j in range(_GATHER_UNROLL):          # static unroll: pack SMEM loads +
                r = r0 + j                           # descriptor pushes into fewer bundles
                uidx = uid_ref[base + r]
                iidx = iid_ref[base + r]
                pltpu.make_async_copy(uemb_hbm.at[pl.ds(uidx, 1), :],
                                      ubuf.at[pl.ds(row0 + r, 1), :],
                                      sem.at[dst_slot, 0]).start()
                pltpu.make_async_copy(iemb_hbm.at[pl.ds(iidx, 1), :],
                                      vbuf.at[pl.ds(row0 + r, 1), :],
                                      sem.at[dst_slot, 1]).start()

    # Prime: first grid step issues its own gather.
    @pl.when(i == 0)
    def _():
        issue_gather(i, slot)

    # Prefetch the NEXT tile's rows into the other slot (indices are already in SMEM), so
    # its gather latency is hidden behind this tile's compute + output writeback.
    @pl.when(i + 1 < n)
    def _():
        issue_gather(i + 1, 1 - slot)

    # Aggregate drain: every row copy of this slot signals the same byte-counting DMA
    # semaphore, so a single (tile_b, emb)-sized wait per buffer drains all of them.
    cur = pl.multiple_of(slot * tile_b, 8)
    pltpu.make_async_copy(ubuf.at[pl.ds(cur, tile_b), :],
                          ubuf.at[pl.ds(cur, tile_b), :], sem.at[slot, 0]).wait()
    pltpu.make_async_copy(vbuf.at[pl.ds(cur, tile_b), :],
                          vbuf.at[pl.ds(cur, tile_b), :], sem.at[slot, 1]).wait()

    # ---- MLP: bf16 operands, f32 accumulation. ------------------------------------------
    u = ubuf[pl.ds(cur, tile_b), :].astype(jnp.bfloat16)       # (tile_b, emb)
    v = vbuf[pl.ds(cur, tile_b), :].astype(jnp.bfloat16)       # (tile_b, emb)

    # x = concat([u, v]); x @ W1 == u @ W1[:emb] + v @ W1[emb:]  (split avoids a concat)
    h1 = (jnp.dot(u, w1u_ref[...], preferred_element_type=jnp.float32)
          + jnp.dot(v, w1v_ref[...], preferred_element_type=jnp.float32)
          + b1_ref[...])
    h1 = jnp.maximum(h1, 0.0)                                  # ReLU, (tile_b, H1P)

    h2 = jnp.dot(h1.astype(jnp.bfloat16), w2_ref[...],
                 preferred_element_type=jnp.float32) + b2_ref[...]
    h2 = jnp.maximum(h2, 0.0)                                  # ReLU, (tile_b, H2P)

    # Final layer transposed: (1, H2P) contracted with (tile_b, H2P) on their last dims
    # -> (1, tile_b), a lane-dense output slab instead of a (tile_b, 1) masked store.
    yt = jax.lax.dot_general(w3t_ref[...], h2.astype(jnp.bfloat16),
                             dimension_numbers=(((1,), (1,)), ((), ())),
                             preferred_element_type=jnp.float32)
    out_ref[...] = yt                                          # b3 added in the wrapper


def neuralcf_forward(user, item, params, tile_b=512):
    """user, item: int (B,). Returns float32 (B,) — same as torch .squeeze() for B > 1."""
    B = user.shape[0]
    emb = params["user_emb"].shape[1]
    H1 = params["w1"].shape[1]
    H2 = params["w2"].shape[1]
    H1P = _round_up(H1, 128)                         # lane-full hidden widths
    H2P = _round_up(H2, 128)

    # Tile policy:
    #   * small batches -> one tile covering the whole (8-padded) batch (block == full
    #     array, always a legal layout; no cross-step prefetch needed).
    #   * larger batches -> lane-aligned tiles (multiple of 128) and at least 2 tiles so the
    #     double-buffered gather has compute to hide behind.
    if B <= 256:
        tile_b = _round_up(B, 8)
    else:
        tile_b = max(128, min(tile_b, _round_up(pl.cdiv(B, 2), 128)))
    b_pad = _round_up(B, tile_b)
    num_tiles = b_pad // tile_b

    uid = jnp.pad(user.astype(jnp.int32), (0, b_pad - B))      # pad rows gather row 0
    iid = jnp.pad(item.astype(jnp.int32), (0, b_pad - B))

    # Weights as (in, out), bf16, zero-padded to full 128-lane output widths (zero pads
    # flow through ReLU as exact zeros, so the math is unchanged).
    w1 = params["w1"].astype(jnp.bfloat16)
    w1u = jnp.pad(w1[:emb], ((0, 0), (0, H1P - H1)))
    w1v = jnp.pad(w1[emb:], ((0, 0), (0, H1P - H1)))
    b1 = jnp.pad(params["b1"].astype(jnp.float32), (0, H1P - H1)).reshape(1, H1P)
    w2 = jnp.pad(params["w2"].astype(jnp.bfloat16), ((0, H1P - H1), (0, H2P - H2)))
    b2 = jnp.pad(params["b2"].astype(jnp.float32), (0, H2P - H2)).reshape(1, H2P)
    w3t = jnp.pad(params["w3"].astype(jnp.bfloat16).T, ((0, 0), (0, H2P - H2)))  # (1, H2P)

    uemb = params["user_emb"].astype(jnp.float32)    # HBM-resident, row-gathered
    iemb = params["item_emb"].astype(jnp.float32)

    rep = lambda i, *_: (0, 0)                       # weights: same block every step
    grid_spec = pltpu.PrefetchScalarGridSpec(
        num_scalar_prefetch=2,                       # uid, iid -> SMEM
        grid=(num_tiles,),
        in_specs=[
            pl.BlockSpec(memory_space=pl.ANY),       # user_emb table stays in HBM
            pl.BlockSpec(memory_space=pl.ANY),       # item_emb table stays in HBM
            pl.BlockSpec((emb, H1P), rep),
            pl.BlockSpec((emb, H1P), rep),
            pl.BlockSpec((1, H1P), rep),
            pl.BlockSpec((H1P, H2P), rep),
            pl.BlockSpec((1, H2P), rep),
            pl.BlockSpec((1, H2P), rep),
        ],
        out_specs=pl.BlockSpec((1, tile_b), lambda i, *_: (0, i)),
        scratch_shapes=[
            pltpu.VMEM((2 * tile_b, emb), jnp.float32),   # 2-slot gathered user rows
            pltpu.VMEM((2 * tile_b, emb), jnp.float32),   # 2-slot gathered item rows
            pltpu.SemaphoreType.DMA((2, 2)),              # [slot, table]
        ],
    )

    out = pl.pallas_call(
        _neuralcf_kernel,
        out_shape=jax.ShapeDtypeStruct((1, num_tiles * tile_b), jnp.float32),
        grid_spec=grid_spec,
        # "arbitrary": the cross-step gather prefetch must be consumed by the same core that
        # issued it; a megacore split of the grid would leave a dangling DMA at each core's
        # last step.  Double-buffering the gather wins more here than the v7x 2-TC split.
        compiler_params=pltpu.CompilerParams(dimension_semantics=("arbitrary",)),
    )(uid, iid, uemb, iemb, w1u, w1v, b1, w2, b2, w3t)

    # Final bias folded in here (scalar add) instead of a padded (1,1) VMEM block.
    return out.reshape(-1)[:B] + params["b3"].astype(jnp.float32)[0]


def init_params(key, n_users, n_items, emb_dim=32, hidden_dims=(64, 32)):
    ks = jax.random.split(key, 8)
    dims = [emb_dim * 2] + list(hidden_dims) + [1]
    params = {
        "user_emb": jax.random.normal(ks[0], (n_users, emb_dim), jnp.float32),
        "item_emb": jax.random.normal(ks[1], (n_items, emb_dim), jnp.float32),
    }
    # Linear layers, stored as (in, out).  Matmul weights in bf16, biases in f32.
    names = [("w1", "b1"), ("w2", "b2"), ("w3", "b3")]
    for li, (wn, bn) in enumerate(names):
        fan_in, fan_out = dims[li], dims[li + 1]
        bound = 1.0 / jnp.sqrt(fan_in)
        w = jax.random.uniform(ks[2 + 2 * li], (fan_in, fan_out), jnp.float32,
                               minval=-bound, maxval=bound)
        params[wn] = w.astype(jnp.bfloat16)
        params[bn] = jax.random.uniform(ks[3 + 2 * li], (fan_out,), jnp.float32,
                                        minval=-bound, maxval=bound)
    return params


def neuralcf_reference(user, item, params):
    """Pure-JAX reference mirroring the PyTorch forward (bf16 weights, f32 accumulation)."""
    u = params["user_emb"][user]
    v = params["item_emb"][item]
    x = jnp.concatenate([u, v], axis=-1).astype(jnp.bfloat16)
    w1 = params["w1"].astype(jnp.bfloat16)
    w2 = params["w2"].astype(jnp.bfloat16)
    w3 = params["w3"].astype(jnp.bfloat16)
    h1 = jnp.maximum(jnp.dot(x, w1, preferred_element_type=jnp.float32)
                     + params["b1"], 0.0)
    h2 = jnp.maximum(jnp.dot(h1.astype(jnp.bfloat16), w2,
                             preferred_element_type=jnp.float32) + params["b2"], 0.0)
    y = jnp.dot(h2.astype(jnp.bfloat16), w3,
                preferred_element_type=jnp.float32) + params["b3"]
    return y.squeeze(-1)


if __name__ == "__main__":
    key = jax.random.PRNGKey(0)
    n_users, n_items, emb_dim = 64, 96, 32
    pkey, uk1, ik1, uk2, ik2 = jax.random.split(key, 5)

    params = init_params(pkey, n_users, n_items, emb_dim, hidden_dims=(64, 32))

    # Case 1: small batch -> single tile (block == full array).
    B1 = 8
    user1 = jax.random.randint(uk1, (B1,), 0, n_users, dtype=jnp.int32)
    item1 = jax.random.randint(ik1, (B1,), 0, n_items, dtype=jnp.int32)
    out1 = jax.block_until_ready(neuralcf_forward(user1, item1, params))
    ref1 = neuralcf_reference(user1, item1, params)
    assert out1.shape == (B1,), out1.shape
    assert jnp.allclose(out1, ref1, atol=2e-2, rtol=2e-2), (out1, ref1)

    # Case 2: multi-tile batch -> exercises the cross-step double-buffered gather and the
    # aggregate DMA waits (2 tiles of 256 rows, batch padded from 300 to 512).
    B2 = 300
    user2 = jax.random.randint(uk2, (B2,), 0, n_users, dtype=jnp.int32)
    item2 = jax.random.randint(ik2, (B2,), 0, n_items, dtype=jnp.int32)
    out2 = jax.block_until_ready(neuralcf_forward(user2, item2, params))
    ref2 = neuralcf_reference(user2, item2, params)
    assert out2.shape == (B2,), out2.shape
    assert jnp.allclose(out2, ref2, atol=2e-2, rtol=2e-2), (out2, ref2)

    print("KERNEL_OK")
</pallas_src>

<mosaic_0001>
module attributes {stable_mosaic.version = 11 : i64} {
  func.func @_neuralcf_kernel(%arg0: i32, %arg1: memref<8xi32, #tpu.memory_space<smem>>, %arg2: memref<8xi32, #tpu.memory_space<smem>>, %arg3: memref<64x32xf32, #tpu.memory_space<any>>, %arg4: memref<96x32xf32, #tpu.memory_space<any>>, %arg5: memref<32x128xbf16, #tpu.memory_space<vmem>>, %arg6: memref<32x128xbf16, #tpu.memory_space<vmem>>, %arg7: memref<1x128xf32, #tpu.memory_space<vmem>>, %arg8: memref<128x128xbf16, #tpu.memory_space<vmem>>, %arg9: memref<1x128xf32, #tpu.memory_space<vmem>>, %arg10: memref<1x128xbf16, #tpu.memory_space<vmem>>, %arg11: memref<1x8xf32, #tpu.memory_space<vmem>>, %arg12: memref<16x32xf32, #tpu.memory_space<vmem>>, %arg13: memref<16x32xf32, #tpu.memory_space<vmem>>, %arg14: memref<2x2x!tpu.dma_semaphore, #tpu.memory_space<semaphore_mem>>) attributes {dimension_semantics = [#tpu.dimension_semantics<arbitrary>], iteration_bounds = array<i64: 1>, scalar_prefetch = 2 : i64, scratch_operands = 3 : i64, tpu.core_type = #tpu.core_type<tc>, window_params = [{}, {}, {pipeline_mode = #tpu.pipeline_mode<synchronous>, transform_indices = @transform_2, window_bounds = array<i64: 32, 128>}, {pipeline_mode = #tpu.pipeline_mode<synchronous>, transform_indices = @transform_3, window_bounds = array<i64: 32, 128>}, {pipeline_mode = #tpu.pipeline_mode<synchronous>, transform_indices = @transform_4, window_bounds = array<i64: 1, 128>}, {pipeline_mode = #tpu.pipeline_mode<synchronous>, transform_indices = @transform_5, window_bounds = array<i64: 128, 128>}, {pipeline_mode = #tpu.pipeline_mode<synchronous>, transform_indices = @transform_6, window_bounds = array<i64: 1, 128>}, {pipeline_mode = #tpu.pipeline_mode<synchronous>, transform_indices = @transform_7, window_bounds = array<i64: 1, 128>}, {transform_indices = @transform_8, window_bounds = array<i64: 1, 8>}]} {
    %c2_i32 = arith.constant 2 : i32
    %c0_i32 = arith.constant 0 : i32
    %0 = arith.cmpi eq, %c2_i32, %c0_i32 : i32
    %c1_i32 = arith.constant 1 : i32
    %1 = arith.select %0, %c1_i32, %c2_i32 : i32
    %2 = arith.remsi %arg0, %1 : i32
    %c0_i32_0 = arith.constant 0 : i32
    %3 = arith.cmpi ne, %2, %c0_i32_0 : i32
    %c0_i32_1 = arith.constant 0 : i32
    %4 = arith.cmpi slt, %2, %c0_i32_1 : i32
    %c0_i32_2 = arith.constant 0 : i32
    %5 = arith.cmpi slt, %1, %c0_i32_2 : i32
    %6 = arith.xori %4, %5 : i1
    %7 = arith.andi %6, %3 : i1
    %8 = arith.addi %2, %1 : i32
    %9 = arith.select %7, %8, %2 : i32
    %c0_i32_3 = arith.constant 0 : i32
    %10 = arith.cmpi eq, %arg0, %c0_i32_3 : i32
    %11 = arith.extui %10 : i1 to i32
    %c0_i32_4 = arith.constant 0 : i32
    %12 = arith.cmpi ne, %11, %c0_i32_4 : i32
    scf.if %12 {
      %c8_i32_34 = arith.constant 8 : i32
      %55 = arith.muli %arg0, %c8_i32_34 : i32
      %c8_i32_35 = arith.constant 8 : i32
      %56 = arith.muli %9, %c8_i32_35 : i32
      %c0_i32_36 = arith.constant 0 : i32
      %c1_i32_37 = arith.constant 1 : i32
      %57 = arith.muli %c0_i32_36, %c1_i32_37 : i32
      %c0_i32_38 = arith.constant 0 : i32
      %58 = arith.addi %c0_i32_38, %57 : i32
      %c8_i32_39 = arith.constant 8 : i32
      %59 = arith.muli %58, %c8_i32_39 : i32
      %c0_i32_40 = arith.constant 0 : i32
      %60 = arith.addi %59, %c0_i32_40 : i32
      %61 = arith.addi %55, %60 : i32
      %62 = arith.index_cast %61 : i32 to index
      %63 = memref.load %arg1[%62] : memref<8xi32, #tpu.memory_space<smem>>
      %64 = arith.addi %55, %60 : i32
      %65 = arith.index_cast %64 : i32 to index
      %66 = memref.load %arg2[%65] : memref<8xi32, #tpu.memory_space<smem>>
      %67 = arith.addi %56, %60 : i32
      %c0_i32_41 = arith.constant 0 : i32
      %c0_i32_42 = arith.constant 0 : i32
      %68 = tpu.memref_slice %arg3[%63, %c0_i32_42] : memref<64x32xf32, #tpu.memory_space<any>> -> memref<1x32xf32, #tpu.memory_space<any>>
      %c0_i32_43 = arith.constant 0 : i32
      %69 = tpu.memref_slice %arg12[%67, %c0_i32_43] : memref<16x32xf32, #tpu.memory_space<vmem>> -> memref<1x32xf32, #tpu.memory_space<vmem>>
      %70 = tpu.memref_slice %arg14[%9, %c0_i32_41] : memref<2x2x!tpu.dma_semaphore, #tpu.memory_space<semaphore_mem>> -> memref<1x1x!tpu.dma_semaphore, #tpu.memory_space<semaphore_mem>>
      %71 = tpu.memref_squeeze %70 : memref<1x1x!tpu.dma_semaphore, #tpu.memory_space<semaphore_mem>> -> memref<!tpu.dma_semaphore, #tpu.memory_space<semaphore_mem>>
      tpu.enqueue_dma source(%68 : memref<1x32xf32, #tpu.memory_space<any>>) target(%69 : memref<1x32xf32, #tpu.memory_space<vmem>>) target_semaphore(%71 : memref<!tpu.dma_semaphore, #tpu.memory_space<semaphore_mem>>)
      %72 = arith.addi %56, %60 : i32
      %c1_i32_44 = arith.constant 1 : i32
      %c0_i32_45 = arith.constant 0 : i32
      %73 = tpu.memref_slice %arg4[%66, %c0_i32_45] : memref<96x32xf32, #tpu.memory_space<any>> -> memref<1x32xf32, #tpu.memory_space<any>>
      %c0_i32_46 = arith.constant 0 : i32
      %74 = tpu.memref_slice %arg13[%72, %c0_i32_46] : memref<16x32xf32, #tpu.memory_space<vmem>> -> memref<1x32xf32, #tpu.memory_space<vmem>>
      %75 = tpu.memref_slice %arg14[%9, %c1_i32_44] : memref<2x2x!tpu.dma_semaphore, #tpu.memory_space<semaphore_mem>> -> memref<1x1x!tpu.dma_semaphore, #tpu.memory_space<semaphore_mem>>
      %76 = tpu.memref_squeeze %75 : memref<1x1x!tpu.dma_semaphore, #tpu.memory_space<semaphore_mem>> -> memref<!tpu.dma_semaphore, #tpu.memory_space<semaphore_mem>>
      tpu.enqueue_dma source(%73 : memref<1x32xf32, #tpu.memory_space<any>>) target(%74 : memref<1x32xf32, #tpu.memory_space<vmem>>) target_semaphore(%76 : memref<!tpu.dma_semaphore, #tpu.memory_space<semaphore_mem>>)
      %c1_i32_47 = arith.constant 1 : i32
      %77 = arith.addi %59, %c1_i32_47 : i32
      %78 = arith.addi %55, %77 : i32
      %79 = arith.index_cast %78 : i32 to index
      %80 = memref.load %arg1[%79] : memref<8xi32, #tpu.memory_space<smem>>
      %81 = arith.addi %55, %77 : i32
      %82 = arith.index_cast %81 : i32 to index
      %83 = memref.load %arg2[%82] : memref<8xi32, #tpu.memory_space<smem>>
      %84 = arith.addi %56, %77 : i32
      %c0_i32_48 = arith.constant 0 : i32
      %c0_i32_49 = arith.constant 0 : i32
      %85 = tpu.memref_slice %arg3[%80, %c0_i32_49] : memref<64x32xf32, #tpu.memory_space<any>> -> memref<1x32xf32, #tpu.memory_space<any>>
      %c0_i32_50 = arith.constant 0 : i32
      %86 = tpu.memref_slice %arg12[%84, %c0_i32_50] : memref<16x32xf32, #tpu.memory_space<vmem>> -> memref<1x32xf32, #tpu.memory_space<vmem>>
      %87 = tpu.memref_slice %arg14[%9, %c0_i32_48] : memref<2x2x!tpu.dma_semaphore, #tpu.memory_space<semaphore_mem>> -> memref<1x1x!tpu.dma_semaphore, #tpu.memory_space<semaphore_mem>>
      %88 = tpu.memref_squeeze %87 : memref<1x1x!tpu.dma_semaphore, #tpu.memory_space<semaphore_mem>> -> memref<!tpu.dma_semaphore, #tpu.memory_space<semaphore_mem>>
      tpu.enqueue_dma source(%85 : memref<1x32xf32, #tpu.memory_space<any>>) target(%86 : memref<1x32xf32, #tpu.memory_space<vmem>>) target_semaphore(%88 : memref<!tpu.dma_semaphore, #tpu.memory_space<semaphore_mem>>)
      %89 = arith.addi %56, %77 : i32
      %c1_i32_51 = arith.constant 1 : i32
      %c0_i32_52 = arith.constant 0 : i32
      %90 = tpu.memref_slice %arg4[%83, %c0_i32_52] : memref<96x32xf32, #tpu.memory_space<any>> -> memref<1x32xf32, #tpu.memory_space<any>>
      %c0_i32_53 = arith.constant 0 : i32
      %91 = tpu.memref_slice %arg13[%89, %c0_i32_53] : memref<16x32xf32, #tpu.memory_space<vmem>> -> memref<1x32xf32, #tpu.memory_space<vmem>>
      %92 = tpu.memref_slice %arg14[%9, %c1_i32_51] : memref<2x2x!tpu.dma_semaphore, #tpu.memory_space<semaphore_mem>> -> memref<1x1x!tpu.dma_semaphore, #tpu.memory_space<semaphore_mem>>
      %93 = tpu.memref_squeeze %92 : memref<1x1x!tpu.dma_semaphore, #tpu.memory_space<semaphore_mem>> -> memref<!tpu.dma_semaphore, #tpu.memory_space<semaphore_mem>>
      tpu.enqueue_dma source(%90 : memref<1x32xf32, #tpu.memory_space<any>>) target(%91 : memref<1x32xf32, #tpu.memory_space<vmem>>) target_semaphore(%93 : memref<!tpu.dma_semaphore, #tpu.memory_space<semaphore_mem>>)
      %c2_i32_54 = arith.constant 2 : i32
      %94 = arith.addi %59, %c2_i32_54 : i32
      %95 = arith.addi %55, %94 : i32
      %96 = arith.index_cast %95 : i32 to index
      %97 = memref.load %arg1[%96] : memref<8xi32, #tpu.memory_space<smem>>
      %98 = arith.addi %55, %94 : i32
      %99 = arith.index_cast %98 : i32 to index
      %100 = memref.load %arg2[%99] : memref<8xi32, #tpu.memory_space<smem>>
      %101 = arith.addi %56, %94 : i32
      %c0_i32_55 = arith.constant 0 : i32
      %c0_i32_56 = arith.constant 0 : i32
      %102 = tpu.memref_slice %arg3[%97, %c0_i32_56] : memref<64x32xf32, #tpu.memory_space<any>> -> memref<1x32xf32, #tpu.memory_space<any>>
      %c0_i32_57 = arith.constant 0 : i32
      %103 = tpu.memref_slice %arg12[%101, %c0_i32_57] : memref<16x32xf32, #tpu.memory_space<vmem>> -> memref<1x32xf32, #tpu.memory_space<vmem>>
      %104 = tpu.memref_slice %arg14[%9, %c0_i32_55] : memref<2x2x!tpu.dma_semaphore, #tpu.memory_space<semaphore_mem>> -> memref<1x1x!tpu.dma_semaphore, #tpu.memory_space<semaphore_mem>>
      %105 = tpu.memref_squeeze %104 : memref<1x1x!tpu.dma_semaphore, #tpu.memory_space<semaphore_mem>> -> memref<!tpu.dma_semaphore, #tpu.memory_space<semaphore_mem>>
      tpu.enqueue_dma source(%102 : memref<1x32xf32, #tpu.memory_space<any>>) target(%103 : memref<1x32xf32, #tpu.memory_space<vmem>>) target_semaphore(%105 : memref<!tpu.dma_semaphore, #tpu.memory_space<semaphore_mem>>)
      %106 = arith.addi %56, %94 : i32
      %c1_i32_58 = arith.constant 1 : i32
      %c0_i32_59 = arith.constant 0 : i32
      %107 = tpu.memref_slice %arg4[%100, %c0_i32_59] : memref<96x32xf32, #tpu.memory_space<any>> -> memref<1x32xf32, #tpu.memory_space<any>>
      %c0_i32_60 = arith.constant 0 : i32
      %108 = tpu.memref_slice %arg13[%106, %c0_i32_60] : memref<16x32xf32, #tpu.memory_space<vmem>> -> memref<1x32xf32, #tpu.memory_space<vmem>>
      %109 = tpu.memref_slice %arg14[%9, %c1_i32_58] : memref<2x2x!tpu.dma_semaphore, #tpu.memory_space<semaphore_mem>> -> memref<1x1x!tpu.dma_semaphore, #tpu.memory_space<semaphore_mem>>
      %110 = tpu.memref_squeeze %109 : memref<1x1x!tpu.dma_semaphore, #tpu.memory_space<semaphore_mem>> -> memref<!tpu.dma_semaphore, #tpu.memory_space<semaphore_mem>>
      tpu.enqueue_dma source(%107 : memref<1x32xf32, #tpu.memory_space<any>>) target(%108 : memref<1x32xf32, #tpu.memory_space<vmem>>) target_semaphore(%110 : memref<!tpu.dma_semaphore, #tpu.memory_space<semaphore_mem>>)
      %c3_i32 = arith.constant 3 : i32
      %111 = arith.addi %59, %c3_i32 : i32
      %112 = arith.addi %55, %111 : i32
      %113 = arith.index_cast %112 : i32 to index
      %114 = memref.load %arg1[%113] : memref<8xi32, #tpu.memory_space<smem>>
      %115 = arith.addi %55, %111 : i32
      %116 = arith.index_cast %115 : i32 to index
      %117 = memref.load %arg2[%116] : memref<8xi32, #tpu.memory_space<smem>>
      %118 = arith.addi %56, %111 : i32
      %c0_i32_61 = arith.constant 0 : i32
      %c0_i32_62 = arith.constant 0 : i32
      %119 = tpu.memref_slice %arg3[%114, %c0_i32_62] : memref<64x32xf32, #tpu.memory_space<any>> -> memref<1x32xf32, #tpu.memory_space<any>>
      %c0_i32_63 = arith.constant 0 : i32
      %120 = tpu.memref_slice %arg12[%118, %c0_i32_63] : memref<16x32xf32, #tpu.memory_space<vmem>> -> memref<1x32xf32, #tpu.memory_space<vmem>>
      %121 = tpu.memref_slice %arg14[%9, %c0_i32_61] : memref<2x2x!tpu.dma_semaphore, #tpu.memory_space<semaphore_mem>> -> memref<1x1x!tpu.dma_semaphore, #tpu.memory_space<semaphore_mem>>
      %122 = tpu.memref_squeeze %121 : memref<1x1x!tpu.dma_semaphore, #tpu.memory_space<semaphore_mem>> -> memref<!tpu.dma_semaphore, #tpu.memory_space<semaphore_mem>>
      tpu.enqueue_dma source(%119 : memref<1x32xf32, #tpu.memory_space<any>>) target(%120 : memref<1x32xf32, #tpu.memory_space<vmem>>) target_semaphore(%122 : memref<!tpu.dma_semaphore, #tpu.memory_space<semaphore_mem>>)
      %123 = arith.addi %56, %111 : i32
      %c1_i32_64 = arith.constant 1 : i32
      %c0_i32_65 = arith.constant 0 : i32
      %124 = tpu.memref_slice %arg4[%117, %c0_i32_65] : memref<96x32xf32, #tpu.memory_space<any>> -> memref<1x32xf32, #tpu.memory_space<any>>
      %c0_i32_66 = arith.constant 0 : i32
      %125 = tpu.memref_slice %arg13[%123, %c0_i32_66] : memref<16x32xf32, #tpu.memory_space<vmem>> -> memref<1x32xf32, #tpu.memory_space<vmem>>
      %126 = tpu.memref_slice %arg14[%9, %c1_i32_64] : memref<2x2x!tpu.dma_semaphore, #tpu.memory_space<semaphore_mem>> -> memref<1x1x!tpu.dma_semaphore, #tpu.memory_space<semaphore_mem>>
      %127 = tpu.memref_squeeze %126 : memref<1x1x!tpu.dma_semaphore, #tpu.memory_space<semaphore_mem>> -> memref<!tpu.dma_semaphore, #tpu.memory_space<semaphore_mem>>
      tpu.enqueue_dma source(%124 : memref<1x32xf32, #tpu.memory_space<any>>) target(%125 : memref<1x32xf32, #tpu.memory_space<vmem>>) target_semaphore(%127 : memref<!tpu.dma_semaphore, #tpu.memory_space<semaphore_mem>>)
      %c4_i32 = arith.constant 4 : i32
      %128 = arith.addi %59, %c4_i32 : i32
      %129 = arith.addi %55, %128 : i32
      %130 = arith.index_cast %129 : i32 to index
      %131 = memref.load %arg1[%130] : memref<8xi32, #tpu.memory_space<smem>>
      %132 = arith.addi %55, %128 : i32
      %133 = arith.index_cast %132 : i32 to index
      %134 = memref.load %arg2[%133] : memref<8xi32, #tpu.memory_space<smem>>
      %135 = arith.addi %56, %128 : i32
      %c0_i32_67 = arith.constant 0 : i32
      %c0_i32_68 = arith.constant 0 : i32
      %136 = tpu.memref_slice %arg3[%131, %c0_i32_68] : memref<64x32xf32, #tpu.memory_space<any>> -> memref<1x32xf32, #tpu.memory_space<any>>
      %c0_i32_69 = arith.constant 0 : i32
      %137 = tpu.memref_slice %arg12[%135, %c0_i32_69] : memref<16x32xf32, #tpu.memory_space<vmem>> -> memref<1x32xf32, #tpu.memory_space<vmem>>
      %138 = tpu.memref_slice %arg14[%9, %c0_i32_67] : memref<2x2x!tpu.dma_semaphore, #tpu.memory_space<semaphore_mem>> -> memref<1x1x!tpu.dma_semaphore, #tpu.memory_space<semaphore_mem>>
      %139 = tpu.memref_squeeze %138 : memref<1x1x!tpu.dma_semaphore, #tpu.memory_space<semaphore_mem>> -> memref<!tpu.dma_semaphore, #tpu.memory_space<semaphore_mem>>
      tpu.enqueue_dma source(%136 : memref<1x32xf32, #tpu.memory_space<any>>) target(%137 : memref<1x32xf32, #tpu.memory_space<vmem>>) target_semaphore(%139 : memref<!tpu.dma_semaphore, #tpu.memory_space<semaphore_mem>>)
      %140 = arith.addi %56, %128 : i32
      %c1_i32_70 = arith.constant 1 : i32
      %c0_i32_71 = arith.constant 0 : i32
      %141 = tpu.memref_slice %arg4[%134, %c0_i32_71] : memref<96x32xf32, #tpu.memory_space<any>> -> memref<1x32xf32, #tpu.memory_space<any>>
      %c0_i32_72 = arith.constant 0 : i32
      %142 = tpu.memref_slice %arg13[%140, %c0_i32_72] : memref<16x32xf32, #tpu.memory_space<vmem>> -> memref<1x32xf32, #tpu.memory_space<vmem>>
      %143 = tpu.memref_slice %arg14[%9, %c1_i32_70] : memref<2x2x!tpu.dma_semaphore, #tpu.memory_space<semaphore_mem>> -> memref<1x1x!tpu.dma_semaphore, #tpu.memory_space<semaphore_mem>>
      %144 = tpu.memref_squeeze %143 : memref<1x1x!tpu.dma_semaphore, #tpu.memory_space<semaphore_mem>> -> memref<!tpu.dma_semaphore, #tpu.memory_space<semaphore_mem>>
      tpu.enqueue_dma source(%141 : memref<1x32xf32, #tpu.memory_space<any>>) target(%142 : memref<1x32xf32, #tpu.memory_space<vmem>>) target_semaphore(%144 : memref<!tpu.dma_semaphore, #tpu.memory_space<semaphore_mem>>)
      %c5_i32 = arith.constant 5 : i32
      %145 = arith.addi %59, %c5_i32 : i32
      %146 = arith.addi %55, %145 : i32
      %147 = arith.index_cast %146 : i32 to index
      %148 = memref.load %arg1[%147] : memref<8xi32, #tpu.memory_space<smem>>
      %149 = arith.addi %55, %145 : i32
      %150 = arith.index_cast %149 : i32 to index
      %151 = memref.load %arg2[%150] : memref<8xi32, #tpu.memory_space<smem>>
      %152 = arith.addi %56, %145 : i32
      %c0_i32_73 = arith.constant 0 : i32
      %c0_i32_74 = arith.constant 0 : i32
      %153 = tpu.memref_slice %arg3[%148, %c0_i32_74] : memref<64x32xf32, #tpu.memory_space<any>> -> memref<1x32xf32, #tpu.memory_space<any>>
      %c0_i32_75 = arith.constant 0 : i32
      %154 = tpu.memref_slice %arg12[%152, %c0_i32_75] : memref<16x32xf32, #tpu.memory_space<vmem>> -> memref<1x32xf32, #tpu.memory_space<vmem>>
      %155 = tpu.memref_slice %arg14[%9, %c0_i32_73] : memref<2x2x!tpu.dma_semaphore, #tpu.memory_space<semaphore_mem>> -> memref<1x1x!tpu.dma_semaphore, #tpu.memory_space<semaphore_mem>>
      %156 = tpu.memref_squeeze %155 : memref<1x1x!tpu.dma_semaphore, #tpu.memory_space<semaphore_mem>> -> memref<!tpu.dma_semaphore, #tpu.memory_space<semaphore_mem>>
      tpu.enqueue_dma source(%153 : memref<1x32xf32, #tpu.memory_space<any>>) target(%154 : memref<1x32xf32, #tpu.memory_space<vmem>>) target_semaphore(%156 : memref<!tpu.dma_semaphore, #tpu.memory_space<semaphore_mem>>)
      %157 = arith.addi %56, %145 : i32
      %c1_i32_76 = arith.constant 1 : i32
      %c0_i32_77 = arith.constant 0 : i32
      %158 = tpu.memref_slice %arg4[%151, %c0_i32_77] : memref<96x32xf32, #tpu.memory_space<any>> -> memref<1x32xf32, #tpu.memory_space<any>>
      %c0_i32_78 = arith.constant 0 : i32
      %159 = tpu.memref_slice %arg13[%157, %c0_i32_78] : memref<16x32xf32, #tpu.memory_space<vmem>> -> memref<1x32xf32, #tpu.memory_space<vmem>>
      %160 = tpu.memref_slice %arg14[%9, %c1_i32_76] : memref<2x2x!tpu.dma_semaphore, #tpu.memory_space<semaphore_mem>> -> memref<1x1x!tpu.dma_semaphore, #tpu.memory_space<semaphore_mem>>
      %161 = tpu.memref_squeeze %160 : memref<1x1x!tpu.dma_semaphore, #tpu.memory_space<semaphore_mem>> -> memref<!tpu.dma_semaphore, #tpu.memory_space<semaphore_mem>>
      tpu.enqueue_dma source(%158 : memref<1x32xf32, #tpu.memory_space<any>>) target(%159 : memref<1x32xf32, #tpu.memory_space<vmem>>) target_semaphore(%161 : memref<!tpu.dma_semaphore, #tpu.memory_space<semaphore_mem>>)
      %c6_i32 = arith.constant 6 : i32
      %162 = arith.addi %59, %c6_i32 : i32
      %163 = arith.addi %55, %162 : i32
      %164 = arith.index_cast %163 : i32 to index
      %165 = memref.load %arg1[%164] : memref<8xi32, #tpu.memory_space<smem>>
      %166 = arith.addi %55, %162 : i32
      %167 = arith.index_cast %166 : i32 to index
      %168 = memref.load %arg2[%167] : memref<8xi32, #tpu.memory_space<smem>>
      %169 = arith.addi %56, %162 : i32
      %c0_i32_79 = arith.constant 0 : i32
      %c0_i32_80 = arith.constant 0 : i32
      %170 = tpu.memref_slice %arg3[%165, %c0_i32_80] : memref<64x32xf32, #tpu.memory_space<any>> -> memref<1x32xf32, #tpu.memory_space<any>>
      %c0_i32_81 = arith.constant 0 : i32
      %171 = tpu.memref_slice %arg12[%169, %c0_i32_81] : memref<16x32xf32, #tpu.memory_space<vmem>> -> memref<1x32xf32, #tpu.memory_space<vmem>>
      %172 = tpu.memref_slice %arg14[%9, %c0_i32_79] : memref<2x2x!tpu.dma_semaphore, #tpu.memory_space<semaphore_mem>> -> memref<1x1x!tpu.dma_semaphore, #tpu.memory_space<semaphore_mem>>
      %173 = tpu.memref_squeeze %172 : memref<1x1x!tpu.dma_semaphore, #tpu.memory_space<semaphore_mem>> -> memref<!tpu.dma_semaphore, #tpu.memory_space<semaphore_mem>>
      tpu.enqueue_dma source(%170 : memref<1x32xf32, #tpu.memory_space<any>>) target(%171 : memref<1x32xf32, #tpu.memory_space<vmem>>) target_semaphore(%173 : memref<!tpu.dma_semaphore, #tpu.memory_space<semaphore_mem>>)
      %174 = arith.addi %56, %162 : i32
      %c1_i32_82 = arith.constant 1 : i32
      %c0_i32_83 = arith.constant 0 : i32
      %175 = tpu.memref_slice %arg4[%168, %c0_i32_83] : memref<96x32xf32, #tpu.memory_space<any>> -> memref<1x32xf32, #tpu.memory_space<any>>
      %c0_i32_84 = arith.constant 0 : i32
      %176 = tpu.memref_slice %arg13[%174, %c0_i32_84] : memref<16x32xf32, #tpu.memory_space<vmem>> -> memref<1x32xf32, #tpu.memory_space<vmem>>
      %177 = tpu.memref_slice %arg14[%9, %c1_i32_82] : memref<2x2x!tpu.dma_semaphore, #tpu.memory_space<semaphore_mem>> -> memref<1x1x!tpu.dma_semaphore, #tpu.memory_space<semaphore_mem>>
      %178 = tpu.memref_squeeze %177 : memref<1x1x!tpu.dma_semaphore, #tpu.memory_space<semaphore_mem>> -> memref<!tpu.dma_semaphore, #tpu.memory_space<semaphore_mem>>
      tpu.enqueue_dma source(%175 : memref<1x32xf32, #tpu.memory_space<any>>) target(%176 : memref<1x32xf32, #tpu.memory_space<vmem>>) target_semaphore(%178 : memref<!tpu.dma_semaphore, #tpu.memory_space<semaphore_mem>>)
      %c7_i32 = arith.constant 7 : i32
      %179 = arith.addi %59, %c7_i32 : i32
      %180 = arith.addi %55, %179 : i32
      %181 = arith.index_cast %180 : i32 to index
      %182 = memref.load %arg1[%181] : memref<8xi32, #tpu.memory_space<smem>>
      %183 = arith.addi %55, %179 : i32
      %184 = arith.index_cast %183 : i32 to index
      %185 = memref.load %arg2[%184] : memref<8xi32, #tpu.memory_space<smem>>
      %186 = arith.addi %56, %179 : i32
      %c0_i32_85 = arith.constant 0 : i32
      %c0_i32_86 = arith.constant 0 : i32
      %187 = tpu.memref_slice %arg3[%182, %c0_i32_86] : memref<64x32xf32, #tpu.memory_space<any>> -> memref<1x32xf32, #tpu.memory_space<any>>
      %c0_i32_87 = arith.constant 0 : i32
      %188 = tpu.memref_slice %arg12[%186, %c0_i32_87] : memref<16x32xf32, #tpu.memory_space<vmem>> -> memref<1x32xf32, #tpu.memory_space<vmem>>
      %189 = tpu.memref_slice %arg14[%9, %c0_i32_85] : memref<2x2x!tpu.dma_semaphore, #tpu.memory_space<semaphore_mem>> -> memref<1x1x!tpu.dma_semaphore, #tpu.memory_space<semaphore_mem>>
      %190 = tpu.memref_squeeze %189 : memref<1x1x!tpu.dma_semaphore, #tpu.memory_space<semaphore_mem>> -> memref<!tpu.dma_semaphore, #tpu.memory_space<semaphore_mem>>
      tpu.enqueue_dma source(%187 : memref<1x32xf32, #tpu.memory_space<any>>) target(%188 : memref<1x32xf32, #tpu.memory_space<vmem>>) target_semaphore(%190 : memref<!tpu.dma_semaphore, #tpu.memory_space<semaphore_mem>>)
      %191 = arith.addi %56, %179 : i32
      %c1_i32_88 = arith.constant 1 : i32
      %c0_i32_89 = arith.constant 0 : i32
      %192 = tpu.memref_slice %arg4[%185, %c0_i32_89] : memref<96x32xf32, #tpu.memory_space<any>> -> memref<1x32xf32, #tpu.memory_space<any>>
      %c0_i32_90 = arith.constant 0 : i32
      %193 = tpu.memref_slice %arg13[%191, %c0_i32_90] : memref<16x32xf32, #tpu.memory_space<vmem>> -> memref<1x32xf32, #tpu.memory_space<vmem>>
      %194 = tpu.memref_slice %arg14[%9, %c1_i32_88] : memref<2x2x!tpu.dma_semaphore, #tpu.memory_space<semaphore_mem>> -> memref<1x1x!tpu.dma_semaphore, #tpu.memory_space<semaphore_mem>>
      %195 = tpu.memref_squeeze %194 : memref<1x1x!tpu.dma_semaphore, #tpu.memory_space<semaphore_mem>> -> memref<!tpu.dma_semaphore, #tpu.memory_space<semaphore_mem>>
      tpu.enqueue_dma source(%192 : memref<1x32xf32, #tpu.memory_space<any>>) target(%193 : memref<1x32xf32, #tpu.memory_space<vmem>>) target_semaphore(%195 : memref<!tpu.dma_semaphore, #tpu.memory_space<semaphore_mem>>)
      %c1_i32_91 = arith.constant 1 : i32
    } else {
    }
    %c1_i32_5 = arith.constant 1 : i32
    %13 = arith.addi %arg0, %c1_i32_5 : i32
    %c1_i32_6 = arith.constant 1 : i32
    %14 = arith.cmpi slt, %13, %c1_i32_6 : i32
    %15 = arith.extui %14 : i1 to i32
    %c0_i32_7 = arith.constant 0 : i32
    %16 = arith.cmpi ne, %15, %c0_i32_7 : i32
    scf.if %16 {
      %c1_i32_34 = arith.constant 1 : i32
      %55 = arith.addi %arg0, %c1_i32_34 : i32
      %c1_i32_35 = arith.constant 1 : i32
      %56 = arith.subi %c1_i32_35, %9 : i32
      %c8_i32_36 = arith.constant 8 : i32
      %57 = arith.muli %55, %c8_i32_36 : i32
      %c8_i32_37 = arith.constant 8 : i32
      %58 = arith.muli %56, %c8_i32_37 : i32
      %c0_i32_38 = arith.constant 0 : i32
      %c1_i32_39 = arith.constant 1 : i32
      %59 = arith.muli %c0_i32_38, %c1_i32_39 : i32
      %c0_i32_40 = arith.constant 0 : i32
      %60 = arith.addi %c0_i32_40, %59 : i32
      %c8_i32_41 = arith.constant 8 : i32
      %61 = arith.muli %60, %c8_i32_41 : i32
      %c0_i32_42 = arith.constant 0 : i32
      %62 = arith.addi %61, %c0_i32_42 : i32
      %63 = arith.addi %57, %62 : i32
      %64 = arith.index_cast %63 : i32 to index
      %65 = memref.load %arg1[%64] : memref<8xi32, #tpu.memory_space<smem>>
      %66 = arith.addi %57, %62 : i32
      %67 = arith.index_cast %66 : i32 to index
      %68 = memref.load %arg2[%67] : memref<8xi32, #tpu.memory_space<smem>>
      %69 = arith.addi %58, %62 : i32
      %c0_i32_43 = arith.constant 0 : i32
      %c0_i32_44 = arith.constant 0 : i32
      %70 = tpu.memref_slice %arg3[%65, %c0_i32_44] : memref<64x32xf32, #tpu.memory_space<any>> -> memref<1x32xf32, #tpu.memory_space<any>>
      %c0_i32_45 = arith.constant 0 : i32
      %71 = tpu.memref_slice %arg12[%69, %c0_i32_45] : memref<16x32xf32, #tpu.memory_space<vmem>> -> memref<1x32xf32, #tpu.memory_space<vmem>>
      %72 = tpu.memref_slice %arg14[%56, %c0_i32_43] : memref<2x2x!tpu.dma_semaphore, #tpu.memory_space<semaphore_mem>> -> memref<1x1x!tpu.dma_semaphore, #tpu.memory_space<semaphore_mem>>
      %73 = tpu.memref_squeeze %72 : memref<1x1x!tpu.dma_semaphore, #tpu.memory_space<semaphore_mem>> -> memref<!tpu.dma_semaphore, #tpu.memory_space<semaphore_mem>>
      tpu.enqueue_dma source(%70 : memref<1x32xf32, #tpu.memory_space<any>>) target(%71 : memref<1x32xf32, #tpu.memory_space<vmem>>) target_semaphore(%73 : memref<!tpu.dma_semaphore, #tpu.memory_space<semaphore_mem>>)
      %74 = arith.addi %58, %62 : i32
      %c1_i32_46 = arith.constant 1 : i32
      %c0_i32_47 = arith.constant 0 : i32
      %75 = tpu.memref_slice %arg4[%68, %c0_i32_47] : memref<96x32xf32, #tpu.memory_space<any>> -> memref<1x32xf32, #tpu.memory_space<any>>
      %c0_i32_48 = arith.constant 0 : i32
      %76 = tpu.memref_slice %arg13[%74, %c0_i32_48] : memref<16x32xf32, #tpu.memory_space<vmem>> -> memref<1x32xf32, #tpu.memory_space<vmem>>
      %77 = tpu.memref_slice %arg14[%56, %c1_i32_46] : memref<2x2x!tpu.dma_semaphore, #tpu.memory_space<semaphore_mem>> -> memref<1x1x!tpu.dma_semaphore, #tpu.memory_space<semaphore_mem>>
      %78 = tpu.memref_squeeze %77 : memref<1x1x!tpu.dma_semaphore, #tpu.memory_space<semaphore_mem>> -> memref<!tpu.dma_semaphore, #tpu.memory_space<semaphore_mem>>
      tpu.enqueue_dma source(%75 : memref<1x32xf32, #tpu.memory_space<any>>) target(%76 : memref<1x32xf32, #tpu.memory_space<vmem>>) target_semaphore(%78 : memref<!tpu.dma_semaphore, #tpu.memory_space<semaphore_mem>>)
      %c1_i32_49 = arith.constant 1 : i32
      %79 = arith.addi %61, %c1_i32_49 : i32
      %80 = arith.addi %57, %79 : i32
      %81 = arith.index_cast %80 : i32 to index
      %82 = memref.load %arg1[%81] : memref<8xi32, #tpu.memory_space<smem>>
      %83 = arith.addi %57, %79 : i32
      %84 = arith.index_cast %83 : i32 to index
      %85 = memref.load %arg2[%84] : memref<8xi32, #tpu.memory_space<smem>>
      %86 = arith.addi %58, %79 : i32
      %c0_i32_50 = arith.constant 0 : i32
      %c0_i32_51 = arith.constant 0 : i32
      %87 = tpu.memref_slice %arg3[%82, %c0_i32_51] : memref<64x32xf32, #tpu.memory_space<any>> -> memref<1x32xf32, #tpu.memory_space<any>>
      %c0_i32_52 = arith.constant 0 : i32
      %88 = tpu.memref_slice %arg12[%86, %c0_i32_52] : memref<16x32xf32, #tpu.memory_space<vmem>> -> memref<1x32xf32, #tpu.memory_space<vmem>>
      %89 = tpu.memref_slice %arg14[%56, %c0_i32_50] : memref<2x2x!tpu.dma_semaphore, #tpu.memory_space<semaphore_mem>> -> memref<1x1x!tpu.dma_semaphore, #tpu.memory_space<semaphore_mem>>
      %90 = tpu.memref_squeeze %89 : memref<1x1x!tpu.dma_semaphore, #tpu.memory_space<semaphore_mem>> -> memref<!tpu.dma_semaphore, #tpu.memory_space<semaphore_mem>>
      tpu.enqueue_dma source(%87 : memref<1x32xf32, #tpu.memory_space<any>>) target(%88 : memref<1x32xf32, #tpu.memory_space<vmem>>) target_semaphore(%90 : memref<!tpu.dma_semaphore, #tpu.memory_space<semaphore_mem>>)
      %91 = arith.addi %58, %79 : i32
      %c1_i32_53 = arith.constant 1 : i32
      %c0_i32_54 = arith.constant 0 : i32
      %92 = tpu.memref_slice %arg4[%85, %c0_i32_54] : memref<96x32xf32, #tpu.memory_space<any>> -> memref<1x32xf32, #tpu.memory_space<any>>
      %c0_i32_55 = arith.constant 0 : i32
      %93 = tpu.memref_slice %arg13[%91, %c0_i32_55] : memref<16x32xf32, #tpu.memory_space<vmem>> -> memref<1x32xf32, #tpu.memory_space<vmem>>
      %94 = tpu.memref_slice %arg14[%56, %c1_i32_53] : memref<2x2x!tpu.dma_semaphore, #tpu.memory_space<semaphore_mem>> -> memref<1x1x!tpu.dma_semaphore, #tpu.memory_space<semaphore_mem>>
      %95 = tpu.memref_squeeze %94 : memref<1x1x!tpu.dma_semaphore, #tpu.memory_space<semaphore_mem>> -> memref<!tpu.dma_semaphore, #tpu.memory_space<semaphore_mem>>
      tpu.enqueue_dma source(%92 : memref<1x32xf32, #tpu.memory_space<any>>) target(%93 : memref<1x32xf32, #tpu.memory_space<vmem>>) target_semaphore(%95 : memref<!tpu.dma_semaphore, #tpu.memory_space<semaphore_mem>>)
      %c2_i32_56 = arith.constant 2 : i32
      %96 = arith.addi %61, %c2_i32_56 : i32
      %97 = arith.addi %57, %96 : i32
      %98 = arith.index_cast %97 : i32 to index
      %99 = memref.load %arg1[%98] : memref<8xi32, #tpu.memory_space<smem>>
      %100 = arith.addi %57, %96 : i32
      %101 = arith.index_cast %100 : i32 to index
      %102 = memref.load %arg2[%101] : memref<8xi32, #tpu.memory_space<smem>>
      %103 = arith.addi %58, %96 : i32
      %c0_i32_57 = arith.constant 0 : i32
      %c0_i32_58 = arith.constant 0 : i32
      %104 = tpu.memref_slice %arg3[%99, %c0_i32_58] : memref<64x32xf32, #tpu.memory_space<any>> -> memref<1x32xf32, #tpu.memory_space<any>>
      %c0_i32_59 = arith.constant 0 : i32
      %105 = tpu.memref_slice %arg12[%103, %c0_i32_59] : memref<16x32xf32, #tpu.memory_space<vmem>> -> memref<1x32xf32, #tpu.memory_space<vmem>>
      %106 = tpu.memref_slice %arg14[%56, %c0_i32_57] : memref<2x2x!tpu.dma_semaphore, #tpu.memory_space<semaphore_mem>> -> memref<1x1x!tpu.dma_semaphore, #tpu.memory_space<semaphore_mem>>
      %107 = tpu.memref_squeeze %106 : memref<1x1x!tpu.dma_semaphore, #tpu.memory_space<semaphore_mem>> -> memref<!tpu.dma_semaphore, #tpu.memory_space<semaphore_mem>>
      tpu.enqueue_dma source(%104 : memref<1x32xf32, #tpu.memory_space<any>>) target(%105 : memref<1x32xf32, #tpu.memory_space<vmem>>) target_semaphore(%107 : memref<!tpu.dma_semaphore, #tpu.memory_space<semaphore_mem>>)
      %108 = arith.addi %58, %96 : i32
      %c1_i32_60 = arith.constant 1 : i32
      %c0_i32_61 = arith.constant 0 : i32
      %109 = tpu.memref_slice %arg4[%102, %c0_i32_61] : memref<96x32xf32, #tpu.memory_space<any>> -> memref<1x32xf32, #tpu.memory_space<any>>
      %c0_i32_62 = arith.constant 0 : i32
      %110 = tpu.memref_slice %arg13[%108, %c0_i32_62] : memref<16x32xf32, #tpu.memory_space<vmem>> -> memref<1x32xf32, #tpu.memory_space<vmem>>
      %111 = tpu.memref_slice %arg14[%56, %c1_i32_60] : memref<2x2x!tpu.dma_semaphore, #tpu.memory_space<semaphore_mem>> -> memref<1x1x!tpu.dma_semaphore, #tpu.memory_space<semaphore_mem>>
      %112 = tpu.memref_squeeze %111 : memref<1x1x!tpu.dma_semaphore, #tpu.memory_space<semaphore_mem>> -> memref<!tpu.dma_semaphore, #tpu.memory_space<semaphore_mem>>
      tpu.enqueue_dma source(%109 : memref<1x32xf32, #tpu.memory_space<any>>) target(%110 : memref<1x32xf32, #tpu.memory_space<vmem>>) target_semaphore(%112 : memref<!tpu.dma_semaphore, #tpu.memory_space<semaphore_mem>>)
      %c3_i32 = arith.constant 3 : i32
      %113 = arith.addi %61, %c3_i32 : i32
      %114 = arith.addi %57, %113 : i32
      %115 = arith.index_cast %114 : i32 to index
      %116 = memref.load %arg1[%115] : memref<8xi32, #tpu.memory_space<smem>>
      %117 = arith.addi %57, %113 : i32
      %118 = arith.index_cast %117 : i32 to index
      %119 = memref.load %arg2[%118] : memref<8xi32, #tpu.memory_space<smem>>
      %120 = arith.addi %58, %113 : i32
      %c0_i32_63 = arith.constant 0 : i32
      %c0_i32_64 = arith.constant 0 : i32
      %121 = tpu.memref_slice %arg3[%116, %c0_i32_64] : memref<64x32xf32, #tpu.memory_space<any>> -> memref<1x32xf32, #tpu.memory_space<any>>
      %c0_i32_65 = arith.constant 0 : i32
      %122 = tpu.memref_slice %arg12[%120, %c0_i32_65] : memref<16x32xf32, #tpu.memory_space<vmem>> -> memref<1x32xf32, #tpu.memory_space<vmem>>
      %123 = tpu.memref_slice %arg14[%56, %c0_i32_63] : memref<2x2x!tpu.dma_semaphore, #tpu.memory_space<semaphore_mem>> -> memref<1x1x!tpu.dma_semaphore, #tpu.memory_space<semaphore_mem>>
      %124 = tpu.memref_squeeze %123 : memref<1x1x!tpu.dma_semaphore, #tpu.memory_space<semaphore_mem>> -> memref<!tpu.dma_semaphore, #tpu.memory_space<semaphore_mem>>
      tpu.enqueue_dma source(%121 : memref<1x32xf32, #tpu.memory_space<any>>) target(%122 : memref<1x32xf32, #tpu.memory_space<vmem>>) target_semaphore(%124 : memref<!tpu.dma_semaphore, #tpu.memory_space<semaphore_mem>>)
      %125 = arith.addi %58, %113 : i32
      %c1_i32_66 = arith.constant 1 : i32
      %c0_i32_67 = arith.constant 0 : i32
      %126 = tpu.memref_slice %arg4[%119, %c0_i32_67] : memref<96x32xf32, #tpu.memory_space<any>> -> memref<1x32xf32, #tpu.memory_space<any>>
      %c0_i32_68 = arith.constant 0 : i32
      %127 = tpu.memref_slice %arg13[%125, %c0_i32_68] : memref<16x32xf32, #tpu.memory_space<vmem>> -> memref<1x32xf32, #tpu.memory_space<vmem>>
      %128 = tpu.memref_slice %arg14[%56, %c1_i32_66] : memref<2x2x!tpu.dma_semaphore, #tpu.memory_space<semaphore_mem>> -> memref<1x1x!tpu.dma_semaphore, #tpu.memory_space<semaphore_mem>>
      %129 = tpu.memref_squeeze %128 : memref<1x1x!tpu.dma_semaphore, #tpu.memory_space<semaphore_mem>> -> memref<!tpu.dma_semaphore, #tpu.memory_space<semaphore_mem>>
      tpu.enqueue_dma source(%126 : memref<1x32xf32, #tpu.memory_space<any>>) target(%127 : memref<1x32xf32, #tpu.memory_space<vmem>>) target_semaphore(%129 : memref<!tpu.dma_semaphore, #tpu.memory_space<semaphore_mem>>)
      %c4_i32 = arith.constant 4 : i32
      %130 = arith.addi %61, %c4_i32 : i32
      %131 = arith.addi %57, %130 : i32
      %132 = arith.index_cast %131 : i32 to index
      %133 = memref.load %arg1[%132] : memref<8xi32, #tpu.memory_space<smem>>
      %134 = arith.addi %57, %130 : i32
      %135 = arith.index_cast %134 : i32 to index
      %136 = memref.load %arg2[%135] : memref<8xi32, #tpu.memory_space<smem>>
      %137 = arith.addi %58, %130 : i32
      %c0_i32_69 = arith.constant 0 : i32
      %c0_i32_70 = arith.constant 0 : i32
      %138 = tpu.memref_slice %arg3[%133, %c0_i32_70] : memref<64x32xf32, #tpu.memory_space<any>> -> memref<1x32xf32, #tpu.memory_space<any>>
      %c0_i32_71 = arith.constant 0 : i32
      %139 = tpu.memref_slice %arg12[%137, %c0_i32_71] : memref<16x32xf32, #tpu.memory_space<vmem>> -> memref<1x32xf32, #tpu.memory_space<vmem>>
      %140 = tpu.memref_slice %arg14[%56, %c0_i32_69] : memref<2x2x!tpu.dma_semaphore, #tpu.memory_space<semaphore_mem>> -> memref<1x1x!tpu.dma_semaphore, #tpu.memory_space<semaphore_mem>>
      %141 = tpu.memref_squeeze %140 : memref<1x1x!tpu.dma_semaphore, #tpu.memory_space<semaphore_mem>> -> memref<!tpu.dma_semaphore, #tpu.memory_space<semaphore_mem>>
      tpu.enqueue_dma source(%138 : memref<1x32xf32, #tpu.memory_space<any>>) target(%139 : memref<1x32xf32, #tpu.memory_space<vmem>>) target_semaphore(%141 : memref<!tpu.dma_semaphore, #tpu.memory_space<semaphore_mem>>)
      %142 = arith.addi %58, %130 : i32
      %c1_i32_72 = arith.constant 1 : i32
      %c0_i32_73 = arith.constant 0 : i32
      %143 = tpu.memref_slice %arg4[%136, %c0_i32_73] : memref<96x32xf32, #tpu.memory_space<any>> -> memref<1x32xf32, #tpu.memory_space<any>>
      %c0_i32_74 = arith.constant 0 : i32
      %144 = tpu.memref_slice %arg13[%142, %c0_i32_74] : memref<16x32xf32, #tpu.memory_space<vmem>> -> memref<1x32xf32, #tpu.memory_space<vmem>>
      %145 = tpu.memref_slice %arg14[%56, %c1_i32_72] : memref<2x2x!tpu.dma_semaphore, #tpu.memory_space<semaphore_mem>> -> memref<1x1x!tpu.dma_semaphore, #tpu.memory_space<semaphore_mem>>
      %146 = tpu.memref_squeeze %145 : memref<1x1x!tpu.dma_semaphore, #tpu.memory_space<semaphore_mem>> -> memref<!tpu.dma_semaphore, #tpu.memory_space<semaphore_mem>>
      tpu.enqueue_dma source(%143 : memref<1x32xf32, #tpu.memory_space<any>>) target(%144 : memref<1x32xf32, #tpu.memory_space<vmem>>) target_semaphore(%146 : memref<!tpu.dma_semaphore, #tpu.memory_space<semaphore_mem>>)
      %c5_i32 = arith.constant 5 : i32
      %147 = arith.addi %61, %c5_i32 : i32
      %148 = arith.addi %57, %147 : i32
      %149 = arith.index_cast %148 : i32 to index
      %150 = memref.load %arg1[%149] : memref<8xi32, #tpu.memory_space<smem>>
      %151 = arith.addi %57, %147 : i32
      %152 = arith.index_cast %151 : i32 to index
      %153 = memref.load %arg2[%152] : memref<8xi32, #tpu.memory_space<smem>>
      %154 = arith.addi %58, %147 : i32
      %c0_i32_75 = arith.constant 0 : i32
      %c0_i32_76 = arith.constant 0 : i32
      %155 = tpu.memref_slice %arg3[%150, %c0_i32_76] : memref<64x32xf32, #tpu.memory_space<any>> -> memref<1x32xf32, #tpu.memory_space<any>>
      %c0_i32_77 = arith.constant 0 : i32
      %156 = tpu.memref_slice %arg12[%154, %c0_i32_77] : memref<16x32xf32, #tpu.memory_space<vmem>> -> memref<1x32xf32, #tpu.memory_space<vmem>>
      %157 = tpu.memref_slice %arg14[%56, %c0_i32_75] : memref<2x2x!tpu.dma_semaphore, #tpu.memory_space<semaphore_mem>> -> memref<1x1x!tpu.dma_semaphore, #tpu.memory_space<semaphore_mem>>
      %158 = tpu.memref_squeeze %157 : memref<1x1x!tpu.dma_semaphore, #tpu.memory_space<semaphore_mem>> -> memref<!tpu.dma_semaphore, #tpu.memory_space<semaphore_mem>>
      tpu.enqueue_dma source(%155 : memref<1x32xf32, #tpu.memory_space<any>>) target(%156 : memref<1x32xf32, #tpu.memory_space<vmem>>) target_semaphore(%158 : memref<!tpu.dma_semaphore, #tpu.memory_space<semaphore_mem>>)
      %159 = arith.addi %58, %147 : i32
      %c1_i32_78 = arith.constant 1 : i32
      %c0_i32_79 = arith.constant 0 : i32
      %160 = tpu.memref_slice %arg4[%153, %c0_i32_79] : memref<96x32xf32, #tpu.memory_space<any>> -> memref<1x32xf32, #tpu.memory_space<any>>
      %c0_i32_80 = arith.constant 0 : i32
      %161 = tpu.memref_slice %arg13[%159, %c0_i32_80] : memref<16x32xf32, #tpu.memory_space<vmem>> -> memref<1x32xf32, #tpu.memory_space<vmem>>
      %162 = tpu.memref_slice %arg14[%56, %c1_i32_78] : memref<2x2x!tpu.dma_semaphore, #tpu.memory_space<semaphore_mem>> -> memref<1x1x!tpu.dma_semaphore, #tpu.memory_space<semaphore_mem>>
      %163 = tpu.memref_squeeze %162 : memref<1x1x!tpu.dma_semaphore, #tpu.memory_space<semaphore_mem>> -> memref<!tpu.dma_semaphore, #tpu.memory_space<semaphore_mem>>
      tpu.enqueue_dma source(%160 : memref<1x32xf32, #tpu.memory_space<any>>) target(%161 : memref<1x32xf32, #tpu.memory_space<vmem>>) target_semaphore(%163 : memref<!tpu.dma_semaphore, #tpu.memory_space<semaphore_mem>>)
      %c6_i32 = arith.constant 6 : i32
      %164 = arith.addi %61, %c6_i32 : i32
      %165 = arith.addi %57, %164 : i32
      %166 = arith.index_cast %165 : i32 to index
      %167 = memref.load %arg1[%166] : memref<8xi32, #tpu.memory_space<smem>>
      %168 = arith.addi %57, %164 : i32
      %169 = arith.index_cast %168 : i32 to index
      %170 = memref.load %arg2[%169] : memref<8xi32, #tpu.memory_space<smem>>
      %171 = arith.addi %58, %164 : i32
      %c0_i32_81 = arith.constant 0 : i32
      %c0_i32_82 = arith.constant 0 : i32
      %172 = tpu.memref_slice %arg3[%167, %c0_i32_82] : memref<64x32xf32, #tpu.memory_space<any>> -> memref<1x32xf32, #tpu.memory_space<any>>
      %c0_i32_83 = arith.constant 0 : i32
      %173 = tpu.memref_slice %arg12[%171, %c0_i32_83] : memref<16x32xf32, #tpu.memory_space<vmem>> -> memref<1x32xf32, #tpu.memory_space<vmem>>
      %174 = tpu.memref_slice %arg14[%56, %c0_i32_81] : memref<2x2x!tpu.dma_semaphore, #tpu.memory_space<semaphore_mem>> -> memref<1x1x!tpu.dma_semaphore, #tpu.memory_space<semaphore_mem>>
      %175 = tpu.memref_squeeze %174 : memref<1x1x!tpu.dma_semaphore, #tpu.memory_space<semaphore_mem>> -> memref<!tpu.dma_semaphore, #tpu.memory_space<semaphore_mem>>
      tpu.enqueue_dma source(%172 : memref<1x32xf32, #tpu.memory_space<any>>) target(%173 : memref<1x32xf32, #tpu.memory_space<vmem>>) target_semaphore(%175 : memref<!tpu.dma_semaphore, #tpu.memory_space<semaphore_mem>>)
      %176 = arith.addi %58, %164 : i32
      %c1_i32_84 = arith.constant 1 : i32
      %c0_i32_85 = arith.constant 0 : i32
      %177 = tpu.memref_slice %arg4[%170, %c0_i32_85] : memref<96x32xf32, #tpu.memory_space<any>> -> memref<1x32xf32, #tpu.memory_space<any>>
      %c0_i32_86 = arith.constant 0 : i32
      %178 = tpu.memref_slice %arg13[%176, %c0_i32_86] : memref<16x32xf32, #tpu.memory_space<vmem>> -> memref<1x32xf32, #tpu.memory_space<vmem>>
      %179 = tpu.memref_slice %arg14[%56, %c1_i32_84] : memref<2x2x!tpu.dma_semaphore, #tpu.memory_space<semaphore_mem>> -> memref<1x1x!tpu.dma_semaphore, #tpu.memory_space<semaphore_mem>>
      %180 = tpu.memref_squeeze %179 : memref<1x1x!tpu.dma_semaphore, #tpu.memory_space<semaphore_mem>> -> memref<!tpu.dma_semaphore, #tpu.memory_space<semaphore_mem>>
      tpu.enqueue_dma source(%177 : memref<1x32xf32, #tpu.memory_space<any>>) target(%178 : memref<1x32xf32, #tpu.memory_space<vmem>>) target_semaphore(%180 : memref<!tpu.dma_semaphore, #tpu.memory_space<semaphore_mem>>)
      %c7_i32 = arith.constant 7 : i32
      %181 = arith.addi %61, %c7_i32 : i32
      %182 = arith.addi %57, %181 : i32
      %183 = arith.index_cast %182 : i32 to index
      %184 = memref.load %arg1[%183] : memref<8xi32, #tpu.memory_space<smem>>
      %185 = arith.addi %57, %181 : i32
      %186 = arith.index_cast %185 : i32 to index
      %187 = memref.load %arg2[%186] : memref<8xi32, #tpu.memory_space<smem>>
      %188 = arith.addi %58, %181 : i32
      %c0_i32_87 = arith.constant 0 : i32
      %c0_i32_88 = arith.constant 0 : i32
      %189 = tpu.memref_slice %arg3[%184, %c0_i32_88] : memref<64x32xf32, #tpu.memory_space<any>> -> memref<1x32xf32, #tpu.memory_space<any>>
      %c0_i32_89 = arith.constant 0 : i32
      %190 = tpu.memref_slice %arg12[%188, %c0_i32_89] : memref<16x32xf32, #tpu.memory_space<vmem>> -> memref<1x32xf32, #tpu.memory_space<vmem>>
      %191 = tpu.memref_slice %arg14[%56, %c0_i32_87] : memref<2x2x!tpu.dma_semaphore, #tpu.memory_space<semaphore_mem>> -> memref<1x1x!tpu.dma_semaphore, #tpu.memory_space<semaphore_mem>>
      %192 = tpu.memref_squeeze %191 : memref<1x1x!tpu.dma_semaphore, #tpu.memory_space<semaphore_mem>> -> memref<!tpu.dma_semaphore, #tpu.memory_space<semaphore_mem>>
      tpu.enqueue_dma source(%189 : memref<1x32xf32, #tpu.memory_space<any>>) target(%190 : memref<1x32xf32, #tpu.memory_space<vmem>>) target_semaphore(%192 : memref<!tpu.dma_semaphore, #tpu.memory_space<semaphore_mem>>)
      %193 = arith.addi %58, %181 : i32
      %c1_i32_90 = arith.constant 1 : i32
      %c0_i32_91 = arith.constant 0 : i32
      %194 = tpu.memref_slice %arg4[%187, %c0_i32_91] : memref<96x32xf32, #tpu.memory_space<any>> -> memref<1x32xf32, #tpu.memory_space<any>>
      %c0_i32_92 = arith.constant 0 : i32
      %195 = tpu.memref_slice %arg13[%193, %c0_i32_92] : memref<16x32xf32, #tpu.memory_space<vmem>> -> memref<1x32xf32, #tpu.memory_space<vmem>>
      %196 = tpu.memref_slice %arg14[%56, %c1_i32_90] : memref<2x2x!tpu.dma_semaphore, #tpu.memory_space<semaphore_mem>> -> memref<1x1x!tpu.dma_semaphore, #tpu.memory_space<semaphore_mem>>
      %197 = tpu.memref_squeeze %196 : memref<1x1x!tpu.dma_semaphore, #tpu.memory_space<semaphore_mem>> -> memref<!tpu.dma_semaphore, #tpu.memory_space<semaphore_mem>>
      tpu.enqueue_dma source(%194 : memref<1x32xf32, #tpu.memory_space<any>>) target(%195 : memref<1x32xf32, #tpu.memory_space<vmem>>) target_semaphore(%197 : memref<!tpu.dma_semaphore, #tpu.memory_space<semaphore_mem>>)
      %c1_i32_93 = arith.constant 1 : i32
    } else {
    }
    %c8_i32 = arith.constant 8 : i32
    %17 = arith.muli %9, %c8_i32 : i32
    %18 = tpu.assume_multiple %17, 8 : i32
    %c0_i32_8 = arith.constant 0 : i32
    %c0_i32_9 = arith.constant 0 : i32
    %19 = tpu.memref_slice %arg12[%18, %c0_i32_9] : memref<16x32xf32, #tpu.memory_space<vmem>> -> memref<8x32xf32, #tpu.memory_space<vmem>>
    %c0_i32_10 = arith.constant 0 : i32
    %20 = tpu.memref_slice %arg12[%18, %c0_i32_10] : memref<16x32xf32, #tpu.memory_space<vmem>> -> memref<8x32xf32, #tpu.memory_space<vmem>>
    %21 = tpu.memref_slice %arg14[%9, %c0_i32_8] : memref<2x2x!tpu.dma_semaphore, #tpu.memory_space<semaphore_mem>> -> memref<1x1x!tpu.dma_semaphore, #tpu.memory_space<semaphore_mem>>
    %22 = tpu.memref_squeeze %21 : memref<1x1x!tpu.dma_semaphore, #tpu.memory_space<semaphore_mem>> -> memref<!tpu.dma_semaphore, #tpu.memory_space<semaphore_mem>>
    tpu.wait_dma2 semaphore(%22 : memref<!tpu.dma_semaphore, #tpu.memory_space<semaphore_mem>>) src(%19 : memref<8x32xf32, #tpu.memory_space<vmem>>) dst(%20 : memref<8x32xf32, #tpu.memory_space<vmem>>)
    %c1_i32_11 = arith.constant 1 : i32
    %c0_i32_12 = arith.constant 0 : i32
    %23 = tpu.memref_slice %arg13[%18, %c0_i32_12] : memref<16x32xf32, #tpu.memory_space<vmem>> -> memref<8x32xf32, #tpu.memory_space<vmem>>
    %c0_i32_13 = arith.constant 0 : i32
    %24 = tpu.memref_slice %arg13[%18, %c0_i32_13] : memref<16x32xf32, #tpu.memory_space<vmem>> -> memref<8x32xf32, #tpu.memory_space<vmem>>
    %25 = tpu.memref_slice %arg14[%9, %c1_i32_11] : memref<2x2x!tpu.dma_semaphore, #tpu.memory_space<semaphore_mem>> -> memref<1x1x!tpu.dma_semaphore, #tpu.memory_space<semaphore_mem>>
    %26 = tpu.memref_squeeze %25 : memref<1x1x!tpu.dma_semaphore, #tpu.memory_space<semaphore_mem>> -> memref<!tpu.dma_semaphore, #tpu.memory_space<semaphore_mem>>
    tpu.wait_dma2 semaphore(%26 : memref<!tpu.dma_semaphore, #tpu.memory_space<semaphore_mem>>) src(%23 : memref<8x32xf32, #tpu.memory_space<vmem>>) dst(%24 : memref<8x32xf32, #tpu.memory_space<vmem>>)
    %27 = arith.index_cast %18 : i32 to index
    %c0 = arith.constant 0 : index
    %28 = vector.load %arg12[%27, %c0] : memref<16x32xf32, #tpu.memory_space<vmem>>, vector<8x32xf32>
    %29 = arith.truncf %28 : vector<8x32xf32> to vector<8x32xbf16>
    %30 = arith.index_cast %18 : i32 to index
    %c0_14 = arith.constant 0 : index
    %31 = vector.load %arg13[%30, %c0_14] : memref<16x32xf32, #tpu.memory_space<vmem>>, vector<8x32xf32>
    %32 = arith.truncf %31 : vector<8x32xf32> to vector<8x32xbf16>
    %c0_15 = arith.constant 0 : index
    %c0_16 = arith.constant 0 : index
    %33 = vector.load %arg5[%c0_15, %c0_16] : memref<32x128xbf16, #tpu.memory_space<vmem>>, vector<32x128xbf16>
    %cst = arith.constant dense<0.000000e+00> : vector<8x128xf32>
    %34 = tpu.matmul %29, %33, %cst {dimension_numbers = #tpu.dot_dimension_numbers<[1], [0], [0], [1], [0, 0, 1, 1], [], []>} : vector<8x32xbf16>, vector<32x128xbf16>, vector<8x128xf32> -> vector<8x128xf32>
    %c0_17 = arith.constant 0 : index
    %c0_18 = arith.constant 0 : index
    %35 = vector.load %arg6[%c0_17, %c0_18] : memref<32x128xbf16, #tpu.memory_space<vmem>>, vector<32x128xbf16>
    %cst_19 = arith.constant dense<0.000000e+00> : vector<8x128xf32>
    %36 = tpu.matmul %32, %35, %cst_19 {dimension_numbers = #tpu.dot_dimension_numbers<[1], [0], [0], [1], [0, 0, 1, 1], [], []>} : vector<8x32xbf16>, vector<32x128xbf16>, vector<8x128xf32> -> vector<8x128xf32>
    %37 = arith.addf %34, %36 : vector<8x128xf32>
    %c0_20 = arith.constant 0 : index
    %c0_21 = arith.constant 0 : index
    %38 = vector.load %arg7[%c0_20, %c0_21] : memref<1x128xf32, #tpu.memory_space<vmem>>, vector<1x128xf32>
    %39 = vector.broadcast %38 : vector<1x128xf32> to vector<8x128xf32>
    %40 = arith.addf %37, %39 : vector<8x128xf32>
    %cst_22 = arith.constant 0.000000e+00 : f32
    %41 = vector.broadcast %cst_22 : f32 to vector<8x128xf32>
    %42 = arith.maximumf %40, %41 : vector<8x128xf32>
    %43 = arith.truncf %42 : vector<8x128xf32> to vector<8x128xbf16>
    %c0_23 = arith.constant 0 : index
    %c0_24 = arith.constant 0 : index
    %44 = vector.load %arg8[%c0_23, %c0_24] : memref<128x128xbf16, #tpu.memory_space<vmem>>, vector<128x128xbf16>
    %cst_25 = arith.constant dense<0.000000e+00> : vector<8x128xf32>
    %45 = tpu.matmul %43, %44, %cst_25 {dimension_numbers = #tpu.dot_dimension_numbers<[1], [0], [0], [1], [0, 0, 1, 1], [], []>} : vector<8x128xbf16>, vector<128x128xbf16>, vector<8x128xf32> -> vector<8x128xf32>
    %c0_26 = arith.constant 0 : index
    %c0_27 = arith.constant 0 : index
    %46 = vector.load %arg9[%c0_26, %c0_27] : memref<1x128xf32, #tpu.memory_space<vmem>>, vector<1x128xf32>
    %47 = vector.broadcast %46 : vector<1x128xf32> to vector<8x128xf32>
    %48 = arith.addf %45, %47 : vector<8x128xf32>
    %cst_28 = arith.constant 0.000000e+00 : f32
    %49 = vector.broadcast %cst_28 : f32 to vector<8x128xf32>
    %50 = arith.maximumf %48, %49 : vector<8x128xf32>
    %c0_29 = arith.constant 0 : index
    %c0_30 = arith.constant 0 : index
    %51 = vector.load %arg10[%c0_29, %c0_30] : memref<1x128xbf16, #tpu.memory_space<vmem>>, vector<1x128xbf16>
    %52 = arith.truncf %50 : vector<8x128xf32> to vector<8x128xbf16>
    %cst_31 = arith.constant dense<0.000000e+00> : vector<1x8xf32>
    %53 = tpu.matmul %51, %52, %cst_31 {dimension_numbers = #tpu.dot_dimension_numbers<[1], [1], [0], [0], [0, 0, 1, 0], [], []>} : vector<1x128xbf16>, vector<8x128xbf16>, vector<1x8xf32> -> vector<1x8xf32>
    %c0_32 = arith.constant 0 : index
    %c0_33 = arith.constant 0 : index
    %54 = vector.load %arg11[%c0_32, %c0_33] : memref<1x8xf32, #tpu.memory_space<vmem>>, vector<1x8xf32>
    tpu.vector_store %arg11[%c0_32, %c0_33], %53 {strides = array<i32>} : memref<1x8xf32, #tpu.memory_space<vmem>>, vector<1x8xf32>,
    return
  }
  func.func @transform_2(%arg0: i32, %arg1: memref<8xi32, #tpu.memory_space<smem>>, %arg2: memref<8xi32, #tpu.memory_space<smem>>) -> (i32, i32) {
    %c0_i32 = arith.constant 0 : i32
    %c0_i32_0 = arith.constant 0 : i32
    %c0_i32_1 = arith.constant 0 : i32
    return %c0_i32, %c0_i32_0 : i32, i32
  }
  func.func @transform_3(%arg0: i32, %arg1: memref<8xi32, #tpu.memory_space<smem>>, %arg2: memref<8xi32, #tpu.memory_space<smem>>) -> (i32, i32) {
    %c0_i32 = arith.constant 0 : i32
    %c0_i32_0 = arith.constant 0 : i32
    %c0_i32_1 = arith.constant 0 : i32
    return %c0_i32, %c0_i32_0 : i32, i32
  }
  func.func @transform_4(%arg0: i32, %arg1: memref<8xi32, #tpu.memory_space<smem>>, %arg2: memref<8xi32, #tpu.memory_space<smem>>) -> (i32, i32) {
    %c0_i32 = arith.constant 0 : i32
    %c0_i32_0 = arith.constant 0 : i32
    %c0_i32_1 = arith.constant 0 : i32
    return %c0_i32, %c0_i32_0 : i32, i32
  }
  func.func @transform_5(%arg0: i32, %arg1: memref<8xi32, #tpu.memory_space<smem>>, %arg2: memref<8xi32, #tpu.memory_space<smem>>) -> (i32, i32) {
    %c0_i32 = arith.constant 0 : i32
    %c0_i32_0 = arith.constant 0 : i32
    %c0_i32_1 = arith.constant 0 : i32
    return %c0_i32, %c0_i32_0 : i32, i32
  }
  func.func @transform_6(%arg0: i32, %arg1: memref<8xi32, #tpu.memory_space<smem>>, %arg2: memref<8xi32, #tpu.memory_space<smem>>) -> (i32, i32) {
    %c0_i32 = arith.constant 0 : i32
    %c0_i32_0 = arith.constant 0 : i32
    %c0_i32_1 = arith.constant 0 : i32
    return %c0_i32, %c0_i32_0 : i32, i32
  }
  func.func @transform_7(%arg0: i32, %arg1: memref<8xi32, #tpu.memory_space<smem>>, %arg2: memref<8xi32, #tpu.memory_space<smem>>) -> (i32, i32) {
    %c0_i32 = arith.constant 0 : i32
    %c0_i32_0 = arith.constant 0 : i32
    %c0_i32_1 = arith.constant 0 : i32
    return %c0_i32, %c0_i32_0 : i32, i32
  }
  func.func @transform_8(%arg0: i32, %arg1: memref<8xi32, #tpu.memory_space<smem>>, %arg2: memref<8xi32, #tpu.memory_space<smem>>) -> (i32, i32) {
    %c0_i32 = arith.constant 0 : i32
    %c0_i32_0 = arith.constant 0 : i32
    return %c0_i32, %arg0 : i32, i32
  }
}

</mosaic_0001>

<llo_original>
// kernel: tpu_custom_call.1
$region0: #{tpu_custom_call.1}
  #allocation0 [shape = 'u32[]', space=smem, size = 0x4, offset = 0x4, fixed_abs, tag = 'smem constant byte address 0x4 - core index']
  #allocation1 [shape = 'u32[144,128]{1,0:T(1,128)}', space=vmem, size = 0x12000, scoped, tag = 'internal scratch']
  #allocation2 [shape = 'f32[16,32]{1,0:T(8,128)}', space=vmem, size = 0x2000, scoped, tag = 'scratch operand']
  #allocation3 [shape = 'f32[16,32]{1,0:T(8,128)}', space=vmem, size = 0x2000, scoped, tag = 'scratch operand']
  #allocation4 [shape = 's32[4]{0}', space=sflag, size = 0x10, scoped, tag = 'scratch operand']
  #allocation5 [shape = 's32[1]{0}', space=sflag, size = 0x4, scoped, tag = 'scoped memory for tpu_custom_call.1']
  #allocation6 [shape = 'u8[512]{0}', space=smem, size = 0x200, scoped, tag = 'prefetched SMEM operand 0']
  #allocation7 [shape = 'u8[512]{0}', space=smem, size = 0x200, scoped, tag = 'prefetched SMEM operand 1']
  #allocation10 [shape = 's32[]', space=sflag, size = 0x4, offset = 0, fixed_abs, tag = 'sflag constant byte address 0x0 - dummy sync flag']
  #allocation11 [shape = 's32[]', space=sflag, size = 0x4, offset = 0, fixed_abs, tag = 'sflag constant byte address 0x0 - dummy sync flag']
  #allocation12 [shape = 's32[]', space=sflag, size = 0x4, offset = 0, fixed_abs, tag = 'sflag constant byte address 0x0 - dummy sync flag']
  #allocation13 [shape = 's32[]', space=sflag, size = 0x4, offset = 0, fixed_abs, tag = 'sflag constant byte address 0x0 - dummy sync flag']
  #allocation14 [shape = 's32[]', space=sflag, size = 0x4, offset = 0, fixed_abs, tag = 'sflag constant byte address 0x0 - dummy sync flag']
  #allocation15 [shape = 's32[]', space=sflag, size = 0x4, offset = 0, fixed_abs, tag = 'sflag constant byte address 0x0 - dummy sync flag']
  #allocation16 [shape = 's32[]', space=sflag, size = 0x4, offset = 0, fixed_abs, tag = 'sflag constant byte address 0x0 - dummy sync flag']
  #allocation17 [shape = 's32[]', space=sflag, size = 0x4, offset = 0, fixed_abs, tag = 'sflag constant byte address 0x0 - dummy sync flag']
  #allocation18 [shape = 's32[]', space=sflag, size = 0x4, offset = 0, fixed_abs, tag = 'sflag constant byte address 0x0 - dummy sync flag']
  #allocation19 [shape = 's32[]', space=sflag, size = 0x4, offset = 0, fixed_abs, tag = 'sflag constant byte address 0x0 - dummy sync flag']
  #allocation20 [shape = 's32[]', space=sflag, size = 0x4, offset = 0, fixed_abs, tag = 'sflag constant byte address 0x0 - dummy sync flag']
  #allocation21 [shape = 's32[]', space=sflag, size = 0x4, offset = 0, fixed_abs, tag = 'sflag constant byte address 0x0 - dummy sync flag']
  #allocation22 [shape = 's32[]', space=sflag, size = 0x4, offset = 0, fixed_abs, tag = 'sflag constant byte address 0x0 - dummy sync flag']
  #allocation23 [shape = 's32[]', space=sflag, size = 0x4, offset = 0, fixed_abs, tag = 'sflag constant byte address 0x0 - dummy sync flag']
  #allocation24 [shape = 's32[]', space=sflag, size = 0x4, offset = 0, fixed_abs, tag = 'sflag constant byte address 0x0 - dummy sync flag']
  #allocation25 [shape = 's32[]', space=sflag, size = 0x4, offset = 0, fixed_abs, tag = 'sflag constant byte address 0x0 - dummy sync flag']
  #allocation26 [shape = 's32[]', space=sflag, size = 0x4, offset = 0, fixed_abs, tag = 'sflag constant byte address 0x0 - dummy sync flag']
  #allocation27 [shape = 's32[]', space=sflag, size = 0x4, offset = 0, fixed_abs, tag = 'sflag constant byte address 0x0 - dummy sync flag']
  #allocation28 [shape = 's32[]', space=sflag, size = 0x4, offset = 0, fixed_abs, tag = 'sflag constant byte address 0x0 - dummy sync flag']
  #allocation29 [shape = 's32[]', space=sflag, size = 0x4, offset = 0, fixed_abs, tag = 'sflag constant byte address 0x0 - dummy sync flag']
  #allocation30 [shape = 's32[]', space=sflag, size = 0x4, offset = 0, fixed_abs, tag = 'sflag constant byte address 0x0 - dummy sync flag']
  #allocation31 [shape = 's32[]', space=sflag, size = 0x4, offset = 0, fixed_abs, tag = 'sflag constant byte address 0x0 - dummy sync flag']
  #allocation32 [shape = 's32[]', space=sflag, size = 0x4, offset = 0, fixed_abs, tag = 'sflag constant byte address 0x0 - dummy sync flag']
  #allocation33 [shape = 's32[]', space=sflag, size = 0x4, offset = 0, fixed_abs, tag = 'sflag constant byte address 0x0 - dummy sync flag']
  #allocation34 [shape = 's32[]', space=sflag, size = 0x4, offset = 0, fixed_abs, tag = 'sflag constant byte address 0x0 - dummy sync flag']
  #allocation35 [shape = 's32[]', space=sflag, size = 0x4, offset = 0, fixed_abs, tag = 'sflag constant byte address 0x0 - dummy sync flag']
  #allocation36 [shape = 's32[]', space=sflag, size = 0x4, offset = 0, fixed_abs, tag = 'sflag constant byte address 0x0 - dummy sync flag']
  #allocation37 [shape = 's32[]', space=sflag, size = 0x4, offset = 0, fixed_abs, tag = 'sflag constant byte address 0x0 - dummy sync flag']
  #allocation38 [shape = 's32[]', space=sflag, size = 0x4, offset = 0, fixed_abs, tag = 'sflag constant byte address 0x0 - dummy sync flag']
  #allocation39 [shape = 's32[]', space=sflag, size = 0x4, offset = 0, fixed_abs, tag = 'sflag constant byte address 0x0 - dummy sync flag']
  #allocation40 [shape = 's32[]', space=sflag, size = 0x4, offset = 0, fixed_abs, tag = 'sflag constant byte address 0x0 - dummy sync flag']
  #allocation41 [shape = 's32[]', space=sflag, size = 0x4, offset = 0, fixed_abs, tag = 'sflag constant byte address 0x0 - dummy sync flag']
  %s0 = inlined_call_operand.vmem [shape: s32[8], index: 0, kind: input, shape index: {}]
  %s1 = inlined_call_operand.vmem [shape: s32[8], index: 1, kind: input, shape index: {}]
  %s2 = inlined_call_operand.vmem [shape: f32[64,32], index: 2, kind: input, shape index: {}]
  %s3 = inlined_call_operand.vmem [shape: f32[96,32], index: 3, kind: input, shape index: {}]
  %s4 = inlined_call_operand.vmem [shape: bf16[32,128], index: 4, kind: input, shape index: {}]
  %s5 = inlined_call_operand.vmem [shape: bf16[32,128], index: 5, kind: input, shape index: {}]
  %s6 = inlined_call_operand.vmem [shape: f32[1,128], index: 6, kind: input, shape index: {}]
  %s7 = inlined_call_operand.vmem [shape: bf16[128,128], index: 7, kind: input, shape index: {}]
  %s8 = inlined_call_operand.vmem [shape: f32[1,128], index: 8, kind: input, shape index: {}]
  %s9 = inlined_call_operand.vmem [shape: bf16[1,128], index: 9, kind: input, shape index: {}]
  %s10 = inlined_call_operand.hbm [shape: f32[1,8], index: 10, kind: output, shape index: {}]
  %s11 = sld [smem:[#allocation0]]
  $region1002: #{tpu_custom_call.1} parent=0
    _
  %s13 = ssub.s32 1, %s11
  %s14 = scalar_select 0, %s13, %s11
  %s15 = sshll.u32 %s0, 4
  %s16 = int_to_ptr.vmem [resolvable:$true] %s15
  %18 = dma.vmem_to_smem %s16, 16, [#allocation6], [#allocation5]
  %s19 = sshll.u32 %s1, 4
  %s20 = int_to_ptr.vmem [resolvable:$true] %s19
  %22 = dma.vmem_to_smem %s20, 16, [#allocation7], [#allocation5]
  %23 = dma.done [#allocation5], 32
  %24 = sfence
  $region1: #{tpu_custom_call.1} parent=0
    #allocation8 [shape = 'u8[512]{0}', space=vmem, size = 0x400, scoped, tag = 'output window, operand 0, single buffered']
    #allocation9 [shape = 's32[1]{0}', space=sflag, size = 0x4, scoped, tag = 'scoped memory for tpu_custom_call.1']
    %25 = vsyncpa [#allocation9], 0
    // Predicated region
    $region2: #{tpu_custom_call.1} parent=1 // pred_check
      _
    $region3: #{tpu_custom_call.1} parent=1 // pred_check_branch
      %27 = sbr.rel (0) target = $region5
    $region4: #{tpu_custom_call.1} parent=1 // pred_region
      _
    $region5: #{tpu_custom_call.1} parent=1 // pred_fallthru
      _
    // Predicated region
    $region6: #{tpu_custom_call.1} parent=1 // pred_check
      _
    $region7: #{tpu_custom_call.1} parent=1 // pred_check_branch
      %29 = sbr.rel (0) target = $region9
    $region8: #{tpu_custom_call.1} parent=1 // pred_region
      _
    $region9: #{tpu_custom_call.1} parent=1 // pred_fallthru
      _
    // Predicated region
    $region10: #{tpu_custom_call.1} parent=1 // pred_check
      _
    $region11: #{tpu_custom_call.1} parent=1 // pred_check_branch
      %31 = sbr.rel (0) target = $region13
    $region12: #{tpu_custom_call.1} parent=1 // pred_region
      _
    $region13: #{tpu_custom_call.1} parent=1 // pred_fallthru
      _
    // Predicated region
    $region14: #{tpu_custom_call.1} parent=1 // pred_check
      _
    $region15: #{tpu_custom_call.1} parent=1 // pred_check_branch
      %33 = sbr.rel (0) target = $region17
    $region16: #{tpu_custom_call.1} parent=1 // pred_region
      _
    $region17: #{tpu_custom_call.1} parent=1 // pred_fallthru
      _
    // Predicated region
    $region18: #{tpu_custom_call.1} parent=1 // pred_check
      _
    $region19: #{tpu_custom_call.1} parent=1 // pred_check_branch
      %35 = sbr.rel (0) target = $region21
    $region20: #{tpu_custom_call.1} parent=1 // pred_region
      _
    $region21: #{tpu_custom_call.1} parent=1 // pred_fallthru
      _
    // Predicated region
    $region22: #{tpu_custom_call.1} parent=1 // pred_check
      _
    $region23: #{tpu_custom_call.1} parent=1 // pred_check_branch
      %37 = sbr.rel (0) target = $region25
    $region24: #{tpu_custom_call.1} parent=1 // pred_region
      _
    $region25: #{tpu_custom_call.1} parent=1 // pred_fallthru
      _
    %s39 = ssub.s32 0, 0
    %s40 = ssub.s32 0, 0
    %p41 = scmp.ne.s32.totalorder 0, 0
    %p42 = scmp.lt.s32.totalorder 0, 0
    %p43 = pnand %p42, %p41
    %p44 = pneg %p43
    %s45 = sadd.s32 0, 2
    %s46 = scalar_select %p44, %s45, 0
    %p47 = scmp.eq.s32.totalorder 0, 0
    // Predicated region
    $region26: #{tpu_custom_call.1} parent=1 // pred_check
      %p48 = pneg %p47
    $region27: #{tpu_custom_call.1} parent=1 // pred_check_branch
      %50 = sbr.rel (%p48) target = $region29
    $region28: #{tpu_custom_call.1} parent=1 // pred_region
      %s51 = smul.u32 0, 8
      %s52 = smul.u32 %s46, 8
      %s53 = sld [smem:[#allocation6 + %s51]]
      %s54 = sld [smem:[#allocation7 + %s51]]
      %s55 = scalar_lea.vmem %s2, %s53
      %s56 = scalar_lea.vmem [#allocation2], %s52
      %s57 = smul.u32 %s46, 2
      %s58 = scalar_lea.sflag [#allocation4], %s57
      %p60 = scmp.lt.u32.totalorder 1, 8
      %p61 = pneg %p60
      // Predicated region
      $region30: #{tpu_custom_call.1} parent=28 // pred_check
        _
      $region31: #{tpu_custom_call.1} parent=28 // pred_check_branch
        %63 = sbr.rel (%p60) target = $region33
      $region32: #{tpu_custom_call.1} parent=28 // pred_region
        %s79 = sand.u32 1, 7
        %p80 = scmp.eq.s32.totalorder %s79, 0
        %p81 = pneg %p80
        // Predicated region
        $region45: #{tpu_custom_call.1} parent=32 // pred_check
          _
        $region46: #{tpu_custom_call.1} parent=32 // pred_check_branch
          %83 = sbr.rel (%p80) target = $region48
        $region47: #{tpu_custom_call.1} parent=32 // pred_region
          %s84 = sand.u32 1, 7
          %s85 = ssub.s32 1, %s84
          %s86 = scalar_lea.vmem %s55, %s85
          %s87 = ssub.s32 1, %s84
          %s88 = scalar_lea.vmem %s56, %s87 [#allocation2]
          %s89 = sshll.u32 1, %s84
          %s90 = ssub.s32 %s89, 1
          loop: start=0, step=1, limit=1
          $region49: #{tpu_custom_call.1} parent=47 // loop_pre_header
            _
          $region50: #{tpu_custom_call.1} parent=47 // loop_header
            %s92 = sphi 0, %s96
            %p93 = scmp.ge.s32.totalorder %s92, 1
            %s97 = sphi %s86, %s86
            %s98 = sphi %s88, %s88
          $region51: #{tpu_custom_call.1} parent=47 // loop_header_branch
            %95 = sbr.rel (%p93) target = $region55
          $region52: #{tpu_custom_call.1} parent=47 // loop_body
            %v99 = vld [vmem:[%s97] sm:%s90]
            %100 = vst [vmem:[%s98] sm:%s90] %v99
          $region53: #{tpu_custom_call.1} parent=47 // loop_footer
            %s96 = sadd.s32 1, %s92
          $region54: #{tpu_custom_call.1} parent=47 // loop_footer_branch
            %91 = sbr.rel target = $region50
          $region55: #{tpu_custom_call.1} parent=47 // loop_exit
            _
        $region48: #{tpu_custom_call.1} parent=32 // pred_fallthru
          _
      $region33: #{tpu_custom_call.1} parent=28 // pred_fallthru
        _
      // Predicated region
      $region34: #{tpu_custom_call.1} parent=28 // pred_check
        %p64 = pneg %p60
      $region35: #{tpu_custom_call.1} parent=28 // pred_check_branch
        %66 = sbr.rel (%p64) target = $region37
      $region36: #{tpu_custom_call.1} parent=28 // pred_region
        %s67 = sshll.u32 1, 1
        %s68 = ssub.s32 %s67, 1
        loop: start=0, step=1, limit=1
        $region38: #{tpu_custom_call.1} parent=36 // loop_pre_header
          _
        $region39: #{tpu_custom_call.1} parent=36 // loop_header
          %s70 = sphi 0, %s74
          %p71 = scmp.ge.s32.totalorder %s70, 1
          %s75 = sphi %s55, %s55
          %s76 = sphi %s56, %s56
        $region40: #{tpu_custom_call.1} parent=36 // loop_header_branch
          %73 = sbr.rel (%p71) target = $region44
        $region41: #{tpu_custom_call.1} parent=36 // loop_body
          %v77 = vld [vmem:[%s75] sm:%s68]
          %78 = vst [vmem:[%s76] sm:%s68] %v77
        $region42: #{tpu_custom_call.1} parent=36 // loop_footer
          %s74 = sadd.s32 1, %s70
        $region43: #{tpu_custom_call.1} parent=36 // loop_footer_branch
          %69 = sbr.rel target = $region39
        $region44: #{tpu_custom_call.1} parent=36 // loop_exit
          _
      $region37: #{tpu_custom_call.1} parent=28 // pred_fallthru
        _
      // Predicated region
      $region56: #{tpu_custom_call.1} parent=28 // pred_check
        _
      $region57: #{tpu_custom_call.1} parent=28 // pred_check_branch
        %103 = sbr.rel (0) target = $region59
      $region58: #{tpu_custom_call.1} parent=28 // pred_region
        %104 = vsyncadd %s58, 16
      $region59: #{tpu_custom_call.1} parent=28 // pred_fallthru
        _
      %s105 = scalar_lea.vmem %s3, %s54
      %s106 = scalar_lea.vmem [#allocation3], %s52
      %s107 = sadd.s32 1, %s57
      %s108 = scalar_lea.sflag [#allocation4], %s107
      %p110 = scmp.lt.u32.totalorder 1, 8
      %p111 = pneg %p110
      // Predicated region
      $region60: #{tpu_custom_call.1} parent=28 // pred_check
        _
      $region61: #{tpu_custom_call.1} parent=28 // pred_check_branch
        %113 = sbr.rel (%p110) target = $region63
      $region62: #{tpu_custom_call.1} parent=28 // pred_region
        %s129 = sand.u32 1, 7
        %p130 = scmp.eq.s32.totalorder %s129, 0
        %p131 = pneg %p130
        // Predicated region
        $region75: #{tpu_custom_call.1} parent=62 // pred_check
          _
        $region76: #{tpu_custom_call.1} parent=62 // pred_check_branch
          %133 = sbr.rel (%p130) target = $region78
        $region77: #{tpu_custom_call.1} parent=62 // pred_region
          %s134 = sand.u32 1, 7
          %s135 = ssub.s32 1, %s134
          %s136 = scalar_lea.vmem %s105, %s135
          %s137 = ssub.s32 1, %s134
          %s138 = scalar_lea.vmem %s106, %s137 [#allocation3]
          %s139 = sshll.u32 1, %s134
          %s140 = ssub.s32 %s139, 1
          loop: start=0, step=1, limit=1
          $region79: #{tpu_custom_call.1} parent=77 // loop_pre_header
            _
          $region80: #{tpu_custom_call.1} parent=77 // loop_header
            %s142 = sphi 0, %s146
            %p143 = scmp.ge.s32.totalorder %s142, 1
            %s147 = sphi %s136, %s136
            %s148 = sphi %s138, %s138
          $region81: #{tpu_custom_call.1} parent=77 // loop_header_branch
            %145 = sbr.rel (%p143) target = $region85
          $region82: #{tpu_custom_call.1} parent=77 // loop_body
            %v149 = vld [vmem:[%s147] sm:%s140]
            %150 = vst [vmem:[%s148] sm:%s140] %v149
          $region83: #{tpu_custom_call.1} parent=77 // loop_footer
            %s146 = sadd.s32 1, %s142
          $region84: #{tpu_custom_call.1} parent=77 // loop_footer_branch
            %141 = sbr.rel target = $region80
          $region85: #{tpu_custom_call.1} parent=77 // loop_exit
            _
        $region78: #{tpu_custom_call.1} parent=62 // pred_fallthru
          _
      $region63: #{tpu_custom_call.1} parent=28 // pred_fallthru
        _
      // Predicated region
      $region64: #{tpu_custom_call.1} parent=28 // pred_check
        %p114 = pneg %p110
      $region65: #{tpu_custom_call.1} parent=28 // pred_check_branch
        %116 = sbr.rel (%p114) target = $region67
      $region66: #{tpu_custom_call.1} parent=28 // pred_region
        %s117 = sshll.u32 1, 1
        %s118 = ssub.s32 %s117, 1
        loop: start=0, step=1, limit=1
        $region68: #{tpu_custom_call.1} parent=66 // loop_pre_header
          _
        $region69: #{tpu_custom_call.1} parent=66 // loop_header
          %s120 = sphi 0, %s124
          %p121 = scmp.ge.s32.totalorder %s120, 1
          %s125 = sphi %s105, %s105
          %s126 = sphi %s106, %s106
        $region70: #{tpu_custom_call.1} parent=66 // loop_header_branch
          %123 = sbr.rel (%p121) target = $region74
        $region71: #{tpu_custom_call.1} parent=66 // loop_body
          %v127 = vld [vmem:[%s125] sm:%s118]
          %128 = vst [vmem:[%s126] sm:%s118] %v127
        $region72: #{tpu_custom_call.1} parent=66 // loop_footer
          %s124 = sadd.s32 1, %s120
        $region73: #{tpu_custom_call.1} parent=66 // loop_footer_branch
          %119 = sbr.rel target = $region69
        $region74: #{tpu_custom_call.1} parent=66 // loop_exit
          _
      $region67: #{tpu_custom_call.1} parent=28 // pred_fallthru
        _
      // Predicated region
      $region86: #{tpu_custom_call.1} parent=28 // pred_check
        _
      $region87: #{tpu_custom_call.1} parent=28 // pred_check_branch
        %153 = sbr.rel (0) target = $region89
      $region88: #{tpu_custom_call.1} parent=28 // pred_region
        %154 = vsyncadd %s108, 16
      $region89: #{tpu_custom_call.1} parent=28 // pred_fallthru
        _
      %s155 = sadd.s32 %s51, 1
      %s156 = sld [smem:[#allocation6 + %s155]]
      %s157 = sld [smem:[#allocation7 + %s155]]
      %s158 = sadd.s32 %s52, 1
      %s159 = scalar_lea.vmem %s2, %s156
      %s160 = scalar_lea.vmem [#allocation2], %s158
      %p162 = scmp.lt.u32.totalorder 1, 8
      %p163 = pneg %p162
      // Predicated region
      $region90: #{tpu_custom_call.1} parent=28 // pred_check
        _
      $region91: #{tpu_custom_call.1} parent=28 // pred_check_branch
        %165 = sbr.rel (%p162) target = $region93
      $region92: #{tpu_custom_call.1} parent=28 // pred_region
        %s181 = sand.u32 1, 7
        %p182 = scmp.eq.s32.totalorder %s181, 0
        %p183 = pneg %p182
        // Predicated region
        $region105: #{tpu_custom_call.1} parent=92 // pred_check
          _
        $region106: #{tpu_custom_call.1} parent=92 // pred_check_branch
          %185 = sbr.rel (%p182) target = $region108
        $region107: #{tpu_custom_call.1} parent=92 // pred_region
          %s186 = sand.u32 1, 7
          %s187 = ssub.s32 1, %s186
          %s188 = scalar_lea.vmem %s159, %s187
          %s189 = ssub.s32 1, %s186
          %s190 = scalar_lea.vmem %s160, %s189 [#allocation2]
          %s191 = sshll.u32 1, %s186
          %s192 = ssub.s32 %s191, 1
          loop: start=0, step=1, limit=1
          $region109: #{tpu_custom_call.1} parent=107 // loop_pre_header
            _
          $region110: #{tpu_custom_call.1} parent=107 // loop_header
            %s194 = sphi 0, %s198
            %p195 = scmp.ge.s32.totalorder %s194, 1
            %s199 = sphi %s188, %s188
            %s200 = sphi %s190, %s190
          $region111: #{tpu_custom_call.1} parent=107 // loop_header_branch
            %197 = sbr.rel (%p195) target = $region115
          $region112: #{tpu_custom_call.1} parent=107 // loop_body
            %v201 = vld [vmem:[%s199] sm:%s192]
            %202 = vst [vmem:[%s200] sm:%s192] %v201
          $region113: #{tpu_custom_call.1} parent=107 // loop_footer
            %s198 = sadd.s32 1, %s194
          $region114: #{tpu_custom_call.1} parent=107 // loop_footer_branch
            %193 = sbr.rel target = $region110
          $region115: #{tpu_custom_call.1} parent=107 // loop_exit
            _
        $region108: #{tpu_custom_call.1} parent=92 // pred_fallthru
          _
      $region93: #{tpu_custom_call.1} parent=28 // pred_fallthru
        _
      // Predicated region
      $region94: #{tpu_custom_call.1} parent=28 // pred_check
        %p166 = pneg %p162
      $region95: #{tpu_custom_call.1} parent=28 // pred_check_branch
        %168 = sbr.rel (%p166) target = $region97
      $region96: #{tpu_custom_call.1} parent=28 // pred_region
        %s169 = sshll.u32 1, 1
        %s170 = ssub.s32 %s169, 1
        loop: start=0, step=1, limit=1
        $region98: #{tpu_custom_call.1} parent=96 // loop_pre_header
          _
        $region99: #{tpu_custom_call.1} parent=96 // loop_header
          %s172 = sphi 0, %s176
          %p173 = scmp.ge.s32.totalorder %s172, 1
          %s177 = sphi %s159, %s159
          %s178 = sphi %s160, %s160
        $region100: #{tpu_custom_call.1} parent=96 // loop_header_branch
          %175 = sbr.rel (%p173) target = $region104
        $region101: #{tpu_custom_call.1} parent=96 // loop_body
          %v179 = vld [vmem:[%s177] sm:%s170]
          %180 = vst [vmem:[%s178] sm:%s170] %v179
        $region102: #{tpu_custom_call.1} parent=96 // loop_footer
          %s176 = sadd.s32 1, %s172
        $region103: #{tpu_custom_call.1} parent=96 // loop_footer_branch
          %171 = sbr.rel target = $region99
        $region104: #{tpu_custom_call.1} parent=96 // loop_exit
          _
      $region97: #{tpu_custom_call.1} parent=28 // pred_fallthru
        _
      // Predicated region
      $region116: #{tpu_custom_call.1} parent=28 // pred_check
        _
      $region117: #{tpu_custom_call.1} parent=28 // pred_check_branch
        %205 = sbr.rel (0) target = $region119
      $region118: #{tpu_custom_call.1} parent=28 // pred_region
        %206 = vsyncadd %s58, 16
      $region119: #{tpu_custom_call.1} parent=28 // pred_fallthru
        _
      %s207 = scalar_lea.vmem %s3, %s157
      %s208 = scalar_lea.vmem [#allocation3], %s158
      %p210 = scmp.lt.u32.totalorder 1, 8
      %p211 = pneg %p210
      // Predicated region
      $region120: #{tpu_custom_call.1} parent=28 // pred_check
        _
      $region121: #{tpu_custom_call.1} parent=28 // pred_check_branch
        %213 = sbr.rel (%p210) target = $region123
      $region122: #{tpu_custom_call.1} parent=28 // pred_region
        %s229 = sand.u32 1, 7
        %p230 = scmp.eq.s32.totalorder %s229, 0
        %p231 = pneg %p230
        // Predicated region
        $region135: #{tpu_custom_call.1} parent=122 // pred_check
          _
        $region136: #{tpu_custom_call.1} parent=122 // pred_check_branch
          %233 = sbr.rel (%p230) target = $region138
        $region137: #{tpu_custom_call.1} parent=122 // pred_region
          %s234 = sand.u32 1, 7
          %s235 = ssub.s32 1, %s234
          %s236 = scalar_lea.vmem %s207, %s235
          %s237 = ssub.s32 1, %s234
          %s238 = scalar_lea.vmem %s208, %s237 [#allocation3]
          %s239 = sshll.u32 1, %s234
          %s240 = ssub.s32 %s239, 1
          loop: start=0, step=1, limit=1
          $region139: #{tpu_custom_call.1} parent=137 // loop_pre_header
            _
          $region140: #{tpu_custom_call.1} parent=137 // loop_header
            %s242 = sphi 0, %s246
            %p243 = scmp.ge.s32.totalorder %s242, 1
            %s247 = sphi %s236, %s236
            %s248 = sphi %s238, %s238
          $region141: #{tpu_custom_call.1} parent=137 // loop_header_branch
            %245 = sbr.rel (%p243) target = $region145
          $region142: #{tpu_custom_call.1} parent=137 // loop_body
            %v249 = vld [vmem:[%s247] sm:%s240]
            %250 = vst [vmem:[%s248] sm:%s240] %v249
          $region143: #{tpu_custom_call.1} parent=137 // loop_footer
            %s246 = sadd.s32 1, %s242
          $region144: #{tpu_custom_call.1} parent=137 // loop_footer_branch
            %241 = sbr.rel target = $region140
          $region145: #{tpu_custom_call.1} parent=137 // loop_exit
            _
        $region138: #{tpu_custom_call.1} parent=122 // pred_fallthru
          _
      $region123: #{tpu_custom_call.1} parent=28 // pred_fallthru
        _
      // Predicated region
      $region124: #{tpu_custom_call.1} parent=28 // pred_check
        %p214 = pneg %p210
      $region125: #{tpu_custom_call.1} parent=28 // pred_check_branch
        %216 = sbr.rel (%p214) target = $region127
      $region126: #{tpu_custom_call.1} parent=28 // pred_region
        %s217 = sshll.u32 1, 1
        %s218 = ssub.s32 %s217, 1
        loop: start=0, step=1, limit=1
        $region128: #{tpu_custom_call.1} parent=126 // loop_pre_header
          _
        $region129: #{tpu_custom_call.1} parent=126 // loop_header
          %s220 = sphi 0, %s224
          %p221 = scmp.ge.s32.totalorder %s220, 1
          %s225 = sphi %s207, %s207
          %s226 = sphi %s208, %s208
        $region130: #{tpu_custom_call.1} parent=126 // loop_header_branch
          %223 = sbr.rel (%p221) target = $region134
        $region131: #{tpu_custom_call.1} parent=126 // loop_body
          %v227 = vld [vmem:[%s225] sm:%s218]
          %228 = vst [vmem:[%s226] sm:%s218] %v227
        $region132: #{tpu_custom_call.1} parent=126 // loop_footer
          %s224 = sadd.s32 1, %s220
        $region133: #{tpu_custom_call.1} parent=126 // loop_footer_branch
          %219 = sbr.rel target = $region129
        $region134: #{tpu_custom_call.1} parent=126 // loop_exit
          _
      $region127: #{tpu_custom_call.1} parent=28 // pred_fallthru
        _
      // Predicated region
      $region146: #{tpu_custom_call.1} parent=28 // pred_check
        _
      $region147: #{tpu_custom_call.1} parent=28 // pred_check_branch
        %253 = sbr.rel (0) target = $region149
      $region148: #{tpu_custom_call.1} parent=28 // pred_region
        %254 = vsyncadd %s108, 16
      $region149: #{tpu_custom_call.1} parent=28 // pred_fallthru
        _
      %s255 = sadd.s32 %s51, 2
      %s256 = sld [smem:[#allocation6 + %s255]]
      %s257 = sld [smem:[#allocation7 + %s255]]
      %s258 = sadd.s32 %s52, 2
      %s259 = scalar_lea.vmem %s2, %s256
      %s260 = scalar_lea.vmem [#allocation2], %s258
      %p262 = scmp.lt.u32.totalorder 1, 8
      %p263 = pneg %p262
      // Predicated region
      $region150: #{tpu_custom_call.1} parent=28 // pred_check
        _
      $region151: #{tpu_custom_call.1} parent=28 // pred_check_branch
        %265 = sbr.rel (%p262) target = $region153
      $region152: #{tpu_custom_call.1} parent=28 // pred_region
        %s281 = sand.u32 1, 7
        %p282 = scmp.eq.s32.totalorder %s281, 0
        %p283 = pneg %p282
        // Predicated region
        $region165: #{tpu_custom_call.1} parent=152 // pred_check
          _
        $region166: #{tpu_custom_call.1} parent=152 // pred_check_branch
          %285 = sbr.rel (%p282) target = $region168
        $region167: #{tpu_custom_call.1} parent=152 // pred_region
          %s286 = sand.u32 1, 7
          %s287 = ssub.s32 1, %s286
          %s288 = scalar_lea.vmem %s259, %s287
          %s289 = ssub.s32 1, %s286
          %s290 = scalar_lea.vmem %s260, %s289 [#allocation2]
          %s291 = sshll.u32 1, %s286
          %s292 = ssub.s32 %s291, 1
          loop: start=0, step=1, limit=1
          $region169: #{tpu_custom_call.1} parent=167 // loop_pre_header
            _
          $region170: #{tpu_custom_call.1} parent=167 // loop_header
            %s294 = sphi 0, %s298
            %p295 = scmp.ge.s32.totalorder %s294, 1
            %s299 = sphi %s288, %s288
            %s300 = sphi %s290, %s290
          $region171: #{tpu_custom_call.1} parent=167 // loop_header_branch
            %297 = sbr.rel (%p295) target = $region175
          $region172: #{tpu_custom_call.1} parent=167 // loop_body
            %v301 = vld [vmem:[%s299] sm:%s292]
            %302 = vst [vmem:[%s300] sm:%s292] %v301
          $region173: #{tpu_custom_call.1} parent=167 // loop_footer
            %s298 = sadd.s32 1, %s294
          $region174: #{tpu_custom_call.1} parent=167 // loop_footer_branch
            %293 = sbr.rel target = $region170
          $region175: #{tpu_custom_call.1} parent=167 // loop_exit
            _
        $region168: #{tpu_custom_call.1} parent=152 // pred_fallthru
          _
      $region153: #{tpu_custom_call.1} parent=28 // pred_fallthru
        _
      // Predicated region
      $region154: #{tpu_custom_call.1} parent=28 // pred_check
        %p266 = pneg %p262
      $region155: #{tpu_custom_call.1} parent=28 // pred_check_branch
        %268 = sbr.rel (%p266) target = $region157
      $region156: #{tpu_custom_call.1} parent=28 // pred_region
        %s269 = sshll.u32 1, 1
        %s270 = ssub.s32 %s269, 1
        loop: start=0, step=1, limit=1
        $region158: #{tpu_custom_call.1} parent=156 // loop_pre_header
          _
        $region159: #{tpu_custom_call.1} parent=156 // loop_header
          %s272 = sphi 0, %s276
          %p273 = scmp.ge.s32.totalorder %s272, 1
          %s277 = sphi %s259, %s259
          %s278 = sphi %s260, %s260
        $region160: #{tpu_custom_call.1} parent=156 // loop_header_branch
          %275 = sbr.rel (%p273) target = $region164
        $region161: #{tpu_custom_call.1} parent=156 // loop_body
          %v279 = vld [vmem:[%s277] sm:%s270]
          %280 = vst [vmem:[%s278] sm:%s270] %v279
        $region162: #{tpu_custom_call.1} parent=156 // loop_footer
          %s276 = sadd.s32 1, %s272
        $region163: #{tpu_custom_call.1} parent=156 // loop_footer_branch
          %271 = sbr.rel target = $region159
        $region164: #{tpu_custom_call.1} parent=156 // loop_exit
          _
      $region157: #{tpu_custom_call.1} parent=28 // pred_fallthru
        _
      // Predicated region
      $region176: #{tpu_custom_call.1} parent=28 // pred_check
        _
      $region177: #{tpu_custom_call.1} parent=28 // pred_check_branch
        %305 = sbr.rel (0) target = $region179
      $region178: #{tpu_custom_call.1} parent=28 // pred_region
        %306 = vsyncadd %s58, 16
      $region179: #{tpu_custom_call.1} parent=28 // pred_fallthru
        _
      %s307 = scalar_lea.vmem %s3, %s257
      %s308 = scalar_lea.vmem [#allocation3], %s258
      %p310 = scmp.lt.u32.totalorder 1, 8
      %p311 = pneg %p310
      // Predicated region
      $region180: #{tpu_custom_call.1} parent=28 // pred_check
        _
      $region181: #{tpu_custom_call.1} parent=28 // pred_check_branch
        %313 = sbr.rel (%p310) target = $region183
      $region182: #{tpu_custom_call.1} parent=28 // pred_region
        %s329 = sand.u32 1, 7
        %p330 = scmp.eq.s32.totalorder %s329, 0
        %p331 = pneg %p330
        // Predicated region
        $region195: #{tpu_custom_call.1} parent=182 // pred_check
          _
        $region196: #{tpu_custom_call.1} parent=182 // pred_check_branch
          %333 = sbr.rel (%p330) target = $region198
        $region197: #{tpu_custom_call.1} parent=182 // pred_region
          %s334 = sand.u32 1, 7
          %s335 = ssub.s32 1, %s334
          %s336 = scalar_lea.vmem %s307, %s335
          %s337 = ssub.s32 1, %s334
          %s338 = scalar_lea.vmem %s308, %s337 [#allocation3]
          %s339 = sshll.u32 1, %s334
          %s340 = ssub.s32 %s339, 1
          loop: start=0, step=1, limit=1
          $region199: #{tpu_custom_call.1} parent=197 // loop_pre_header
            _
          $region200: #{tpu_custom_call.1} parent=197 // loop_header
            %s342 = sphi 0, %s346
            %p343 = scmp.ge.s32.totalorder %s342, 1
            %s347 = sphi %s336, %s336
            %s348 = sphi %s338, %s338
          $region201: #{tpu_custom_call.1} parent=197 // loop_header_branch
            %345 = sbr.rel (%p343) target = $region205
          $region202: #{tpu_custom_call.1} parent=197 // loop_body
            %v349 = vld [vmem:[%s347] sm:%s340]
            %350 = vst [vmem:[%s348] sm:%s340] %v349
          $region203: #{tpu_custom_call.1} parent=197 // loop_footer
            %s346 = sadd.s32 1, %s342
          $region204: #{tpu_custom_call.1} parent=197 // loop_footer_branch
            %341 = sbr.rel target = $region200
          $region205: #{tpu_custom_call.1} parent=197 // loop_exit
            _
        $region198: #{tpu_custom_call.1} parent=182 // pred_fallthru
          _
      $region183: #{tpu_custom_call.1} parent=28 // pred_fallthru
        _
      // Predicated region
      $region184: #{tpu_custom_call.1} parent=28 // pred_check
        %p314 = pneg %p310
      $region185: #{tpu_custom_call.1} parent=28 // pred_check_branch
        %316 = sbr.rel (%p314) target = $region187
      $region186: #{tpu_custom_call.1} parent=28 // pred_region
        %s317 = sshll.u32 1, 1
        %s318 = ssub.s32 %s317, 1
        loop: start=0, step=1, limit=1
        $region188: #{tpu_custom_call.1} parent=186 // loop_pre_header
          _
        $region189: #{tpu_custom_call.1} parent=186 // loop_header
          %s320 = sphi 0, %s324
          %p321 = scmp.ge.s32.totalorder %s320, 1
          %s325 = sphi %s307, %s307
          %s326 = sphi %s308, %s308
        $region190: #{tpu_custom_call.1} parent=186 // loop_header_branch
          %323 = sbr.rel (%p321) target = $region194
        $region191: #{tpu_custom_call.1} parent=186 // loop_body
          %v327 = vld [vmem:[%s325] sm:%s318]
          %328 = vst [vmem:[%s326] sm:%s318] %v327
        $region192: #{tpu_custom_call.1} parent=186 // loop_footer
          %s324 = sadd.s32 1, %s320
        $region193: #{tpu_custom_call.1} parent=186 // loop_footer_branch
          %319 = sbr.rel target = $region189
        $region194: #{tpu_custom_call.1} parent=186 // loop_exit
          _
      $region187: #{tpu_custom_call.1} parent=28 // pred_fallthru
        _
      // Predicated region
      $region206: #{tpu_custom_call.1} parent=28 // pred_check
        _
      $region207: #{tpu_custom_call.1} parent=28 // pred_check_branch
        %353 = sbr.rel (0) target = $region209
      $region208: #{tpu_custom_call.1} parent=28 // pred_region
        %354 = vsyncadd %s108, 16
      $region209: #{tpu_custom_call.1} parent=28 // pred_fallthru
        _
      %s355 = sadd.s32 %s51, 3
      %s356 = sld [smem:[#allocation6 + %s355]]
      %s357 = sld [smem:[#allocation7 + %s355]]
      %s358 = sadd.s32 %s52, 3
      %s359 = scalar_lea.vmem %s2, %s356
      %s360 = scalar_lea.vmem [#allocation2], %s358
      %p362 = scmp.lt.u32.totalorder 1, 8
      %p363 = pneg %p362
      // Predicated region
      $region210: #{tpu_custom_call.1} parent=28 // pred_check
        _
      $region211: #{tpu_custom_call.1} parent=28 // pred_check_branch
        %365 = sbr.rel (%p362) target = $region213
      $region212: #{tpu_custom_call.1} parent=28 // pred_region
        %s381 = sand.u32 1, 7
        %p382 = scmp.eq.s32.totalorder %s381, 0
        %p383 = pneg %p382
        // Predicated region
        $region225: #{tpu_custom_call.1} parent=212 // pred_check
          _
        $region226: #{tpu_custom_call.1} parent=212 // pred_check_branch
          %385 = sbr.rel (%p382) target = $region228
        $region227: #{tpu_custom_call.1} parent=212 // pred_region
          %s386 = sand.u32 1, 7
          %s387 = ssub.s32 1, %s386
          %s388 = scalar_lea.vmem %s359, %s387
          %s389 = ssub.s32 1, %s386
          %s390 = scalar_lea.vmem %s360, %s389 [#allocation2]
          %s391 = sshll.u32 1, %s386
          %s392 = ssub.s32 %s391, 1
          loop: start=0, step=1, limit=1
          $region229: #{tpu_custom_call.1} parent=227 // loop_pre_header
            _
          $region230: #{tpu_custom_call.1} parent=227 // loop_header
            %s394 = sphi 0, %s398
            %p395 = scmp.ge.s32.totalorder %s394, 1
            %s399 = sphi %s388, %s388
            %s400 = sphi %s390, %s390
          $region231: #{tpu_custom_call.1} parent=227 // loop_header_branch
            %397 = sbr.rel (%p395) target = $region235
          $region232: #{tpu_custom_call.1} parent=227 // loop_body
            %v401 = vld [vmem:[%s399] sm:%s392]
            %402 = vst [vmem:[%s400] sm:%s392] %v401
          $region233: #{tpu_custom_call.1} parent=227 // loop_footer
            %s398 = sadd.s32 1, %s394
          $region234: #{tpu_custom_call.1} parent=227 // loop_footer_branch
            %393 = sbr.rel target = $region230
          $region235: #{tpu_custom_call.1} parent=227 // loop_exit
            _
        $region228: #{tpu_custom_call.1} parent=212 // pred_fallthru
          _
      $region213: #{tpu_custom_call.1} parent=28 // pred_fallthru
        _
      // Predicated region
      $region214: #{tpu_custom_call.1} parent=28 // pred_check
        %p366 = pneg %p362
      $region215: #{tpu_custom_call.1} parent=28 // pred_check_branch
        %368 = sbr.rel (%p366) target = $region217
      $region216: #{tpu_custom_call.1} parent=28 // pred_region
        %s369 = sshll.u32 1, 1
        %s370 = ssub.s32 %s369, 1
        loop: start=0, step=1, limit=1
        $region218: #{tpu_custom_call.1} parent=216 // loop_pre_header
          _
        $region219: #{tpu_custom_call.1} parent=216 // loop_header
          %s372 = sphi 0, %s376
          %p373 = scmp.ge.s32.totalorder %s372, 1
          %s377 = sphi %s359, %s359
          %s378 = sphi %s360, %s360
        $region220: #{tpu_custom_call.1} parent=216 // loop_header_branch
          %375 = sbr.rel (%p373) target = $region224
        $region221: #{tpu_custom_call.1} parent=216 // loop_body
          %v379 = vld [vmem:[%s377] sm:%s370]
          %380 = vst [vmem:[%s378] sm:%s370] %v379
        $region222: #{tpu_custom_call.1} parent=216 // loop_footer
          %s376 = sadd.s32 1, %s372
        $region223: #{tpu_custom_call.1} parent=216 // loop_footer_branch
          %371 = sbr.rel target = $region219
        $region224: #{tpu_custom_call.1} parent=216 // loop_exit
          _
      $region217: #{tpu_custom_call.1} parent=28 // pred_fallthru
        _
      // Predicated region
      $region236: #{tpu_custom_call.1} parent=28 // pred_check
        _
      $region237: #{tpu_custom_call.1} parent=28 // pred_check_branch
        %405 = sbr.rel (0) target = $region239
      $region238: #{tpu_custom_call.1} parent=28 // pred_region
        %406 = vsyncadd %s58, 16
      $region239: #{tpu_custom_call.1} parent=28 // pred_fallthru
        _
      %s407 = scalar_lea.vmem %s3, %s357
      %s408 = scalar_lea.vmem [#allocation3], %s358
      %p410 = scmp.lt.u32.totalorder 1, 8
      %p411 = pneg %p410
      // Predicated region
      $region240: #{tpu_custom_call.1} parent=28 // pred_check
        _
      $region241: #{tpu_custom_call.1} parent=28 // pred_check_branch
        %413 = sbr.rel (%p410) target = $region243
      $region242: #{tpu_custom_call.1} parent=28 // pred_region
        %s429 = sand.u32 1, 7
        %p430 = scmp.eq.s32.totalorder %s429, 0
        %p431 = pneg %p430
        // Predicated region
        $region255: #{tpu_custom_call.1} parent=242 // pred_check
          _
        $region256: #{tpu_custom_call.1} parent=242 // pred_check_branch
          %433 = sbr.rel (%p430) target = $region258
        $region257: #{tpu_custom_call.1} parent=242 // pred_region
          %s434 = sand.u32 1, 7
          %s435 = ssub.s32 1, %s434
          %s436 = scalar_lea.vmem %s407, %s435
          %s437 = ssub.s32 1, %s434
          %s438 = scalar_lea.vmem %s408, %s437 [#allocation3]
          %s439 = sshll.u32 1, %s434
          %s440 = ssub.s32 %s439, 1
          loop: start=0, step=1, limit=1
          $region259: #{tpu_custom_call.1} parent=257 // loop_pre_header
            _
          $region260: #{tpu_custom_call.1} parent=257 // loop_header
            %s442 = sphi 0, %s446
            %p443 = scmp.ge.s32.totalorder %s442, 1
            %s447 = sphi %s436, %s436
            %s448 = sphi %s438, %s438
          $region261: #{tpu_custom_call.1} parent=257 // loop_header_branch
            %445 = sbr.rel (%p443) target = $region265
          $region262: #{tpu_custom_call.1} parent=257 // loop_body
            %v449 = vld [vmem:[%s447] sm:%s440]
            %450 = vst [vmem:[%s448] sm:%s440] %v449
          $region263: #{tpu_custom_call.1} parent=257 // loop_footer
            %s446 = sadd.s32 1, %s442
          $region264: #{tpu_custom_call.1} parent=257 // loop_footer_branch
            %441 = sbr.rel target = $region260
          $region265: #{tpu_custom_call.1} parent=257 // loop_exit
            _
        $region258: #{tpu_custom_call.1} parent=242 // pred_fallthru
          _
      $region243: #{tpu_custom_call.1} parent=28 // pred_fallthru
        _
      // Predicated region
      $region244: #{tpu_custom_call.1} parent=28 // pred_check
        %p414 = pneg %p410
      $region245: #{tpu_custom_call.1} parent=28 // pred_check_branch
        %416 = sbr.rel (%p414) target = $region247
      $region246: #{tpu_custom_call.1} parent=28 // pred_region
        %s417 = sshll.u32 1, 1
        %s418 = ssub.s32 %s417, 1
        loop: start=0, step=1, limit=1
        $region248: #{tpu_custom_call.1} parent=246 // loop_pre_header
          _
        $region249: #{tpu_custom_call.1} parent=246 // loop_header
          %s420 = sphi 0, %s424
          %p421 = scmp.ge.s32.totalorder %s420, 1
          %s425 = sphi %s407, %s407
          %s426 = sphi %s408, %s408
        $region250: #{tpu_custom_call.1} parent=246 // loop_header_branch
          %423 = sbr.rel (%p421) target = $region254
        $region251: #{tpu_custom_call.1} parent=246 // loop_body
          %v427 = vld [vmem:[%s425] sm:%s418]
          %428 = vst [vmem:[%s426] sm:%s418] %v427
        $region252: #{tpu_custom_call.1} parent=246 // loop_footer
          %s424 = sadd.s32 1, %s420
        $region253: #{tpu_custom_call.1} parent=246 // loop_footer_branch
          %419 = sbr.rel target = $region249
        $region254: #{tpu_custom_call.1} parent=246 // loop_exit
          _
      $region247: #{tpu_custom_call.1} parent=28 // pred_fallthru
        _
      // Predicated region
      $region266: #{tpu_custom_call.1} parent=28 // pred_check
        _
      $region267: #{tpu_custom_call.1} parent=28 // pred_check_branch
        %453 = sbr.rel (0) target = $region269
      $region268: #{tpu_custom_call.1} parent=28 // pred_region
        %454 = vsyncadd %s108, 16
      $region269: #{tpu_custom_call.1} parent=28 // pred_fallthru
        _
      %s455 = sadd.s32 %s51, 4
      %s456 = sld [smem:[#allocation6 + %s455]]
      %s457 = sld [smem:[#allocation7 + %s455]]
      %s458 = sadd.s32 %s52, 4
      %s459 = scalar_lea.vmem %s2, %s456
      %s460 = scalar_lea.vmem [#allocation2], %s458
      %p462 = scmp.lt.u32.totalorder 1, 8
      %p463 = pneg %p462
      // Predicated region
      $region270: #{tpu_custom_call.1} parent=28 // pred_check
        _
      $region271: #{tpu_custom_call.1} parent=28 // pred_check_branch
        %465 = sbr.rel (%p462) target = $region273
      $region272: #{tpu_custom_call.1} parent=28 // pred_region
        %s481 = sand.u32 1, 7
        %p482 = scmp.eq.s32.totalorder %s481, 0
        %p483 = pneg %p482
        // Predicated region
        $region285: #{tpu_custom_call.1} parent=272 // pred_check
          _
        $region286: #{tpu_custom_call.1} parent=272 // pred_check_branch
          %485 = sbr.rel (%p482) target = $region288
        $region287: #{tpu_custom_call.1} parent=272 // pred_region
          %s486 = sand.u32 1, 7
          %s487 = ssub.s32 1, %s486
          %s488 = scalar_lea.vmem %s459, %s487
          %s489 = ssub.s32 1, %s486
          %s490 = scalar_lea.vmem %s460, %s489 [#allocation2]
          %s491 = sshll.u32 1, %s486
          %s492 = ssub.s32 %s491, 1
          loop: start=0, step=1, limit=1
          $region289: #{tpu_custom_call.1} parent=287 // loop_pre_header
            _
          $region290: #{tpu_custom_call.1} parent=287 // loop_header
            %s494 = sphi 0, %s498
            %p495 = scmp.ge.s32.totalorder %s494, 1
            %s499 = sphi %s488, %s488
            %s500 = sphi %s490, %s490
          $region291: #{tpu_custom_call.1} parent=287 // loop_header_branch
            %497 = sbr.rel (%p495) target = $region295
          $region292: #{tpu_custom_call.1} parent=287 // loop_body
            %v501 = vld [vmem:[%s499] sm:%s492]
            %502 = vst [vmem:[%s500] sm:%s492] %v501
          $region293: #{tpu_custom_call.1} parent=287 // loop_footer
            %s498 = sadd.s32 1, %s494
          $region294: #{tpu_custom_call.1} parent=287 // loop_footer_branch
            %493 = sbr.rel target = $region290
          $region295: #{tpu_custom_call.1} parent=287 // loop_exit
            _
        $region288: #{tpu_custom_call.1} parent=272 // pred_fallthru
          _
      $region273: #{tpu_custom_call.1} parent=28 // pred_fallthru
        _
      // Predicated region
      $region274: #{tpu_custom_call.1} parent=28 // pred_check
        %p466 = pneg %p462
      $region275: #{tpu_custom_call.1} parent=28 // pred_check_branch
        %468 = sbr.rel (%p466) target = $region277
      $region276: #{tpu_custom_call.1} parent=28 // pred_region
        %s469 = sshll.u32 1, 1
        %s470 = ssub.s32 %s469, 1
        loop: start=0, step=1, limit=1
        $region278: #{tpu_custom_call.1} parent=276 // loop_pre_header
          _
        $region279: #{tpu_custom_call.1} parent=276 // loop_header
          %s472 = sphi 0, %s476
          %p473 = scmp.ge.s32.totalorder %s472, 1
          %s477 = sphi %s459, %s459
          %s478 = sphi %s460, %s460
        $region280: #{tpu_custom_call.1} parent=276 // loop_header_branch
          %475 = sbr.rel (%p473) target = $region284
        $region281: #{tpu_custom_call.1} parent=276 // loop_body
          %v479 = vld [vmem:[%s477] sm:%s470]
          %480 = vst [vmem:[%s478] sm:%s470] %v479
        $region282: #{tpu_custom_call.1} parent=276 // loop_footer
          %s476 = sadd.s32 1, %s472
        $region283: #{tpu_custom_call.1} parent=276 // loop_footer_branch
          %471 = sbr.rel target = $region279
        $region284: #{tpu_custom_call.1} parent=276 // loop_exit
          _
      $region277: #{tpu_custom_call.1} parent=28 // pred_fallthru
        _
      // Predicated region
      $region296: #{tpu_custom_call.1} parent=28 // pred_check
        _
      $region297: #{tpu_custom_call.1} parent=28 // pred_check_branch
        %505 = sbr.rel (0) target = $region299
      $region298: #{tpu_custom_call.1} parent=28 // pred_region
        %506 = vsyncadd %s58, 16
      $region299: #{tpu_custom_call.1} parent=28 // pred_fallthru
        _
      %s507 = scalar_lea.vmem %s3, %s457
      %s508 = scalar_lea.vmem [#allocation3], %s458
      %p510 = scmp.lt.u32.totalorder 1, 8
      %p511 = pneg %p510
      // Predicated region
      $region300: #{tpu_custom_call.1} parent=28 // pred_check
        _
      $region301: #{tpu_custom_call.1} parent=28 // pred_check_branch
        %513 = sbr.rel (%p510) target = $region303
      $region302: #{tpu_custom_call.1} parent=28 // pred_region
        %s529 = sand.u32 1, 7
        %p530 = scmp.eq.s32.totalorder %s529, 0
        %p531 = pneg %p530
        // Predicated region
        $region315: #{tpu_custom_call.1} parent=302 // pred_check
          _
        $region316: #{tpu_custom_call.1} parent=302 // pred_check_branch
          %533 = sbr.rel (%p530) target = $region318
        $region317: #{tpu_custom_call.1} parent=302 // pred_region
          %s534 = sand.u32 1, 7
          %s535 = ssub.s32 1, %s534
          %s536 = scalar_lea.vmem %s507, %s535
          %s537 = ssub.s32 1, %s534
          %s538 = scalar_lea.vmem %s508, %s537 [#allocation3]
          %s539 = sshll.u32 1, %s534
          %s540 = ssub.s32 %s539, 1
          loop: start=0, step=1, limit=1
          $region319: #{tpu_custom_call.1} parent=317 // loop_pre_header
            _
          $region320: #{tpu_custom_call.1} parent=317 // loop_header
            %s542 = sphi 0, %s546
            %p543 = scmp.ge.s32.totalorder %s542, 1
            %s547 = sphi %s536, %s536
            %s548 = sphi %s538, %s538
          $region321: #{tpu_custom_call.1} parent=317 // loop_header_branch
            %545 = sbr.rel (%p543) target = $region325
          $region322: #{tpu_custom_call.1} parent=317 // loop_body
            %v549 = vld [vmem:[%s547] sm:%s540]
            %550 = vst [vmem:[%s548] sm:%s540] %v549
          $region323: #{tpu_custom_call.1} parent=317 // loop_footer
            %s546 = sadd.s32 1, %s542
          $region324: #{tpu_custom_call.1} parent=317 // loop_footer_branch
            %541 = sbr.rel target = $region320
          $region325: #{tpu_custom_call.1} parent=317 // loop_exit
            _
        $region318: #{tpu_custom_call.1} parent=302 // pred_fallthru
          _
      $region303: #{tpu_custom_call.1} parent=28 // pred_fallthru
        _
      // Predicated region
      $region304: #{tpu_custom_call.1} parent=28 // pred_check
        %p514 = pneg %p510
      $region305: #{tpu_custom_call.1} parent=28 // pred_check_branch
        %516 = sbr.rel (%p514) target = $region307
      $region306: #{tpu_custom_call.1} parent=28 // pred_region
        %s517 = sshll.u32 1, 1
        %s518 = ssub.s32 %s517, 1
        loop: start=0, step=1, limit=1
        $region308: #{tpu_custom_call.1} parent=306 // loop_pre_header
          _
        $region309: #{tpu_custom_call.1} parent=306 // loop_header
          %s520 = sphi 0, %s524
          %p521 = scmp.ge.s32.totalorder %s520, 1
          %s525 = sphi %s507, %s507
          %s526 = sphi %s508, %s508
        $region310: #{tpu_custom_call.1} parent=306 // loop_header_branch
          %523 = sbr.rel (%p521) target = $region314
        $region311: #{tpu_custom_call.1} parent=306 // loop_body
          %v527 = vld [vmem:[%s525] sm:%s518]
          %528 = vst [vmem:[%s526] sm:%s518] %v527
        $region312: #{tpu_custom_call.1} parent=306 // loop_footer
          %s524 = sadd.s32 1, %s520
        $region313: #{tpu_custom_call.1} parent=306 // loop_footer_branch
          %519 = sbr.rel target = $region309
        $region314: #{tpu_custom_call.1} parent=306 // loop_exit
          _
      $region307: #{tpu_custom_call.1} parent=28 // pred_fallthru
        _
      // Predicated region
      $region326: #{tpu_custom_call.1} parent=28 // pred_check
        _
      $region327: #{tpu_custom_call.1} parent=28 // pred_check_branch
        %553 = sbr.rel (0) target = $region329
      $region328: #{tpu_custom_call.1} parent=28 // pred_region
        %554 = vsyncadd %s108, 16
      $region329: #{tpu_custom_call.1} parent=28 // pred_fallthru
        _
      %s555 = sadd.s32 %s51, 5
      %s556 = sld [smem:[#allocation6 + %s555]]
      %s557 = sld [smem:[#allocation7 + %s555]]
      %s558 = sadd.s32 %s52, 5
      %s559 = scalar_lea.vmem %s2, %s556
      %s560 = scalar_lea.vmem [#allocation2], %s558
      %p562 = scmp.lt.u32.totalorder 1, 8
      %p563 = pneg %p562
      // Predicated region
      $region330: #{tpu_custom_call.1} parent=28 // pred_check
        _
      $region331: #{tpu_custom_call.1} parent=28 // pred_check_branch
        %565 = sbr.rel (%p562) target = $region333
      $region332: #{tpu_custom_call.1} parent=28 // pred_region
        %s581 = sand.u32 1, 7
        %p582 = scmp.eq.s32.totalorder %s581, 0
        %p583 = pneg %p582
        // Predicated region
        $region345: #{tpu_custom_call.1} parent=332 // pred_check
          _
        $region346: #{tpu_custom_call.1} parent=332 // pred_check_branch
          %585 = sbr.rel (%p582) target = $region348
        $region347: #{tpu_custom_call.1} parent=332 // pred_region
          %s586 = sand.u32 1, 7
          %s587 = ssub.s32 1, %s586
          %s588 = scalar_lea.vmem %s559, %s587
          %s589 = ssub.s32 1, %s586
          %s590 = scalar_lea.vmem %s560, %s589 [#allocation2]
          %s591 = sshll.u32 1, %s586
          %s592 = ssub.s32 %s591, 1
          loop: start=0, step=1, limit=1
          $region349: #{tpu_custom_call.1} parent=347 // loop_pre_header
            _
          $region350: #{tpu_custom_call.1} parent=347 // loop_header
            %s594 = sphi 0, %s598
            %p595 = scmp.ge.s32.totalorder %s594, 1
            %s599 = sphi %s588, %s588
            %s600 = sphi %s590, %s590
          $region351: #{tpu_custom_call.1} parent=347 // loop_header_branch
            %597 = sbr.rel (%p595) target = $region355
          $region352: #{tpu_custom_call.1} parent=347 // loop_body
            %v601 = vld [vmem:[%s599] sm:%s592]
            %602 = vst [vmem:[%s600] sm:%s592] %v601
          $region353: #{tpu_custom_call.1} parent=347 // loop_footer
            %s598 = sadd.s32 1, %s594
          $region354: #{tpu_custom_call.1} parent=347 // loop_footer_branch
            %593 = sbr.rel target = $region350
          $region355: #{tpu_custom_call.1} parent=347 // loop_exit
            _
        $region348: #{tpu_custom_call.1} parent=332 // pred_fallthru
          _
      $region333: #{tpu_custom_call.1} parent=28 // pred_fallthru
        _
      // Predicated region
      $region334: #{tpu_custom_call.1} parent=28 // pred_check
        %p566 = pneg %p562
      $region335: #{tpu_custom_call.1} parent=28 // pred_check_branch
        %568 = sbr.rel (%p566) target = $region337
      $region336: #{tpu_custom_call.1} parent=28 // pred_region
        %s569 = sshll.u32 1, 1
        %s570 = ssub.s32 %s569, 1
        loop: start=0, step=1, limit=1
        $region338: #{tpu_custom_call.1} parent=336 // loop_pre_header
          _
        $region339: #{tpu_custom_call.1} parent=336 // loop_header
          %s572 = sphi 0, %s576
          %p573 = scmp.ge.s32.totalorder %s572, 1
          %s577 = sphi %s559, %s559
          %s578 = sphi %s560, %s560
        $region340: #{tpu_custom_call.1} parent=336 // loop_header_branch
          %575 = sbr.rel (%p573) target = $region344
        $region341: #{tpu_custom_call.1} parent=336 // loop_body
          %v579 = vld [vmem:[%s577] sm:%s570]
          %580 = vst [vmem:[%s578] sm:%s570] %v579
        $region342: #{tpu_custom_call.1} parent=336 // loop_footer
          %s576 = sadd.s32 1, %s572
        $region343: #{tpu_custom_call.1} parent=336 // loop_footer_branch
          %571 = sbr.rel target = $region339
        $region344: #{tpu_custom_call.1} parent=336 // loop_exit
          _
      $region337: #{tpu_custom_call.1} parent=28 // pred_fallthru
        _
      // Predicated region
      $region356: #{tpu_custom_call.1} parent=28 // pred_check
        _
      $region357: #{tpu_custom_call.1} parent=28 // pred_check_branch
        %605 = sbr.rel (0) target = $region359
      $region358: #{tpu_custom_call.1} parent=28 // pred_region
        %606 = vsyncadd %s58, 16
      $region359: #{tpu_custom_call.1} parent=28 // pred_fallthru
        _
      %s607 = scalar_lea.vmem %s3, %s557
      %s608 = scalar_lea.vmem [#allocation3], %s558
      %p610 = scmp.lt.u32.totalorder 1, 8
      %p611 = pneg %p610
      // Predicated region
      $region360: #{tpu_custom_call.1} parent=28 // pred_check
        _
      $region361: #{tpu_custom_call.1} parent=28 // pred_check_branch
        %613 = sbr.rel (%p610) target = $region363
      $region362: #{tpu_custom_call.1} parent=28 // pred_region
        %s629 = sand.u32 1, 7
        %p630 = scmp.eq.s32.totalorder %s629, 0
        %p631 = pneg %p630
        // Predicated region
        $region375: #{tpu_custom_call.1} parent=362 // pred_check
          _
        $region376: #{tpu_custom_call.1} parent=362 // pred_check_branch
          %633 = sbr.rel (%p630) target = $region378
        $region377: #{tpu_custom_call.1} parent=362 // pred_region
          %s634 = sand.u32 1, 7
          %s635 = ssub.s32 1, %s634
          %s636 = scalar_lea.vmem %s607, %s635
          %s637 = ssub.s32 1, %s634
          %s638 = scalar_lea.vmem %s608, %s637 [#allocation3]
          %s639 = sshll.u32 1, %s634
          %s640 = ssub.s32 %s639, 1
          loop: start=0, step=1, limit=1
          $region379: #{tpu_custom_call.1} parent=377 // loop_pre_header
            _
          $region380: #{tpu_custom_call.1} parent=377 // loop_header
            %s642 = sphi 0, %s646
            %p643 = scmp.ge.s32.totalorder %s642, 1
            %s647 = sphi %s636, %s636
            %s648 = sphi %s638, %s638
          $region381: #{tpu_custom_call.1} parent=377 // loop_header_branch
            %645 = sbr.rel (%p643) target = $region385
          $region382: #{tpu_custom_call.1} parent=377 // loop_body
            %v649 = vld [vmem:[%s647] sm:%s640]
            %650 = vst [vmem:[%s648] sm:%s640] %v649
          $region383: #{tpu_custom_call.1} parent=377 // loop_footer
            %s646 = sadd.s32 1, %s642
          $region384: #{tpu_custom_call.1} parent=377 // loop_footer_branch
            %641 = sbr.rel target = $region380
          $region385: #{tpu_custom_call.1} parent=377 // loop_exit
            _
        $region378: #{tpu_custom_call.1} parent=362 // pred_fallthru
          _
      $region363: #{tpu_custom_call.1} parent=28 // pred_fallthru
        _
      // Predicated region
      $region364: #{tpu_custom_call.1} parent=28 // pred_check
        %p614 = pneg %p610
      $region365: #{tpu_custom_call.1} parent=28 // pred_check_branch
        %616 = sbr.rel (%p614) target = $region367
      $region366: #{tpu_custom_call.1} parent=28 // pred_region
        %s617 = sshll.u32 1, 1
        %s618 = ssub.s32 %s617, 1
        loop: start=0, step=1, limit=1
        $region368: #{tpu_custom_call.1} parent=366 // loop_pre_header
          _
        $region369: #{tpu_custom_call.1} parent=366 // loop_header
          %s620 = sphi 0, %s624
          %p621 = scmp.ge.s32.totalorder %s620, 1
          %s625 = sphi %s607, %s607
          %s626 = sphi %s608, %s608
        $region370: #{tpu_custom_call.1} parent=366 // loop_header_branch
          %623 = sbr.rel (%p621) target = $region374
        $region371: #{tpu_custom_call.1} parent=366 // loop_body
          %v627 = vld [vmem:[%s625] sm:%s618]
          %628 = vst [vmem:[%s626] sm:%s618] %v627
        $region372: #{tpu_custom_call.1} parent=366 // loop_footer
          %s624 = sadd.s32 1, %s620
        $region373: #{tpu_custom_call.1} parent=366 // loop_footer_branch
          %619 = sbr.rel target = $region369
        $region374: #{tpu_custom_call.1} parent=366 // loop_exit
          _
      $region367: #{tpu_custom_call.1} parent=28 // pred_fallthru
        _
      // Predicated region
      $region386: #{tpu_custom_call.1} parent=28 // pred_check
        _
      $region387: #{tpu_custom_call.1} parent=28 // pred_check_branch
        %653 = sbr.rel (0) target = $region389
      $region388: #{tpu_custom_call.1} parent=28 // pred_region
        %654 = vsyncadd %s108, 16
      $region389: #{tpu_custom_call.1} parent=28 // pred_fallthru
        _
      %s655 = sadd.s32 %s51, 6
      %s656 = sld [smem:[#allocation6 + %s655]]
      %s657 = sld [smem:[#allocation7 + %s655]]
      %s658 = sadd.s32 %s52, 6
      %s659 = scalar_lea.vmem %s2, %s656
      %s660 = scalar_lea.vmem [#allocation2], %s658
      %p662 = scmp.lt.u32.totalorder 1, 8
      %p663 = pneg %p662
      // Predicated region
      $region390: #{tpu_custom_call.1} parent=28 // pred_check
        _
      $region391: #{tpu_custom_call.1} parent=28 // pred_check_branch
        %665 = sbr.rel (%p662) target = $region393
      $region392: #{tpu_custom_call.1} parent=28 // pred_region
        %s681 = sand.u32 1, 7
        %p682 = scmp.eq.s32.totalorder %s681, 0
        %p683 = pneg %p682
        // Predicated region
        $region405: #{tpu_custom_call.1} parent=392 // pred_check
          _
        $region406: #{tpu_custom_call.1} parent=392 // pred_check_branch
          %685 = sbr.rel (%p682) target = $region408
        $region407: #{tpu_custom_call.1} parent=392 // pred_region
          %s686 = sand.u32 1, 7
          %s687 = ssub.s32 1, %s686
          %s688 = scalar_lea.vmem %s659, %s687
          %s689 = ssub.s32 1, %s686
          %s690 = scalar_lea.vmem %s660, %s689 [#allocation2]
          %s691 = sshll.u32 1, %s686
          %s692 = ssub.s32 %s691, 1
          loop: start=0, step=1, limit=1
          $region409: #{tpu_custom_call.1} parent=407 // loop_pre_header
            _
          $region410: #{tpu_custom_call.1} parent=407 // loop_header
            %s694 = sphi 0, %s698
            %p695 = scmp.ge.s32.totalorder %s694, 1
            %s699 = sphi %s688, %s688
            %s700 = sphi %s690, %s690
          $region411: #{tpu_custom_call.1} parent=407 // loop_header_branch
            %697 = sbr.rel (%p695) target = $region415
          $region412: #{tpu_custom_call.1} parent=407 // loop_body
            %v701 = vld [vmem:[%s699] sm:%s692]
            %702 = vst [vmem:[%s700] sm:%s692] %v701
          $region413: #{tpu_custom_call.1} parent=407 // loop_footer
            %s698 = sadd.s32 1, %s694
          $region414: #{tpu_custom_call.1} parent=407 // loop_footer_branch
            %693 = sbr.rel target = $region410
          $region415: #{tpu_custom_call.1} parent=407 // loop_exit
            _
        $region408: #{tpu_custom_call.1} parent=392 // pred_fallthru
          _
      $region393: #{tpu_custom_call.1} parent=28 // pred_fallthru
        _
      // Predicated region
      $region394: #{tpu_custom_call.1} parent=28 // pred_check
        %p666 = pneg %p662
      $region395: #{tpu_custom_call.1} parent=28 // pred_check_branch
        %668 = sbr.rel (%p666) target = $region397
      $region396: #{tpu_custom_call.1} parent=28 // pred_region
        %s669 = sshll.u32 1, 1
        %s670 = ssub.s32 %s669, 1
        loop: start=0, step=1, limit=1
        $region398: #{tpu_custom_call.1} parent=396 // loop_pre_header
          _
        $region399: #{tpu_custom_call.1} parent=396 // loop_header
          %s672 = sphi 0, %s676
          %p673 = scmp.ge.s32.totalorder %s672, 1
          %s677 = sphi %s659, %s659
          %s678 = sphi %s660, %s660
        $region400: #{tpu_custom_call.1} parent=396 // loop_header_branch
          %675 = sbr.rel (%p673) target = $region404
        $region401: #{tpu_custom_call.1} parent=396 // loop_body
          %v679 = vld [vmem:[%s677] sm:%s670]
          %680 = vst [vmem:[%s678] sm:%s670] %v679
        $region402: #{tpu_custom_call.1} parent=396 // loop_footer
          %s676 = sadd.s32 1, %s672
        $region403: #{tpu_custom_call.1} parent=396 // loop_footer_branch
          %671 = sbr.rel target = $region399
        $region404: #{tpu_custom_call.1} parent=396 // loop_exit
          _
      $region397: #{tpu_custom_call.1} parent=28 // pred_fallthru
        _
      // Predicated region
      $region416: #{tpu_custom_call.1} parent=28 // pred_check
        _
      $region417: #{tpu_custom_call.1} parent=28 // pred_check_branch
        %705 = sbr.rel (0) target = $region419
      $region418: #{tpu_custom_call.1} parent=28 // pred_region
        %706 = vsyncadd %s58, 16
      $region419: #{tpu_custom_call.1} parent=28 // pred_fallthru
        _
      %s707 = scalar_lea.vmem %s3, %s657
      %s708 = scalar_lea.vmem [#allocation3], %s658
      %p710 = scmp.lt.u32.totalorder 1, 8
      %p711 = pneg %p710
      // Predicated region
      $region420: #{tpu_custom_call.1} parent=28 // pred_check
        _
      $region421: #{tpu_custom_call.1} parent=28 // pred_check_branch
        %713 = sbr.rel (%p710) target = $region423
      $region422: #{tpu_custom_call.1} parent=28 // pred_region
        %s729 = sand.u32 1, 7
        %p730 = scmp.eq.s32.totalorder %s729, 0
        %p731 = pneg %p730
        // Predicated region
        $region435: #{tpu_custom_call.1} parent=422 // pred_check
          _
        $region436: #{tpu_custom_call.1} parent=422 // pred_check_branch
          %733 = sbr.rel (%p730) target = $region438
        $region437: #{tpu_custom_call.1} parent=422 // pred_region
          %s734 = sand.u32 1, 7
          %s735 = ssub.s32 1, %s734
          %s736 = scalar_lea.vmem %s707, %s735
          %s737 = ssub.s32 1, %s734
          %s738 = scalar_lea.vmem %s708, %s737 [#allocation3]
          %s739 = sshll.u32 1, %s734
          %s740 = ssub.s32 %s739, 1
          loop: start=0, step=1, limit=1
          $region439: #{tpu_custom_call.1} parent=437 // loop_pre_header
            _
          $region440: #{tpu_custom_call.1} parent=437 // loop_header
            %s742 = sphi 0, %s746
            %p743 = scmp.ge.s32.totalorder %s742, 1
            %s747 = sphi %s736, %s736
            %s748 = sphi %s738, %s738
          $region441: #{tpu_custom_call.1} parent=437 // loop_header_branch
            %745 = sbr.rel (%p743) target = $region445
          $region442: #{tpu_custom_call.1} parent=437 // loop_body
            %v749 = vld [vmem:[%s747] sm:%s740]
            %750 = vst [vmem:[%s748] sm:%s740] %v749
          $region443: #{tpu_custom_call.1} parent=437 // loop_footer
            %s746 = sadd.s32 1, %s742
          $region444: #{tpu_custom_call.1} parent=437 // loop_footer_branch
            %741 = sbr.rel target = $region440
          $region445: #{tpu_custom_call.1} parent=437 // loop_exit
            _
        $region438: #{tpu_custom_call.1} parent=422 // pred_fallthru
          _
      $region423: #{tpu_custom_call.1} parent=28 // pred_fallthru
        _
      // Predicated region
      $region424: #{tpu_custom_call.1} parent=28 // pred_check
        %p714 = pneg %p710
      $region425: #{tpu_custom_call.1} parent=28 // pred_check_branch
        %716 = sbr.rel (%p714) target = $region427
      $region426: #{tpu_custom_call.1} parent=28 // pred_region
        %s717 = sshll.u32 1, 1
        %s718 = ssub.s32 %s717, 1
        loop: start=0, step=1, limit=1
        $region428: #{tpu_custom_call.1} parent=426 // loop_pre_header
          _
        $region429: #{tpu_custom_call.1} parent=426 // loop_header
          %s720 = sphi 0, %s724
          %p721 = scmp.ge.s32.totalorder %s720, 1
          %s725 = sphi %s707, %s707
          %s726 = sphi %s708, %s708
        $region430: #{tpu_custom_call.1} parent=426 // loop_header_branch
          %723 = sbr.rel (%p721) target = $region434
        $region431: #{tpu_custom_call.1} parent=426 // loop_body
          %v727 = vld [vmem:[%s725] sm:%s718]
          %728 = vst [vmem:[%s726] sm:%s718] %v727
        $region432: #{tpu_custom_call.1} parent=426 // loop_footer
          %s724 = sadd.s32 1, %s720
        $region433: #{tpu_custom_call.1} parent=426 // loop_footer_branch
          %719 = sbr.rel target = $region429
        $region434: #{tpu_custom_call.1} parent=426 // loop_exit
          _
      $region427: #{tpu_custom_call.1} parent=28 // pred_fallthru
        _
      // Predicated region
      $region446: #{tpu_custom_call.1} parent=28 // pred_check
        _
      $region447: #{tpu_custom_call.1} parent=28 // pred_check_branch
        %753 = sbr.rel (0) target = $region449
      $region448: #{tpu_custom_call.1} parent=28 // pred_region
        %754 = vsyncadd %s108, 16
      $region449: #{tpu_custom_call.1} parent=28 // pred_fallthru
        _
      %s755 = sadd.s32 %s51, 7
      %s756 = sld [smem:[#allocation6 + %s755]]
      %s757 = sld [smem:[#allocation7 + %s755]]
      %s758 = sadd.s32 %s52, 7
      %s759 = scalar_lea.vmem %s2, %s756
      %s760 = scalar_lea.vmem [#allocation2], %s758
      %p762 = scmp.lt.u32.totalorder 1, 8
      %p763 = pneg %p762
      // Predicated region
      $region450: #{tpu_custom_call.1} parent=28 // pred_check
        _
      $region451: #{tpu_custom_call.1} parent=28 // pred_check_branch
        %765 = sbr.rel (%p762) target = $region453
      $region452: #{tpu_custom_call.1} parent=28 // pred_region
        %s781 = sand.u32 1, 7
        %p782 = scmp.eq.s32.totalorder %s781, 0
        %p783 = pneg %p782
        // Predicated region
        $region465: #{tpu_custom_call.1} parent=452 // pred_check
          _
        $region466: #{tpu_custom_call.1} parent=452 // pred_check_branch
          %785 = sbr.rel (%p782) target = $region468
        $region467: #{tpu_custom_call.1} parent=452 // pred_region
          %s786 = sand.u32 1, 7
          %s787 = ssub.s32 1, %s786
          %s788 = scalar_lea.vmem %s759, %s787
          %s789 = ssub.s32 1, %s786
          %s790 = scalar_lea.vmem %s760, %s789 [#allocation2]
          %s791 = sshll.u32 1, %s786
          %s792 = ssub.s32 %s791, 1
          loop: start=0, step=1, limit=1
          $region469: #{tpu_custom_call.1} parent=467 // loop_pre_header
            _
          $region470: #{tpu_custom_call.1} parent=467 // loop_header
            %s794 = sphi 0, %s798
            %p795 = scmp.ge.s32.totalorder %s794, 1
            %s799 = sphi %s788, %s788
            %s800 = sphi %s790, %s790
          $region471: #{tpu_custom_call.1} parent=467 // loop_header_branch
            %797 = sbr.rel (%p795) target = $region475
          $region472: #{tpu_custom_call.1} parent=467 // loop_body
            %v801 = vld [vmem:[%s799] sm:%s792]
            %802 = vst [vmem:[%s800] sm:%s792] %v801
          $region473: #{tpu_custom_call.1} parent=467 // loop_footer
            %s798 = sadd.s32 1, %s794
          $region474: #{tpu_custom_call.1} parent=467 // loop_footer_branch
            %793 = sbr.rel target = $region470
          $region475: #{tpu_custom_call.1} parent=467 // loop_exit
            _
        $region468: #{tpu_custom_call.1} parent=452 // pred_fallthru
          _
      $region453: #{tpu_custom_call.1} parent=28 // pred_fallthru
        _
      // Predicated region
      $region454: #{tpu_custom_call.1} parent=28 // pred_check
        %p766 = pneg %p762
      $region455: #{tpu_custom_call.1} parent=28 // pred_check_branch
        %768 = sbr.rel (%p766) target = $region457
      $region456: #{tpu_custom_call.1} parent=28 // pred_region
        %s769 = sshll.u32 1, 1
        %s770 = ssub.s32 %s769, 1
        loop: start=0, step=1, limit=1
        $region458: #{tpu_custom_call.1} parent=456 // loop_pre_header
          _
        $region459: #{tpu_custom_call.1} parent=456 // loop_header
          %s772 = sphi 0, %s776
          %p773 = scmp.ge.s32.totalorder %s772, 1
          %s777 = sphi %s759, %s759
          %s778 = sphi %s760, %s760
        $region460: #{tpu_custom_call.1} parent=456 // loop_header_branch
          %775 = sbr.rel (%p773) target = $region464
        $region461: #{tpu_custom_call.1} parent=456 // loop_body
          %v779 = vld [vmem:[%s777] sm:%s770]
          %780 = vst [vmem:[%s778] sm:%s770] %v779
        $region462: #{tpu_custom_call.1} parent=456 // loop_footer
          %s776 = sadd.s32 1, %s772
        $region463: #{tpu_custom_call.1} parent=456 // loop_footer_branch
          %771 = sbr.rel target = $region459
        $region464: #{tpu_custom_call.1} parent=456 // loop_exit
          _
      $region457: #{tpu_custom_call.1} parent=28 // pred_fallthru
        _
      // Predicated region
      $region476: #{tpu_custom_call.1} parent=28 // pred_check
        _
      $region477: #{tpu_custom_call.1} parent=28 // pred_check_branch
        %805 = sbr.rel (0) target = $region479
      $region478: #{tpu_custom_call.1} parent=28 // pred_region
        %806 = vsyncadd %s58, 16
      $region479: #{tpu_custom_call.1} parent=28 // pred_fallthru
        _
      %s807 = scalar_lea.vmem %s3, %s757
      %s808 = scalar_lea.vmem [#allocation3], %s758
      %p810 = scmp.lt.u32.totalorder 1, 8
      %p811 = pneg %p810
      // Predicated region
      $region480: #{tpu_custom_call.1} parent=28 // pred_check
        _
      $region481: #{tpu_custom_call.1} parent=28 // pred_check_branch
        %813 = sbr.rel (%p810) target = $region483
      $region482: #{tpu_custom_call.1} parent=28 // pred_region
        %s829 = sand.u32 1, 7
        %p830 = scmp.eq.s32.totalorder %s829, 0
        %p831 = pneg %p830
        // Predicated region
        $region495: #{tpu_custom_call.1} parent=482 // pred_check
          _
        $region496: #{tpu_custom_call.1} parent=482 // pred_check_branch
          %833 = sbr.rel (%p830) target = $region498
        $region497: #{tpu_custom_call.1} parent=482 // pred_region
          %s834 = sand.u32 1, 7
          %s835 = ssub.s32 1, %s834
          %s836 = scalar_lea.vmem %s807, %s835
          %s837 = ssub.s32 1, %s834
          %s838 = scalar_lea.vmem %s808, %s837 [#allocation3]
          %s839 = sshll.u32 1, %s834
          %s840 = ssub.s32 %s839, 1
          loop: start=0, step=1, limit=1
          $region499: #{tpu_custom_call.1} parent=497 // loop_pre_header
            _
          $region500: #{tpu_custom_call.1} parent=497 // loop_header
            %s842 = sphi 0, %s846
            %p843 = scmp.ge.s32.totalorder %s842, 1
            %s847 = sphi %s836, %s836
            %s848 = sphi %s838, %s838
          $region501: #{tpu_custom_call.1} parent=497 // loop_header_branch
            %845 = sbr.rel (%p843) target = $region505
          $region502: #{tpu_custom_call.1} parent=497 // loop_body
            %v849 = vld [vmem:[%s847] sm:%s840]
            %850 = vst [vmem:[%s848] sm:%s840] %v849
          $region503: #{tpu_custom_call.1} parent=497 // loop_footer
            %s846 = sadd.s32 1, %s842
          $region504: #{tpu_custom_call.1} parent=497 // loop_footer_branch
            %841 = sbr.rel target = $region500
          $region505: #{tpu_custom_call.1} parent=497 // loop_exit
            _
        $region498: #{tpu_custom_call.1} parent=482 // pred_fallthru
          _
      $region483: #{tpu_custom_call.1} parent=28 // pred_fallthru
        _
      // Predicated region
      $region484: #{tpu_custom_call.1} parent=28 // pred_check
        %p814 = pneg %p810
      $region485: #{tpu_custom_call.1} parent=28 // pred_check_branch
        %816 = sbr.rel (%p814) target = $region487
      $region486: #{tpu_custom_call.1} parent=28 // pred_region
        %s817 = sshll.u32 1, 1
        %s818 = ssub.s32 %s817, 1
        loop: start=0, step=1, limit=1
        $region488: #{tpu_custom_call.1} parent=486 // loop_pre_header
          _
        $region489: #{tpu_custom_call.1} parent=486 // loop_header
          %s820 = sphi 0, %s824
          %p821 = scmp.ge.s32.totalorder %s820, 1
          %s825 = sphi %s807, %s807
          %s826 = sphi %s808, %s808
        $region490: #{tpu_custom_call.1} parent=486 // loop_header_branch
          %823 = sbr.rel (%p821) target = $region494
        $region491: #{tpu_custom_call.1} parent=486 // loop_body
          %v827 = vld [vmem:[%s825] sm:%s818]
          %828 = vst [vmem:[%s826] sm:%s818] %v827
        $region492: #{tpu_custom_call.1} parent=486 // loop_footer
          %s824 = sadd.s32 1, %s820
        $region493: #{tpu_custom_call.1} parent=486 // loop_footer_branch
          %819 = sbr.rel target = $region489
        $region494: #{tpu_custom_call.1} parent=486 // loop_exit
          _
      $region487: #{tpu_custom_call.1} parent=28 // pred_fallthru
        _
      // Predicated region
      $region506: #{tpu_custom_call.1} parent=28 // pred_check
        _
      $region507: #{tpu_custom_call.1} parent=28 // pred_check_branch
        %853 = sbr.rel (0) target = $region509
      $region508: #{tpu_custom_call.1} parent=28 // pred_region
        %854 = vsyncadd %s108, 16
      $region509: #{tpu_custom_call.1} parent=28 // pred_fallthru
        _
    $region29: #{tpu_custom_call.1} parent=1 // pred_fallthru
      _
    %s855 = sadd.s32 0, 1
    %p856 = scmp.lt.s32.totalorder %s855, 1
    // Predicated region
    $region510: #{tpu_custom_call.1} parent=1 // pred_check
      %p857 = pneg %p856
    $region511: #{tpu_custom_call.1} parent=1 // pred_check_branch
      %859 = sbr.rel (%p857) target = $region513
    $region512: #{tpu_custom_call.1} parent=1 // pred_region
      %s860 = ssub.s32 1, %s46
      %s861 = smul.u32 %s855, 8
      %s862 = smul.u32 %s860, 8
      %s863 = sld [smem:[#allocation6 + %s861]]
      %s864 = sld [smem:[#allocation7 + %s861]]
      %s865 = scalar_lea.vmem %s2, %s863
      %s866 = scalar_lea.vmem [#allocation2], %s862
      %s867 = smul.u32 %s860, 2
      %s868 = scalar_lea.sflag [#allocation4], %s867
      %p870 = scmp.lt.u32.totalorder 1, 8
      %p871 = pneg %p870
      // Predicated region
      $region514: #{tpu_custom_call.1} parent=512 // pred_check
        _
      $region515: #{tpu_custom_call.1} parent=512 // pred_check_branch
        %873 = sbr.rel (%p870) target = $region517
      $region516: #{tpu_custom_call.1} parent=512 // pred_region
        %s889 = sand.u32 1, 7
        %p890 = scmp.eq.s32.totalorder %s889, 0
        %p891 = pneg %p890
        // Predicated region
        $region529: #{tpu_custom_call.1} parent=516 // pred_check
          _
        $region530: #{tpu_custom_call.1} parent=516 // pred_check_branch
          %893 = sbr.rel (%p890) target = $region532
        $region531: #{tpu_custom_call.1} parent=516 // pred_region
          %s894 = sand.u32 1, 7
          %s895 = ssub.s32 1, %s894
          %s896 = scalar_lea.vmem %s865, %s895
          %s897 = ssub.s32 1, %s894
          %s898 = scalar_lea.vmem %s866, %s897 [#allocation2]
          %s899 = sshll.u32 1, %s894
          %s900 = ssub.s32 %s899, 1
          loop: start=0, step=1, limit=1
          $region533: #{tpu_custom_call.1} parent=531 // loop_pre_header
            _
          $region534: #{tpu_custom_call.1} parent=531 // loop_header
            %s902 = sphi 0, %s906
            %p903 = scmp.ge.s32.totalorder %s902, 1
            %s907 = sphi %s896, %s896
            %s908 = sphi %s898, %s898
          $region535: #{tpu_custom_call.1} parent=531 // loop_header_branch
            %905 = sbr.rel (%p903) target = $region539
          $region536: #{tpu_custom_call.1} parent=531 // loop_body
            %v909 = vld [vmem:[%s907] sm:%s900]
            %910 = vst [vmem:[%s908] sm:%s900] %v909
          $region537: #{tpu_custom_call.1} parent=531 // loop_footer
            %s906 = sadd.s32 1, %s902
          $region538: #{tpu_custom_call.1} parent=531 // loop_footer_branch
            %901 = sbr.rel target = $region534
          $region539: #{tpu_custom_call.1} parent=531 // loop_exit
            _
        $region532: #{tpu_custom_call.1} parent=516 // pred_fallthru
          _
      $region517: #{tpu_custom_call.1} parent=512 // pred_fallthru
        _
      // Predicated region
      $region518: #{tpu_custom_call.1} parent=512 // pred_check
        %p874 = pneg %p870
      $region519: #{tpu_custom_call.1} parent=512 // pred_check_branch
        %876 = sbr.rel (%p874) target = $region521
      $region520: #{tpu_custom_call.1} parent=512 // pred_region
        %s877 = sshll.u32 1, 1
        %s878 = ssub.s32 %s877, 1
        loop: start=0, step=1, limit=1
        $region522: #{tpu_custom_call.1} parent=520 // loop_pre_header
          _
        $region523: #{tpu_custom_call.1} parent=520 // loop_header
          %s880 = sphi 0, %s884
          %p881 = scmp.ge.s32.totalorder %s880, 1
          %s885 = sphi %s865, %s865
          %s886 = sphi %s866, %s866
        $region524: #{tpu_custom_call.1} parent=520 // loop_header_branch
          %883 = sbr.rel (%p881) target = $region528
        $region525: #{tpu_custom_call.1} parent=520 // loop_body
          %v887 = vld [vmem:[%s885] sm:%s878]
          %888 = vst [vmem:[%s886] sm:%s878] %v887
        $region526: #{tpu_custom_call.1} parent=520 // loop_footer
          %s884 = sadd.s32 1, %s880
        $region527: #{tpu_custom_call.1} parent=520 // loop_footer_branch
          %879 = sbr.rel target = $region523
        $region528: #{tpu_custom_call.1} parent=520 // loop_exit
          _
      $region521: #{tpu_custom_call.1} parent=512 // pred_fallthru
        _
      // Predicated region
      $region540: #{tpu_custom_call.1} parent=512 // pred_check
        _
      $region541: #{tpu_custom_call.1} parent=512 // pred_check_branch
        %913 = sbr.rel (0) target = $region543
      $region542: #{tpu_custom_call.1} parent=512 // pred_region
        %914 = vsyncadd %s868, 16
      $region543: #{tpu_custom_call.1} parent=512 // pred_fallthru
        _
      %s915 = scalar_lea.vmem %s3, %s864
      %s916 = scalar_lea.vmem [#allocation3], %s862
      %s917 = sadd.s32 1, %s867
      %s918 = scalar_lea.sflag [#allocation4], %s917
      %p920 = scmp.lt.u32.totalorder 1, 8
      %p921 = pneg %p920
      // Predicated region
      $region544: #{tpu_custom_call.1} parent=512 // pred_check
        _
      $region545: #{tpu_custom_call.1} parent=512 // pred_check_branch
        %923 = sbr.rel (%p920) target = $region547
      $region546: #{tpu_custom_call.1} parent=512 // pred_region
        %s939 = sand.u32 1, 7
        %p940 = scmp.eq.s32.totalorder %s939, 0
        %p941 = pneg %p940
        // Predicated region
        $region559: #{tpu_custom_call.1} parent=546 // pred_check
          _
        $region560: #{tpu_custom_call.1} parent=546 // pred_check_branch
          %943 = sbr.rel (%p940) target = $region562
        $region561: #{tpu_custom_call.1} parent=546 // pred_region
          %s944 = sand.u32 1, 7
          %s945 = ssub.s32 1, %s944
          %s946 = scalar_lea.vmem %s915, %s945
          %s947 = ssub.s32 1, %s944
          %s948 = scalar_lea.vmem %s916, %s947 [#allocation3]
          %s949 = sshll.u32 1, %s944
          %s950 = ssub.s32 %s949, 1
          loop: start=0, step=1, limit=1
          $region563: #{tpu_custom_call.1} parent=561 // loop_pre_header
            _
          $region564: #{tpu_custom_call.1} parent=561 // loop_header
            %s952 = sphi 0, %s956
            %p953 = scmp.ge.s32.totalorder %s952, 1
            %s957 = sphi %s946, %s946
            %s958 = sphi %s948, %s948
          $region565: #{tpu_custom_call.1} parent=561 // loop_header_branch
            %955 = sbr.rel (%p953) target = $region569
          $region566: #{tpu_custom_call.1} parent=561 // loop_body
            %v959 = vld [vmem:[%s957] sm:%s950]
            %960 = vst [vmem:[%s958] sm:%s950] %v959
          $region567: #{tpu_custom_call.1} parent=561 // loop_footer
            %s956 = sadd.s32 1, %s952
          $region568: #{tpu_custom_call.1} parent=561 // loop_footer_branch
            %951 = sbr.rel target = $region564
          $region569: #{tpu_custom_call.1} parent=561 // loop_exit
            _
        $region562: #{tpu_custom_call.1} parent=546 // pred_fallthru
          _
      $region547: #{tpu_custom_call.1} parent=512 // pred_fallthru
        _
      // Predicated region
      $region548: #{tpu_custom_call.1} parent=512 // pred_check
        %p924 = pneg %p920
      $region549: #{tpu_custom_call.1} parent=512 // pred_check_branch
        %926 = sbr.rel (%p924) target = $region551
      $region550: #{tpu_custom_call.1} parent=512 // pred_region
        %s927 = sshll.u32 1, 1
        %s928 = ssub.s32 %s927, 1
        loop: start=0, step=1, limit=1
        $region552: #{tpu_custom_call.1} parent=550 // loop_pre_header
          _
        $region553: #{tpu_custom_call.1} parent=550 // loop_header
          %s930 = sphi 0, %s934
          %p931 = scmp.ge.s32.totalorder %s930, 1
          %s935 = sphi %s915, %s915
          %s936 = sphi %s916, %s916
        $region554: #{tpu_custom_call.1} parent=550 // loop_header_branch
          %933 = sbr.rel (%p931) target = $region558
        $region555: #{tpu_custom_call.1} parent=550 // loop_body
          %v937 = vld [vmem:[%s935] sm:%s928]
          %938 = vst [vmem:[%s936] sm:%s928] %v937
        $region556: #{tpu_custom_call.1} parent=550 // loop_footer
          %s934 = sadd.s32 1, %s930
        $region557: #{tpu_custom_call.1} parent=550 // loop_footer_branch
          %929 = sbr.rel target = $region553
        $region558: #{tpu_custom_call.1} parent=550 // loop_exit
          _
      $region551: #{tpu_custom_call.1} parent=512 // pred_fallthru
        _
      // Predicated region
      $region570: #{tpu_custom_call.1} parent=512 // pred_check
        _
      $region571: #{tpu_custom_call.1} parent=512 // pred_check_branch
        %963 = sbr.rel (0) target = $region573
      $region572: #{tpu_custom_call.1} parent=512 // pred_region
        %964 = vsyncadd %s918, 16
      $region573: #{tpu_custom_call.1} parent=512 // pred_fallthru
        _
      %s965 = sadd.s32 %s861, 1
      %s966 = sld [smem:[#allocation6 + %s965]]
      %s967 = sld [smem:[#allocation7 + %s965]]
      %s968 = sadd.s32 %s862, 1
      %s969 = scalar_lea.vmem %s2, %s966
      %s970 = scalar_lea.vmem [#allocation2], %s968
      %p972 = scmp.lt.u32.totalorder 1, 8
      %p973 = pneg %p972
      // Predicated region
      $region574: #{tpu_custom_call.1} parent=512 // pred_check
        _
      $region575: #{tpu_custom_call.1} parent=512 // pred_check_branch
        %975 = sbr.rel (%p972) target = $region577
      $region576: #{tpu_custom_call.1} parent=512 // pred_region
        %s991 = sand.u32 1, 7
        %p992 = scmp.eq.s32.totalorder %s991, 0
        %p993 = pneg %p992
        // Predicated region
        $region589: #{tpu_custom_call.1} parent=576 // pred_check
          _
        $region590: #{tpu_custom_call.1} parent=576 // pred_check_branch
          %995 = sbr.rel (%p992) target = $region592
        $region591: #{tpu_custom_call.1} parent=576 // pred_region
          %s996 = sand.u32 1, 7
          %s997 = ssub.s32 1, %s996
          %s998 = scalar_lea.vmem %s969, %s997
          %s999 = ssub.s32 1, %s996
          %s1000 = scalar_lea.vmem %s970, %s999 [#allocation2]
          %s1001 = sshll.u32 1, %s996
          %s1002 = ssub.s32 %s1001, 1
          loop: start=0, step=1, limit=1
          $region593: #{tpu_custom_call.1} parent=591 // loop_pre_header
            _
          $region594: #{tpu_custom_call.1} parent=591 // loop_header
            %s1004 = sphi 0, %s1008
            %p1005 = scmp.ge.s32.totalorder %s1004, 1
            %s1009 = sphi %s998, %s998
            %s1010 = sphi %s1000, %s1000
          $region595: #{tpu_custom_call.1} parent=591 // loop_header_branch
            %1007 = sbr.rel (%p1005) target = $region599
          $region596: #{tpu_custom_call.1} parent=591 // loop_body
            %v1011 = vld [vmem:[%s1009] sm:%s1002]
            %1012 = vst [vmem:[%s1010] sm:%s1002] %v1011
          $region597: #{tpu_custom_call.1} parent=591 // loop_footer
            %s1008 = sadd.s32 1, %s1004
          $region598: #{tpu_custom_call.1} parent=591 // loop_footer_branch
            %1003 = sbr.rel target = $region594
          $region599: #{tpu_custom_call.1} parent=591 // loop_exit
            _
        $region592: #{tpu_custom_call.1} parent=576 // pred_fallthru
          _
      $region577: #{tpu_custom_call.1} parent=512 // pred_fallthru
        _
      // Predicated region
      $region578: #{tpu_custom_call.1} parent=512 // pred_check
        %p976 = pneg %p972
      $region579: #{tpu_custom_call.1} parent=512 // pred_check_branch
        %978 = sbr.rel (%p976) target = $region581
      $region580: #{tpu_custom_call.1} parent=512 // pred_region
        %s979 = sshll.u32 1, 1
        %s980 = ssub.s32 %s979, 1
        loop: start=0, step=1, limit=1
        $region582: #{tpu_custom_call.1} parent=580 // loop_pre_header
          _
        $region583: #{tpu_custom_call.1} parent=580 // loop_header
          %s982 = sphi 0, %s986
          %p983 = scmp.ge.s32.totalorder %s982, 1
          %s987 = sphi %s969, %s969
          %s988 = sphi %s970, %s970
        $region584: #{tpu_custom_call.1} parent=580 // loop_header_branch
          %985 = sbr.rel (%p983) target = $region588
        $region585: #{tpu_custom_call.1} parent=580 // loop_body
          %v989 = vld [vmem:[%s987] sm:%s980]
          %990 = vst [vmem:[%s988] sm:%s980] %v989
        $region586: #{tpu_custom_call.1} parent=580 // loop_footer
          %s986 = sadd.s32 1, %s982
        $region587: #{tpu_custom_call.1} parent=580 // loop_footer_branch
          %981 = sbr.rel target = $region583
        $region588: #{tpu_custom_call.1} parent=580 // loop_exit
          _
      $region581: #{tpu_custom_call.1} parent=512 // pred_fallthru
        _
      // Predicated region
      $region600: #{tpu_custom_call.1} parent=512 // pred_check
        _
      $region601: #{tpu_custom_call.1} parent=512 // pred_check_branch
        %1015 = sbr.rel (0) target = $region603
      $region602: #{tpu_custom_call.1} parent=512 // pred_region
        %1016 = vsyncadd %s868, 16
      $region603: #{tpu_custom_call.1} parent=512 // pred_fallthru
        _
      %s1017 = scalar_lea.vmem %s3, %s967
      %s1018 = scalar_lea.vmem [#allocation3], %s968
      %p1020 = scmp.lt.u32.totalorder 1, 8
      %p1021 = pneg %p1020
      // Predicated region
      $region604: #{tpu_custom_call.1} parent=512 // pred_check
        _
      $region605: #{tpu_custom_call.1} parent=512 // pred_check_branch
        %1023 = sbr.rel (%p1020) target = $region607
      $region606: #{tpu_custom_call.1} parent=512 // pred_region
        %s1039 = sand.u32 1, 7
        %p1040 = scmp.eq.s32.totalorder %s1039, 0
        %p1041 = pneg %p1040
        // Predicated region
        $region619: #{tpu_custom_call.1} parent=606 // pred_check
          _
        $region620: #{tpu_custom_call.1} parent=606 // pred_check_branch
          %1043 = sbr.rel (%p1040) target = $region622
        $region621: #{tpu_custom_call.1} parent=606 // pred_region
          %s1044 = sand.u32 1, 7
          %s1045 = ssub.s32 1, %s1044
          %s1046 = scalar_lea.vmem %s1017, %s1045
          %s1047 = ssub.s32 1, %s1044
          %s1048 = scalar_lea.vmem %s1018, %s1047 [#allocation3]
          %s1049 = sshll.u32 1, %s1044
          %s1050 = ssub.s32 %s1049, 1
          loop: start=0, step=1, limit=1
          $region623: #{tpu_custom_call.1} parent=621 // loop_pre_header
            _
          $region624: #{tpu_custom_call.1} parent=621 // loop_header
            %s1052 = sphi 0, %s1056
            %p1053 = scmp.ge.s32.totalorder %s1052, 1
            %s1057 = sphi %s1046, %s1046
            %s1058 = sphi %s1048, %s1048
          $region625: #{tpu_custom_call.1} parent=621 // loop_header_branch
            %1055 = sbr.rel (%p1053) target = $region629
          $region626: #{tpu_custom_call.1} parent=621 // loop_body
            %v1059 = vld [vmem:[%s1057] sm:%s1050]
            %1060 = vst [vmem:[%s1058] sm:%s1050] %v1059
          $region627: #{tpu_custom_call.1} parent=621 // loop_footer
            %s1056 = sadd.s32 1, %s1052
          $region628: #{tpu_custom_call.1} parent=621 // loop_footer_branch
            %1051 = sbr.rel target = $region624
          $region629: #{tpu_custom_call.1} parent=621 // loop_exit
            _
        $region622: #{tpu_custom_call.1} parent=606 // pred_fallthru
          _
      $region607: #{tpu_custom_call.1} parent=512 // pred_fallthru
        _
      // Predicated region
      $region608: #{tpu_custom_call.1} parent=512 // pred_check
        %p1024 = pneg %p1020
      $region609: #{tpu_custom_call.1} parent=512 // pred_check_branch
        %1026 = sbr.rel (%p1024) target = $region611
      $region610: #{tpu_custom_call.1} parent=512 // pred_region
        %s1027 = sshll.u32 1, 1
        %s1028 = ssub.s32 %s1027, 1
        loop: start=0, step=1, limit=1
        $region612: #{tpu_custom_call.1} parent=610 // loop_pre_header
          _
        $region613: #{tpu_custom_call.1} parent=610 // loop_header
          %s1030 = sphi 0, %s1034
          %p1031 = scmp.ge.s32.totalorder %s1030, 1
          %s1035 = sphi %s1017, %s1017
          %s1036 = sphi %s1018, %s1018
        $region614: #{tpu_custom_call.1} parent=610 // loop_header_branch
          %1033 = sbr.rel (%p1031) target = $region618
        $region615: #{tpu_custom_call.1} parent=610 // loop_body
          %v1037 = vld [vmem:[%s1035] sm:%s1028]
          %1038 = vst [vmem:[%s1036] sm:%s1028] %v1037
        $region616: #{tpu_custom_call.1} parent=610 // loop_footer
          %s1034 = sadd.s32 1, %s1030
        $region617: #{tpu_custom_call.1} parent=610 // loop_footer_branch
          %1029 = sbr.rel target = $region613
        $region618: #{tpu_custom_call.1} parent=610 // loop_exit
          _
      $region611: #{tpu_custom_call.1} parent=512 // pred_fallthru
        _
      // Predicated region
      $region630: #{tpu_custom_call.1} parent=512 // pred_check
        _
      $region631: #{tpu_custom_call.1} parent=512 // pred_check_branch
        %1063 = sbr.rel (0) target = $region633
      $region632: #{tpu_custom_call.1} parent=512 // pred_region
        %1064 = vsyncadd %s918, 16
      $region633: #{tpu_custom_call.1} parent=512 // pred_fallthru
        _
      %s1065 = sadd.s32 %s861, 2
      %s1066 = sld [smem:[#allocation6 + %s1065]]
      %s1067 = sld [smem:[#allocation7 + %s1065]]
      %s1068 = sadd.s32 %s862, 2
      %s1069 = scalar_lea.vmem %s2, %s1066
      %s1070 = scalar_lea.vmem [#allocation2], %s1068
      %p1072 = scmp.lt.u32.totalorder 1, 8
      %p1073 = pneg %p1072
      // Predicated region
      $region634: #{tpu_custom_call.1} parent=512 // pred_check
        _
      $region635: #{tpu_custom_call.1} parent=512 // pred_check_branch
        %1075 = sbr.rel (%p1072) target = $region637
      $region636: #{tpu_custom_call.1} parent=512 // pred_region
        %s1091 = sand.u32 1, 7
        %p1092 = scmp.eq.s32.totalorder %s1091, 0
        %p1093 = pneg %p1092
        // Predicated region
        $region649: #{tpu_custom_call.1} parent=636 // pred_check
          _
        $region650: #{tpu_custom_call.1} parent=636 // pred_check_branch
          %1095 = sbr.rel (%p1092) target = $region652
        $region651: #{tpu_custom_call.1} parent=636 // pred_region
          %s1096 = sand.u32 1, 7
          %s1097 = ssub.s32 1, %s1096
          %s1098 = scalar_lea.vmem %s1069, %s1097
          %s1099 = ssub.s32 1, %s1096
          %s1100 = scalar_lea.vmem %s1070, %s1099 [#allocation2]
          %s1101 = sshll.u32 1, %s1096
          %s1102 = ssub.s32 %s1101, 1
          loop: start=0, step=1, limit=1
          $region653: #{tpu_custom_call.1} parent=651 // loop_pre_header
            _
          $region654: #{tpu_custom_call.1} parent=651 // loop_header
            %s1104 = sphi 0, %s1108
            %p1105 = scmp.ge.s32.totalorder %s1104, 1
            %s1109 = sphi %s1098, %s1098
            %s1110 = sphi %s1100, %s1100
          $region655: #{tpu_custom_call.1} parent=651 // loop_header_branch
            %1107 = sbr.rel (%p1105) target = $region659
          $region656: #{tpu_custom_call.1} parent=651 // loop_body
            %v1111 = vld [vmem:[%s1109] sm:%s1102]
            %1112 = vst [vmem:[%s1110] sm:%s1102] %v1111
          $region657: #{tpu_custom_call.1} parent=651 // loop_footer
            %s1108 = sadd.s32 1, %s1104
          $region658: #{tpu_custom_call.1} parent=651 // loop_footer_branch
            %1103 = sbr.rel target = $region654
          $region659: #{tpu_custom_call.1} parent=651 // loop_exit
            _
        $region652: #{tpu_custom_call.1} parent=636 // pred_fallthru
          _
      $region637: #{tpu_custom_call.1} parent=512 // pred_fallthru
        _
      // Predicated region
      $region638: #{tpu_custom_call.1} parent=512 // pred_check
        %p1076 = pneg %p1072
      $region639: #{tpu_custom_call.1} parent=512 // pred_check_branch
        %1078 = sbr.rel (%p1076) target = $region641
      $region640: #{tpu_custom_call.1} parent=512 // pred_region
        %s1079 = sshll.u32 1, 1
        %s1080 = ssub.s32 %s1079, 1
        loop: start=0, step=1, limit=1
        $region642: #{tpu_custom_call.1} parent=640 // loop_pre_header
          _
        $region643: #{tpu_custom_call.1} parent=640 // loop_header
          %s1082 = sphi 0, %s1086
          %p1083 = scmp.ge.s32.totalorder %s1082, 1
          %s1087 = sphi %s1069, %s1069
          %s1088 = sphi %s1070, %s1070
        $region644: #{tpu_custom_call.1} parent=640 // loop_header_branch
          %1085 = sbr.rel (%p1083) target = $region648
        $region645: #{tpu_custom_call.1} parent=640 // loop_body
          %v1089 = vld [vmem:[%s1087] sm:%s1080]
          %1090 = vst [vmem:[%s1088] sm:%s1080] %v1089
        $region646: #{tpu_custom_call.1} parent=640 // loop_footer
          %s1086 = sadd.s32 1, %s1082
        $region647: #{tpu_custom_call.1} parent=640 // loop_footer_branch
          %1081 = sbr.rel target = $region643
        $region648: #{tpu_custom_call.1} parent=640 // loop_exit
          _
      $region641: #{tpu_custom_call.1} parent=512 // pred_fallthru
        _
      // Predicated region
      $region660: #{tpu_custom_call.1} parent=512 // pred_check
        _
      $region661: #{tpu_custom_call.1} parent=512 // pred_check_branch
        %1115 = sbr.rel (0) target = $region663
      $region662: #{tpu_custom_call.1} parent=512 // pred_region
        %1116 = vsyncadd %s868, 16
      $region663: #{tpu_custom_call.1} parent=512 // pred_fallthru
        _
      %s1117 = scalar_lea.vmem %s3, %s1067
      %s1118 = scalar_lea.vmem [#allocation3], %s1068
      %p1120 = scmp.lt.u32.totalorder 1, 8
      %p1121 = pneg %p1120
      // Predicated region
      $region664: #{tpu_custom_call.1} parent=512 // pred_check
        _
      $region665: #{tpu_custom_call.1} parent=512 // pred_check_branch
        %1123 = sbr.rel (%p1120) target = $region667
      $region666: #{tpu_custom_call.1} parent=512 // pred_region
        %s1139 = sand.u32 1, 7
        %p1140 = scmp.eq.s32.totalorder %s1139, 0
        %p1141 = pneg %p1140
        // Predicated region
        $region679: #{tpu_custom_call.1} parent=666 // pred_check
          _
        $region680: #{tpu_custom_call.1} parent=666 // pred_check_branch
          %1143 = sbr.rel (%p1140) target = $region682
        $region681: #{tpu_custom_call.1} parent=666 // pred_region
          %s1144 = sand.u32 1, 7
          %s1145 = ssub.s32 1, %s1144
          %s1146 = scalar_lea.vmem %s1117, %s1145
          %s1147 = ssub.s32 1, %s1144
          %s1148 = scalar_lea.vmem %s1118, %s1147 [#allocation3]
          %s1149 = sshll.u32 1, %s1144
          %s1150 = ssub.s32 %s1149, 1
          loop: start=0, step=1, limit=1
          $region683: #{tpu_custom_call.1} parent=681 // loop_pre_header
            _
          $region684: #{tpu_custom_call.1} parent=681 // loop_header
            %s1152 = sphi 0, %s1156
            %p1153 = scmp.ge.s32.totalorder %s1152, 1
            %s1157 = sphi %s1146, %s1146
            %s1158 = sphi %s1148, %s1148
          $region685: #{tpu_custom_call.1} parent=681 // loop_header_branch
            %1155 = sbr.rel (%p1153) target = $region689
          $region686: #{tpu_custom_call.1} parent=681 // loop_body
            %v1159 = vld [vmem:[%s1157] sm:%s1150]
            %1160 = vst [vmem:[%s1158] sm:%s1150] %v1159
          $region687: #{tpu_custom_call.1} parent=681 // loop_footer
            %s1156 = sadd.s32 1, %s1152
          $region688: #{tpu_custom_call.1} parent=681 // loop_footer_branch
            %1151 = sbr.rel target = $region684
          $region689: #{tpu_custom_call.1} parent=681 // loop_exit
            _
        $region682: #{tpu_custom_call.1} parent=666 // pred_fallthru
          _
      $region667: #{tpu_custom_call.1} parent=512 // pred_fallthru
        _
      // Predicated region
      $region668: #{tpu_custom_call.1} parent=512 // pred_check
        %p1124 = pneg %p1120
      $region669: #{tpu_custom_call.1} parent=512 // pred_check_branch
        %1126 = sbr.rel (%p1124) target = $region671
      $region670: #{tpu_custom_call.1} parent=512 // pred_region
        %s1127 = sshll.u32 1, 1
        %s1128 = ssub.s32 %s1127, 1
        loop: start=0, step=1, limit=1
        $region672: #{tpu_custom_call.1} parent=670 // loop_pre_header
          _
        $region673: #{tpu_custom_call.1} parent=670 // loop_header
          %s1130 = sphi 0, %s1134
          %p1131 = scmp.ge.s32.totalorder %s1130, 1
          %s1135 = sphi %s1117, %s1117
          %s1136 = sphi %s1118, %s1118
        $region674: #{tpu_custom_call.1} parent=670 // loop_header_branch
          %1133 = sbr.rel (%p1131) target = $region678
        $region675: #{tpu_custom_call.1} parent=670 // loop_body
          %v1137 = vld [vmem:[%s1135] sm:%s1128]
          %1138 = vst [vmem:[%s1136] sm:%s1128] %v1137
        $region676: #{tpu_custom_call.1} parent=670 // loop_footer
          %s1134 = sadd.s32 1, %s1130
        $region677: #{tpu_custom_call.1} parent=670 // loop_footer_branch
          %1129 = sbr.rel target = $region673
        $region678: #{tpu_custom_call.1} parent=670 // loop_exit
          _
      $region671: #{tpu_custom_call.1} parent=512 // pred_fallthru
        _
      // Predicated region
      $region690: #{tpu_custom_call.1} parent=512 // pred_check
        _
      $region691: #{tpu_custom_call.1} parent=512 // pred_check_branch
        %1163 = sbr.rel (0) target = $region693
      $region692: #{tpu_custom_call.1} parent=512 // pred_region
        %1164 = vsyncadd %s918, 16
      $region693: #{tpu_custom_call.1} parent=512 // pred_fallthru
        _
      %s1165 = sadd.s32 %s861, 3
      %s1166 = sld [smem:[#allocation6 + %s1165]]
      %s1167 = sld [smem:[#allocation7 + %s1165]]
      %s1168 = sadd.s32 %s862, 3
      %s1169 = scalar_lea.vmem %s2, %s1166
      %s1170 = scalar_lea.vmem [#allocation2], %s1168
      %p1172 = scmp.lt.u32.totalorder 1, 8
      %p1173 = pneg %p1172
      // Predicated region
      $region694: #{tpu_custom_call.1} parent=512 // pred_check
        _
      $region695: #{tpu_custom_call.1} parent=512 // pred_check_branch
        %1175 = sbr.rel (%p1172) target = $region697
      $region696: #{tpu_custom_call.1} parent=512 // pred_region
        %s1191 = sand.u32 1, 7
        %p1192 = scmp.eq.s32.totalorder %s1191, 0
        %p1193 = pneg %p1192
        // Predicated region
        $region709: #{tpu_custom_call.1} parent=696 // pred_check
          _
        $region710: #{tpu_custom_call.1} parent=696 // pred_check_branch
          %1195 = sbr.rel (%p1192) target = $region712
        $region711: #{tpu_custom_call.1} parent=696 // pred_region
          %s1196 = sand.u32 1, 7
          %s1197 = ssub.s32 1, %s1196
          %s1198 = scalar_lea.vmem %s1169, %s1197
          %s1199 = ssub.s32 1, %s1196
          %s1200 = scalar_lea.vmem %s1170, %s1199 [#allocation2]
          %s1201 = sshll.u32 1, %s1196
          %s1202 = ssub.s32 %s1201, 1
          loop: start=0, step=1, limit=1
          $region713: #{tpu_custom_call.1} parent=711 // loop_pre_header
            _
          $region714: #{tpu_custom_call.1} parent=711 // loop_header
            %s1204 = sphi 0, %s1208
            %p1205 = scmp.ge.s32.totalorder %s1204, 1
            %s1209 = sphi %s1198, %s1198
            %s1210 = sphi %s1200, %s1200
          $region715: #{tpu_custom_call.1} parent=711 // loop_header_branch
            %1207 = sbr.rel (%p1205) target = $region719
          $region716: #{tpu_custom_call.1} parent=711 // loop_body
            %v1211 = vld [vmem:[%s1209] sm:%s1202]
            %1212 = vst [vmem:[%s1210] sm:%s1202] %v1211
          $region717: #{tpu_custom_call.1} parent=711 // loop_footer
            %s1208 = sadd.s32 1, %s1204
          $region718: #{tpu_custom_call.1} parent=711 // loop_footer_branch
            %1203 = sbr.rel target = $region714
          $region719: #{tpu_custom_call.1} parent=711 // loop_exit
            _
        $region712: #{tpu_custom_call.1} parent=696 // pred_fallthru
          _
      $region697: #{tpu_custom_call.1} parent=512 // pred_fallthru
        _
      // Predicated region
      $region698: #{tpu_custom_call.1} parent=512 // pred_check
        %p1176 = pneg %p1172
      $region699: #{tpu_custom_call.1} parent=512 // pred_check_branch
        %1178 = sbr.rel (%p1176) target = $region701
      $region700: #{tpu_custom_call.1} parent=512 // pred_region
        %s1179 = sshll.u32 1, 1
        %s1180 = ssub.s32 %s1179, 1
        loop: start=0, step=1, limit=1
        $region702: #{tpu_custom_call.1} parent=700 // loop_pre_header
          _
        $region703: #{tpu_custom_call.1} parent=700 // loop_header
          %s1182 = sphi 0, %s1186
          %p1183 = scmp.ge.s32.totalorder %s1182, 1
          %s1187 = sphi %s1169, %s1169
          %s1188 = sphi %s1170, %s1170
        $region704: #{tpu_custom_call.1} parent=700 // loop_header_branch
          %1185 = sbr.rel (%p1183) target = $region708
        $region705: #{tpu_custom_call.1} parent=700 // loop_body
          %v1189 = vld [vmem:[%s1187] sm:%s1180]
          %1190 = vst [vmem:[%s1188] sm:%s1180] %v1189
        $region706: #{tpu_custom_call.1} parent=700 // loop_footer
          %s1186 = sadd.s32 1, %s1182
        $region707: #{tpu_custom_call.1} parent=700 // loop_footer_branch
          %1181 = sbr.rel target = $region703
        $region708: #{tpu_custom_call.1} parent=700 // loop_exit
          _
      $region701: #{tpu_custom_call.1} parent=512 // pred_fallthru
        _
      // Predicated region
      $region720: #{tpu_custom_call.1} parent=512 // pred_check
        _
      $region721: #{tpu_custom_call.1} parent=512 // pred_check_branch
        %1215 = sbr.rel (0) target = $region723
      $region722: #{tpu_custom_call.1} parent=512 // pred_region
        %1216 = vsyncadd %s868, 16
      $region723: #{tpu_custom_call.1} parent=512 // pred_fallthru
        _
      %s1217 = scalar_lea.vmem %s3, %s1167
      %s1218 = scalar_lea.vmem [#allocation3], %s1168
      %p1220 = scmp.lt.u32.totalorder 1, 8
      %p1221 = pneg %p1220
      // Predicated region
      $region724: #{tpu_custom_call.1} parent=512 // pred_check
        _
      $region725: #{tpu_custom_call.1} parent=512 // pred_check_branch
        %1223 = sbr.rel (%p1220) target = $region727
      $region726: #{tpu_custom_call.1} parent=512 // pred_region
        %s1239 = sand.u32 1, 7
        %p1240 = scmp.eq.s32.totalorder %s1239, 0
        %p1241 = pneg %p1240
        // Predicated region
        $region739: #{tpu_custom_call.1} parent=726 // pred_check
          _
        $region740: #{tpu_custom_call.1} parent=726 // pred_check_branch
          %1243 = sbr.rel (%p1240) target = $region742
        $region741: #{tpu_custom_call.1} parent=726 // pred_region
          %s1244 = sand.u32 1, 7
          %s1245 = ssub.s32 1, %s1244
          %s1246 = scalar_lea.vmem %s1217, %s1245
          %s1247 = ssub.s32 1, %s1244
          %s1248 = scalar_lea.vmem %s1218, %s1247 [#allocation3]
          %s1249 = sshll.u32 1, %s1244
          %s1250 = ssub.s32 %s1249, 1
          loop: start=0, step=1, limit=1
          $region743: #{tpu_custom_call.1} parent=741 // loop_pre_header
            _
          $region744: #{tpu_custom_call.1} parent=741 // loop_header
            %s1252 = sphi 0, %s1256
            %p1253 = scmp.ge.s32.totalorder %s1252, 1
            %s1257 = sphi %s1246, %s1246
            %s1258 = sphi %s1248, %s1248
          $region745: #{tpu_custom_call.1} parent=741 // loop_header_branch
            %1255 = sbr.rel (%p1253) target = $region749
          $region746: #{tpu_custom_call.1} parent=741 // loop_body
            %v1259 = vld [vmem:[%s1257] sm:%s1250]
            %1260 = vst [vmem:[%s1258] sm:%s1250] %v1259
          $region747: #{tpu_custom_call.1} parent=741 // loop_footer
            %s1256 = sadd.s32 1, %s1252
          $region748: #{tpu_custom_call.1} parent=741 // loop_footer_branch
            %1251 = sbr.rel target = $region744
          $region749: #{tpu_custom_call.1} parent=741 // loop_exit
            _
        $region742: #{tpu_custom_call.1} parent=726 // pred_fallthru
          _
      $region727: #{tpu_custom_call.1} parent=512 // pred_fallthru
        _
      // Predicated region
      $region728: #{tpu_custom_call.1} parent=512 // pred_check
        %p1224 = pneg %p1220
      $region729: #{tpu_custom_call.1} parent=512 // pred_check_branch
        %1226 = sbr.rel (%p1224) target = $region731
      $region730: #{tpu_custom_call.1} parent=512 // pred_region
        %s1227 = sshll.u32 1, 1
        %s1228 = ssub.s32 %s1227, 1
        loop: start=0, step=1, limit=1
        $region732: #{tpu_custom_call.1} parent=730 // loop_pre_header
          _
        $region733: #{tpu_custom_call.1} parent=730 // loop_header
          %s1230 = sphi 0, %s1234
          %p1231 = scmp.ge.s32.totalorder %s1230, 1
          %s1235 = sphi %s1217, %s1217
          %s1236 = sphi %s1218, %s1218
        $region734: #{tpu_custom_call.1} parent=730 // loop_header_branch
          %1233 = sbr.rel (%p1231) target = $region738
        $region735: #{tpu_custom_call.1} parent=730 // loop_body
          %v1237 = vld [vmem:[%s1235] sm:%s1228]
          %1238 = vst [vmem:[%s1236] sm:%s1228] %v1237
        $region736: #{tpu_custom_call.1} parent=730 // loop_footer
          %s1234 = sadd.s32 1, %s1230
        $region737: #{tpu_custom_call.1} parent=730 // loop_footer_branch
          %1229 = sbr.rel target = $region733
        $region738: #{tpu_custom_call.1} parent=730 // loop_exit
          _
      $region731: #{tpu_custom_call.1} parent=512 // pred_fallthru
        _
      // Predicated region
      $region750: #{tpu_custom_call.1} parent=512 // pred_check
        _
      $region751: #{tpu_custom_call.1} parent=512 // pred_check_branch
        %1263 = sbr.rel (0) target = $region753
      $region752: #{tpu_custom_call.1} parent=512 // pred_region
        %1264 = vsyncadd %s918, 16
      $region753: #{tpu_custom_call.1} parent=512 // pred_fallthru
        _
      %s1265 = sadd.s32 %s861, 4
      %s1266 = sld [smem:[#allocation6 + %s1265]]
      %s1267 = sld [smem:[#allocation7 + %s1265]]
      %s1268 = sadd.s32 %s862, 4
      %s1269 = scalar_lea.vmem %s2, %s1266
      %s1270 = scalar_lea.vmem [#allocation2], %s1268
      %p1272 = scmp.lt.u32.totalorder 1, 8
      %p1273 = pneg %p1272
      // Predicated region
      $region754: #{tpu_custom_call.1} parent=512 // pred_check
        _
      $region755: #{tpu_custom_call.1} parent=512 // pred_check_branch
        %1275 = sbr.rel (%p1272) target = $region757
      $region756: #{tpu_custom_call.1} parent=512 // pred_region
        %s1291 = sand.u32 1, 7
        %p1292 = scmp.eq.s32.totalorder %s1291, 0
        %p1293 = pneg %p1292
        // Predicated region
        $region769: #{tpu_custom_call.1} parent=756 // pred_check
          _
        $region770: #{tpu_custom_call.1} parent=756 // pred_check_branch
          %1295 = sbr.rel (%p1292) target = $region772
        $region771: #{tpu_custom_call.1} parent=756 // pred_region
          %s1296 = sand.u32 1, 7
          %s1297 = ssub.s32 1, %s1296
          %s1298 = scalar_lea.vmem %s1269, %s1297
          %s1299 = ssub.s32 1, %s1296
          %s1300 = scalar_lea.vmem %s1270, %s1299 [#allocation2]
          %s1301 = sshll.u32 1, %s1296
          %s1302 = ssub.s32 %s1301, 1
          loop: start=0, step=1, limit=1
          $region773: #{tpu_custom_call.1} parent=771 // loop_pre_header
            _
          $region774: #{tpu_custom_call.1} parent=771 // loop_header
            %s1304 = sphi 0, %s1308
            %p1305 = scmp.ge.s32.totalorder %s1304, 1
            %s1309 = sphi %s1298, %s1298
            %s1310 = sphi %s1300, %s1300
          $region775: #{tpu_custom_call.1} parent=771 // loop_header_branch
            %1307 = sbr.rel (%p1305) target = $region779
          $region776: #{tpu_custom_call.1} parent=771 // loop_body
            %v1311 = vld [vmem:[%s1309] sm:%s1302]
            %1312 = vst [vmem:[%s1310] sm:%s1302] %v1311
          $region777: #{tpu_custom_call.1} parent=771 // loop_footer
            %s1308 = sadd.s32 1, %s1304
          $region778: #{tpu_custom_call.1} parent=771 // loop_footer_branch
            %1303 = sbr.rel target = $region774
          $region779: #{tpu_custom_call.1} parent=771 // loop_exit
            _
        $region772: #{tpu_custom_call.1} parent=756 // pred_fallthru
          _
      $region757: #{tpu_custom_call.1} parent=512 // pred_fallthru
        _
      // Predicated region
      $region758: #{tpu_custom_call.1} parent=512 // pred_check
        %p1276 = pneg %p1272
      $region759: #{tpu_custom_call.1} parent=512 // pred_check_branch
        %1278 = sbr.rel (%p1276) target = $region761
      $region760: #{tpu_custom_call.1} parent=512 // pred_region
        %s1279 = sshll.u32 1, 1
        %s1280 = ssub.s32 %s1279, 1
        loop: start=0, step=1, limit=1
        $region762: #{tpu_custom_call.1} parent=760 // loop_pre_header
          _
        $region763: #{tpu_custom_call.1} parent=760 // loop_header
          %s1282 = sphi 0, %s1286
          %p1283 = scmp.ge.s32.totalorder %s1282, 1
          %s1287 = sphi %s1269, %s1269
          %s1288 = sphi %s1270, %s1270
        $region764: #{tpu_custom_call.1} parent=760 // loop_header_branch
          %1285 = sbr.rel (%p1283) target = $region768
        $region765: #{tpu_custom_call.1} parent=760 // loop_body
          %v1289 = vld [vmem:[%s1287] sm:%s1280]
          %1290 = vst [vmem:[%s1288] sm:%s1280] %v1289
        $region766: #{tpu_custom_call.1} parent=760 // loop_footer
          %s1286 = sadd.s32 1, %s1282
        $region767: #{tpu_custom_call.1} parent=760 // loop_footer_branch
          %1281 = sbr.rel target = $region763
        $region768: #{tpu_custom_call.1} parent=760 // loop_exit
          _
      $region761: #{tpu_custom_call.1} parent=512 // pred_fallthru
        _
      // Predicated region
      $region780: #{tpu_custom_call.1} parent=512 // pred_check
        _
      $region781: #{tpu_custom_call.1} parent=512 // pred_check_branch
        %1315 = sbr.rel (0) target = $region783
      $region782: #{tpu_custom_call.1} parent=512 // pred_region
        %1316 = vsyncadd %s868, 16
      $region783: #{tpu_custom_call.1} parent=512 // pred_fallthru
        _
      %s1317 = scalar_lea.vmem %s3, %s1267
      %s1318 = scalar_lea.vmem [#allocation3], %s1268
      %p1320 = scmp.lt.u32.totalorder 1, 8
      %p1321 = pneg %p1320
      // Predicated region
      $region784: #{tpu_custom_call.1} parent=512 // pred_check
        _
      $region785: #{tpu_custom_call.1} parent=512 // pred_check_branch
        %1323 = sbr.rel (%p1320) target = $region787
      $region786: #{tpu_custom_call.1} parent=512 // pred_region
        %s1339 = sand.u32 1, 7
        %p1340 = scmp.eq.s32.totalorder %s1339, 0
        %p1341 = pneg %p1340
        // Predicated region
        $region799: #{tpu_custom_call.1} parent=786 // pred_check
          _
        $region800: #{tpu_custom_call.1} parent=786 // pred_check_branch
          %1343 = sbr.rel (%p1340) target = $region802
        $region801: #{tpu_custom_call.1} parent=786 // pred_region
          %s1344 = sand.u32 1, 7
          %s1345 = ssub.s32 1, %s1344
          %s1346 = scalar_lea.vmem %s1317, %s1345
          %s1347 = ssub.s32 1, %s1344
          %s1348 = scalar_lea.vmem %s1318, %s1347 [#allocation3]
          %s1349 = sshll.u32 1, %s1344
          %s1350 = ssub.s32 %s1349, 1
          loop: start=0, step=1, limit=1
          $region803: #{tpu_custom_call.1} parent=801 // loop_pre_header
            _
          $region804: #{tpu_custom_call.1} parent=801 // loop_header
            %s1352 = sphi 0, %s1356
            %p1353 = scmp.ge.s32.totalorder %s1352, 1
            %s1357 = sphi %s1346, %s1346
            %s1358 = sphi %s1348, %s1348
          $region805: #{tpu_custom_call.1} parent=801 // loop_header_branch
            %1355 = sbr.rel (%p1353) target = $region809
          $region806: #{tpu_custom_call.1} parent=801 // loop_body
            %v1359 = vld [vmem:[%s1357] sm:%s1350]
            %1360 = vst [vmem:[%s1358] sm:%s1350] %v1359
          $region807: #{tpu_custom_call.1} parent=801 // loop_footer
            %s1356 = sadd.s32 1, %s1352
          $region808: #{tpu_custom_call.1} parent=801 // loop_footer_branch
            %1351 = sbr.rel target = $region804
          $region809: #{tpu_custom_call.1} parent=801 // loop_exit
            _
        $region802: #{tpu_custom_call.1} parent=786 // pred_fallthru
          _
      $region787: #{tpu_custom_call.1} parent=512 // pred_fallthru
        _
      // Predicated region
      $region788: #{tpu_custom_call.1} parent=512 // pred_check
        %p1324 = pneg %p1320
      $region789: #{tpu_custom_call.1} parent=512 // pred_check_branch
        %1326 = sbr.rel (%p1324) target = $region791
      $region790: #{tpu_custom_call.1} parent=512 // pred_region
        %s1327 = sshll.u32 1, 1
        %s1328 = ssub.s32 %s1327, 1
        loop: start=0, step=1, limit=1
        $region792: #{tpu_custom_call.1} parent=790 // loop_pre_header
          _
        $region793: #{tpu_custom_call.1} parent=790 // loop_header
          %s1330 = sphi 0, %s1334
          %p1331 = scmp.ge.s32.totalorder %s1330, 1
          %s1335 = sphi %s1317, %s1317
          %s1336 = sphi %s1318, %s1318
        $region794: #{tpu_custom_call.1} parent=790 // loop_header_branch
          %1333 = sbr.rel (%p1331) target = $region798
        $region795: #{tpu_custom_call.1} parent=790 // loop_body
          %v1337 = vld [vmem:[%s1335] sm:%s1328]
          %1338 = vst [vmem:[%s1336] sm:%s1328] %v1337
        $region796: #{tpu_custom_call.1} parent=790 // loop_footer
          %s1334 = sadd.s32 1, %s1330
        $region797: #{tpu_custom_call.1} parent=790 // loop_footer_branch
          %1329 = sbr.rel target = $region793
        $region798: #{tpu_custom_call.1} parent=790 // loop_exit
          _
      $region791: #{tpu_custom_call.1} parent=512 // pred_fallthru
        _
      // Predicated region
      $region810: #{tpu_custom_call.1} parent=512 // pred_check
        _
      $region811: #{tpu_custom_call.1} parent=512 // pred_check_branch
        %1363 = sbr.rel (0) target = $region813
      $region812: #{tpu_custom_call.1} parent=512 // pred_region
        %1364 = vsyncadd %s918, 16
      $region813: #{tpu_custom_call.1} parent=512 // pred_fallthru
        _
      %s1365 = sadd.s32 %s861, 5
      %s1366 = sld [smem:[#allocation6 + %s1365]]
      %s1367 = sld [smem:[#allocation7 + %s1365]]
      %s1368 = sadd.s32 %s862, 5
      %s1369 = scalar_lea.vmem %s2, %s1366
      %s1370 = scalar_lea.vmem [#allocation2], %s1368
      %p1372 = scmp.lt.u32.totalorder 1, 8
      %p1373 = pneg %p1372
      // Predicated region
      $region814: #{tpu_custom_call.1} parent=512 // pred_check
        _
      $region815: #{tpu_custom_call.1} parent=512 // pred_check_branch
        %1375 = sbr.rel (%p1372) target = $region817
      $region816: #{tpu_custom_call.1} parent=512 // pred_region
        %s1391 = sand.u32 1, 7
        %p1392 = scmp.eq.s32.totalorder %s1391, 0
        %p1393 = pneg %p1392
        // Predicated region
        $region829: #{tpu_custom_call.1} parent=816 // pred_check
          _
        $region830: #{tpu_custom_call.1} parent=816 // pred_check_branch
          %1395 = sbr.rel (%p1392) target = $region832
        $region831: #{tpu_custom_call.1} parent=816 // pred_region
          %s1396 = sand.u32 1, 7
          %s1397 = ssub.s32 1, %s1396
          %s1398 = scalar_lea.vmem %s1369, %s1397
          %s1399 = ssub.s32 1, %s1396
          %s1400 = scalar_lea.vmem %s1370, %s1399 [#allocation2]
          %s1401 = sshll.u32 1, %s1396
          %s1402 = ssub.s32 %s1401, 1
          loop: start=0, step=1, limit=1
          $region833: #{tpu_custom_call.1} parent=831 // loop_pre_header
            _
          $region834: #{tpu_custom_call.1} parent=831 // loop_header
            %s1404 = sphi 0, %s1408
            %p1405 = scmp.ge.s32.totalorder %s1404, 1
            %s1409 = sphi %s1398, %s1398
            %s1410 = sphi %s1400, %s1400
          $region835: #{tpu_custom_call.1} parent=831 // loop_header_branch
            %1407 = sbr.rel (%p1405) target = $region839
          $region836: #{tpu_custom_call.1} parent=831 // loop_body
            %v1411 = vld [vmem:[%s1409] sm:%s1402]
            %1412 = vst [vmem:[%s1410] sm:%s1402] %v1411
          $region837: #{tpu_custom_call.1} parent=831 // loop_footer
            %s1408 = sadd.s32 1, %s1404
          $region838: #{tpu_custom_call.1} parent=831 // loop_footer_branch
            %1403 = sbr.rel target = $region834
          $region839: #{tpu_custom_call.1} parent=831 // loop_exit
            _
        $region832: #{tpu_custom_call.1} parent=816 // pred_fallthru
          _
      $region817: #{tpu_custom_call.1} parent=512 // pred_fallthru
        _
      // Predicated region
      $region818: #{tpu_custom_call.1} parent=512 // pred_check
        %p1376 = pneg %p1372
      $region819: #{tpu_custom_call.1} parent=512 // pred_check_branch
        %1378 = sbr.rel (%p1376) target = $region821
      $region820: #{tpu_custom_call.1} parent=512 // pred_region
        %s1379 = sshll.u32 1, 1
        %s1380 = ssub.s32 %s1379, 1
        loop: start=0, step=1, limit=1
        $region822: #{tpu_custom_call.1} parent=820 // loop_pre_header
          _
        $region823: #{tpu_custom_call.1} parent=820 // loop_header
          %s1382 = sphi 0, %s1386
          %p1383 = scmp.ge.s32.totalorder %s1382, 1
          %s1387 = sphi %s1369, %s1369
          %s1388 = sphi %s1370, %s1370
        $region824: #{tpu_custom_call.1} parent=820 // loop_header_branch
          %1385 = sbr.rel (%p1383) target = $region828
        $region825: #{tpu_custom_call.1} parent=820 // loop_body
          %v1389 = vld [vmem:[%s1387] sm:%s1380]
          %1390 = vst [vmem:[%s1388] sm:%s1380] %v1389
        $region826: #{tpu_custom_call.1} parent=820 // loop_footer
          %s1386 = sadd.s32 1, %s1382
        $region827: #{tpu_custom_call.1} parent=820 // loop_footer_branch
          %1381 = sbr.rel target = $region823
        $region828: #{tpu_custom_call.1} parent=820 // loop_exit
          _
      $region821: #{tpu_custom_call.1} parent=512 // pred_fallthru
        _
      // Predicated region
      $region840: #{tpu_custom_call.1} parent=512 // pred_check
        _
      $region841: #{tpu_custom_call.1} parent=512 // pred_check_branch
        %1415 = sbr.rel (0) target = $region843
      $region842: #{tpu_custom_call.1} parent=512 // pred_region
        %1416 = vsyncadd %s868, 16
      $region843: #{tpu_custom_call.1} parent=512 // pred_fallthru
        _
      %s1417 = scalar_lea.vmem %s3, %s1367
      %s1418 = scalar_lea.vmem [#allocation3], %s1368
      %p1420 = scmp.lt.u32.totalorder 1, 8
      %p1421 = pneg %p1420
      // Predicated region
      $region844: #{tpu_custom_call.1} parent=512 // pred_check
        _
      $region845: #{tpu_custom_call.1} parent=512 // pred_check_branch
        %1423 = sbr.rel (%p1420) target = $region847
      $region846: #{tpu_custom_call.1} parent=512 // pred_region
        %s1439 = sand.u32 1, 7
        %p1440 = scmp.eq.s32.totalorder %s1439, 0
        %p1441 = pneg %p1440
        // Predicated region
        $region859: #{tpu_custom_call.1} parent=846 // pred_check
          _
        $region860: #{tpu_custom_call.1} parent=846 // pred_check_branch
          %1443 = sbr.rel (%p1440) target = $region862
        $region861: #{tpu_custom_call.1} parent=846 // pred_region
          %s1444 = sand.u32 1, 7
          %s1445 = ssub.s32 1, %s1444
          %s1446 = scalar_lea.vmem %s1417, %s1445
          %s1447 = ssub.s32 1, %s1444
          %s1448 = scalar_lea.vmem %s1418, %s1447 [#allocation3]
          %s1449 = sshll.u32 1, %s1444
          %s1450 = ssub.s32 %s1449, 1
          loop: start=0, step=1, limit=1
          $region863: #{tpu_custom_call.1} parent=861 // loop_pre_header
            _
          $region864: #{tpu_custom_call.1} parent=861 // loop_header
            %s1452 = sphi 0, %s1456
            %p1453 = scmp.ge.s32.totalorder %s1452, 1
            %s1457 = sphi %s1446, %s1446
            %s1458 = sphi %s1448, %s1448
          $region865: #{tpu_custom_call.1} parent=861 // loop_header_branch
            %1455 = sbr.rel (%p1453) target = $region869
          $region866: #{tpu_custom_call.1} parent=861 // loop_body
            %v1459 = vld [vmem:[%s1457] sm:%s1450]
            %1460 = vst [vmem:[%s1458] sm:%s1450] %v1459
          $region867: #{tpu_custom_call.1} parent=861 // loop_footer
            %s1456 = sadd.s32 1, %s1452
          $region868: #{tpu_custom_call.1} parent=861 // loop_footer_branch
            %1451 = sbr.rel target = $region864
          $region869: #{tpu_custom_call.1} parent=861 // loop_exit
            _
        $region862: #{tpu_custom_call.1} parent=846 // pred_fallthru
          _
      $region847: #{tpu_custom_call.1} parent=512 // pred_fallthru
        _
      // Predicated region
      $region848: #{tpu_custom_call.1} parent=512 // pred_check
        %p1424 = pneg %p1420
      $region849: #{tpu_custom_call.1} parent=512 // pred_check_branch
        %1426 = sbr.rel (%p1424) target = $region851
      $region850: #{tpu_custom_call.1} parent=512 // pred_region
        %s1427 = sshll.u32 1, 1
        %s1428 = ssub.s32 %s1427, 1
        loop: start=0, step=1, limit=1
        $region852: #{tpu_custom_call.1} parent=850 // loop_pre_header
          _
        $region853: #{tpu_custom_call.1} parent=850 // loop_header
          %s1430 = sphi 0, %s1434
          %p1431 = scmp.ge.s32.totalorder %s1430, 1
          %s1435 = sphi %s1417, %s1417
          %s1436 = sphi %s1418, %s1418
        $region854: #{tpu_custom_call.1} parent=850 // loop_header_branch
          %1433 = sbr.rel (%p1431) target = $region858
        $region855: #{tpu_custom_call.1} parent=850 // loop_body
          %v1437 = vld [vmem:[%s1435] sm:%s1428]
          %1438 = vst [vmem:[%s1436] sm:%s1428] %v1437
        $region856: #{tpu_custom_call.1} parent=850 // loop_footer
          %s1434 = sadd.s32 1, %s1430
        $region857: #{tpu_custom_call.1} parent=850 // loop_footer_branch
          %1429 = sbr.rel target = $region853
        $region858: #{tpu_custom_call.1} parent=850 // loop_exit
          _
      $region851: #{tpu_custom_call.1} parent=512 // pred_fallthru
        _
      // Predicated region
      $region870: #{tpu_custom_call.1} parent=512 // pred_check
        _
      $region871: #{tpu_custom_call.1} parent=512 // pred_check_branch
        %1463 = sbr.rel (0) target = $region873
      $region872: #{tpu_custom_call.1} parent=512 // pred_region
        %1464 = vsyncadd %s918, 16
      $region873: #{tpu_custom_call.1} parent=512 // pred_fallthru
        _
      %s1465 = sadd.s32 %s861, 6
      %s1466 = sld [smem:[#allocation6 + %s1465]]
      %s1467 = sld [smem:[#allocation7 + %s1465]]
      %s1468 = sadd.s32 %s862, 6
      %s1469 = scalar_lea.vmem %s2, %s1466
      %s1470 = scalar_lea.vmem [#allocation2], %s1468
      %p1472 = scmp.lt.u32.totalorder 1, 8
      %p1473 = pneg %p1472
      // Predicated region
      $region874: #{tpu_custom_call.1} parent=512 // pred_check
        _
      $region875: #{tpu_custom_call.1} parent=512 // pred_check_branch
        %1475 = sbr.rel (%p1472) target = $region877
      $region876: #{tpu_custom_call.1} parent=512 // pred_region
        %s1491 = sand.u32 1, 7
        %p1492 = scmp.eq.s32.totalorder %s1491, 0
        %p1493 = pneg %p1492
        // Predicated region
        $region889: #{tpu_custom_call.1} parent=876 // pred_check
          _
        $region890: #{tpu_custom_call.1} parent=876 // pred_check_branch
          %1495 = sbr.rel (%p1492) target = $region892
        $region891: #{tpu_custom_call.1} parent=876 // pred_region
          %s1496 = sand.u32 1, 7
          %s1497 = ssub.s32 1, %s1496
          %s1498 = scalar_lea.vmem %s1469, %s1497
          %s1499 = ssub.s32 1, %s1496
          %s1500 = scalar_lea.vmem %s1470, %s1499 [#allocation2]
          %s1501 = sshll.u32 1, %s1496
          %s1502 = ssub.s32 %s1501, 1
          loop: start=0, step=1, limit=1
          $region893: #{tpu_custom_call.1} parent=891 // loop_pre_header
            _
          $region894: #{tpu_custom_call.1} parent=891 // loop_header
            %s1504 = sphi 0, %s1508
            %p1505 = scmp.ge.s32.totalorder %s1504, 1
            %s1509 = sphi %s1498, %s1498
            %s1510 = sphi %s1500, %s1500
          $region895: #{tpu_custom_call.1} parent=891 // loop_header_branch
            %1507 = sbr.rel (%p1505) target = $region899
          $region896: #{tpu_custom_call.1} parent=891 // loop_body
            %v1511 = vld [vmem:[%s1509] sm:%s1502]
            %1512 = vst [vmem:[%s1510] sm:%s1502] %v1511
          $region897: #{tpu_custom_call.1} parent=891 // loop_footer
            %s1508 = sadd.s32 1, %s1504
          $region898: #{tpu_custom_call.1} parent=891 // loop_footer_branch
            %1503 = sbr.rel target = $region894
          $region899: #{tpu_custom_call.1} parent=891 // loop_exit
            _
        $region892: #{tpu_custom_call.1} parent=876 // pred_fallthru
          _
      $region877: #{tpu_custom_call.1} parent=512 // pred_fallthru
        _
      // Predicated region
      $region878: #{tpu_custom_call.1} parent=512 // pred_check
        %p1476 = pneg %p1472
      $region879: #{tpu_custom_call.1} parent=512 // pred_check_branch
        %1478 = sbr.rel (%p1476) target = $region881
      $region880: #{tpu_custom_call.1} parent=512 // pred_region
        %s1479 = sshll.u32 1, 1
        %s1480 = ssub.s32 %s1479, 1
        loop: start=0, step=1, limit=1
        $region882: #{tpu_custom_call.1} parent=880 // loop_pre_header
          _
        $region883: #{tpu_custom_call.1} parent=880 // loop_header
          %s1482 = sphi 0, %s1486
          %p1483 = scmp.ge.s32.totalorder %s1482, 1
          %s1487 = sphi %s1469, %s1469
          %s1488 = sphi %s1470, %s1470
        $region884: #{tpu_custom_call.1} parent=880 // loop_header_branch
          %1485 = sbr.rel (%p1483) target = $region888
        $region885: #{tpu_custom_call.1} parent=880 // loop_body
          %v1489 = vld [vmem:[%s1487] sm:%s1480]
          %1490 = vst [vmem:[%s1488] sm:%s1480] %v1489
        $region886: #{tpu_custom_call.1} parent=880 // loop_footer
          %s1486 = sadd.s32 1, %s1482
        $region887: #{tpu_custom_call.1} parent=880 // loop_footer_branch
          %1481 = sbr.rel target = $region883
        $region888: #{tpu_custom_call.1} parent=880 // loop_exit
          _
      $region881: #{tpu_custom_call.1} parent=512 // pred_fallthru
        _
      // Predicated region
      $region900: #{tpu_custom_call.1} parent=512 // pred_check
        _
      $region901: #{tpu_custom_call.1} parent=512 // pred_check_branch
        %1515 = sbr.rel (0) target = $region903
      $region902: #{tpu_custom_call.1} parent=512 // pred_region
        %1516 = vsyncadd %s868, 16
      $region903: #{tpu_custom_call.1} parent=512 // pred_fallthru
        _
      %s1517 = scalar_lea.vmem %s3, %s1467
      %s1518 = scalar_lea.vmem [#allocation3], %s1468
      %p1520 = scmp.lt.u32.totalorder 1, 8
      %p1521 = pneg %p1520
      // Predicated region
      $region904: #{tpu_custom_call.1} parent=512 // pred_check
        _
      $region905: #{tpu_custom_call.1} parent=512 // pred_check_branch
        %1523 = sbr.rel (%p1520) target = $region907
      $region906: #{tpu_custom_call.1} parent=512 // pred_region
        %s1539 = sand.u32 1, 7
        %p1540 = scmp.eq.s32.totalorder %s1539, 0
        %p1541 = pneg %p1540
        // Predicated region
        $region919: #{tpu_custom_call.1} parent=906 // pred_check
          _
        $region920: #{tpu_custom_call.1} parent=906 // pred_check_branch
          %1543 = sbr.rel (%p1540) target = $region922
        $region921: #{tpu_custom_call.1} parent=906 // pred_region
          %s1544 = sand.u32 1, 7
          %s1545 = ssub.s32 1, %s1544
          %s1546 = scalar_lea.vmem %s1517, %s1545
          %s1547 = ssub.s32 1, %s1544
          %s1548 = scalar_lea.vmem %s1518, %s1547 [#allocation3]
          %s1549 = sshll.u32 1, %s1544
          %s1550 = ssub.s32 %s1549, 1
          loop: start=0, step=1, limit=1
          $region923: #{tpu_custom_call.1} parent=921 // loop_pre_header
            _
          $region924: #{tpu_custom_call.1} parent=921 // loop_header
            %s1552 = sphi 0, %s1556
            %p1553 = scmp.ge.s32.totalorder %s1552, 1
            %s1557 = sphi %s1546, %s1546
            %s1558 = sphi %s1548, %s1548
          $region925: #{tpu_custom_call.1} parent=921 // loop_header_branch
            %1555 = sbr.rel (%p1553) target = $region929
          $region926: #{tpu_custom_call.1} parent=921 // loop_body
            %v1559 = vld [vmem:[%s1557] sm:%s1550]
            %1560 = vst [vmem:[%s1558] sm:%s1550] %v1559
          $region927: #{tpu_custom_call.1} parent=921 // loop_footer
            %s1556 = sadd.s32 1, %s1552
          $region928: #{tpu_custom_call.1} parent=921 // loop_footer_branch
            %1551 = sbr.rel target = $region924
          $region929: #{tpu_custom_call.1} parent=921 // loop_exit
            _
        $region922: #{tpu_custom_call.1} parent=906 // pred_fallthru
          _
      $region907: #{tpu_custom_call.1} parent=512 // pred_fallthru
        _
      // Predicated region
      $region908: #{tpu_custom_call.1} parent=512 // pred_check
        %p1524 = pneg %p1520
      $region909: #{tpu_custom_call.1} parent=512 // pred_check_branch
        %1526 = sbr.rel (%p1524) target = $region911
      $region910: #{tpu_custom_call.1} parent=512 // pred_region
        %s1527 = sshll.u32 1, 1
        %s1528 = ssub.s32 %s1527, 1
        loop: start=0, step=1, limit=1
        $region912: #{tpu_custom_call.1} parent=910 // loop_pre_header
          _
        $region913: #{tpu_custom_call.1} parent=910 // loop_header
          %s1530 = sphi 0, %s1534
          %p1531 = scmp.ge.s32.totalorder %s1530, 1
          %s1535 = sphi %s1517, %s1517
          %s1536 = sphi %s1518, %s1518
        $region914: #{tpu_custom_call.1} parent=910 // loop_header_branch
          %1533 = sbr.rel (%p1531) target = $region918
        $region915: #{tpu_custom_call.1} parent=910 // loop_body
          %v1537 = vld [vmem:[%s1535] sm:%s1528]
          %1538 = vst [vmem:[%s1536] sm:%s1528] %v1537
        $region916: #{tpu_custom_call.1} parent=910 // loop_footer
          %s1534 = sadd.s32 1, %s1530
        $region917: #{tpu_custom_call.1} parent=910 // loop_footer_branch
          %1529 = sbr.rel target = $region913
        $region918: #{tpu_custom_call.1} parent=910 // loop_exit
          _
      $region911: #{tpu_custom_call.1} parent=512 // pred_fallthru
        _
      // Predicated region
      $region930: #{tpu_custom_call.1} parent=512 // pred_check
        _
      $region931: #{tpu_custom_call.1} parent=512 // pred_check_branch
        %1563 = sbr.rel (0) target = $region933
      $region932: #{tpu_custom_call.1} parent=512 // pred_region
        %1564 = vsyncadd %s918, 16
      $region933: #{tpu_custom_call.1} parent=512 // pred_fallthru
        _
      %s1565 = sadd.s32 %s861, 7
      %s1566 = sld [smem:[#allocation6 + %s1565]]
      %s1567 = sld [smem:[#allocation7 + %s1565]]
      %s1568 = sadd.s32 %s862, 7
      %s1569 = scalar_lea.vmem %s2, %s1566
      %s1570 = scalar_lea.vmem [#allocation2], %s1568
      %p1572 = scmp.lt.u32.totalorder 1, 8
      %p1573 = pneg %p1572
      // Predicated region
      $region934: #{tpu_custom_call.1} parent=512 // pred_check
        _
      $region935: #{tpu_custom_call.1} parent=512 // pred_check_branch
        %1575 = sbr.rel (%p1572) target = $region937
      $region936: #{tpu_custom_call.1} parent=512 // pred_region
        %s1591 = sand.u32 1, 7
        %p1592 = scmp.eq.s32.totalorder %s1591, 0
        %p1593 = pneg %p1592
        // Predicated region
        $region949: #{tpu_custom_call.1} parent=936 // pred_check
          _
        $region950: #{tpu_custom_call.1} parent=936 // pred_check_branch
          %1595 = sbr.rel (%p1592) target = $region952
        $region951: #{tpu_custom_call.1} parent=936 // pred_region
          %s1596 = sand.u32 1, 7
          %s1597 = ssub.s32 1, %s1596
          %s1598 = scalar_lea.vmem %s1569, %s1597
          %s1599 = ssub.s32 1, %s1596
          %s1600 = scalar_lea.vmem %s1570, %s1599 [#allocation2]
          %s1601 = sshll.u32 1, %s1596
          %s1602 = ssub.s32 %s1601, 1
          loop: start=0, step=1, limit=1
          $region953: #{tpu_custom_call.1} parent=951 // loop_pre_header
            _
          $region954: #{tpu_custom_call.1} parent=951 // loop_header
            %s1604 = sphi 0, %s1608
            %p1605 = scmp.ge.s32.totalorder %s1604, 1
            %s1609 = sphi %s1598, %s1598
            %s1610 = sphi %s1600, %s1600
          $region955: #{tpu_custom_call.1} parent=951 // loop_header_branch
            %1607 = sbr.rel (%p1605) target = $region959
          $region956: #{tpu_custom_call.1} parent=951 // loop_body
            %v1611 = vld [vmem:[%s1609] sm:%s1602]
            %1612 = vst [vmem:[%s1610] sm:%s1602] %v1611
          $region957: #{tpu_custom_call.1} parent=951 // loop_footer
            %s1608 = sadd.s32 1, %s1604
          $region958: #{tpu_custom_call.1} parent=951 // loop_footer_branch
            %1603 = sbr.rel target = $region954
          $region959: #{tpu_custom_call.1} parent=951 // loop_exit
            _
        $region952: #{tpu_custom_call.1} parent=936 // pred_fallthru
          _
      $region937: #{tpu_custom_call.1} parent=512 // pred_fallthru
        _
      // Predicated region
      $region938: #{tpu_custom_call.1} parent=512 // pred_check
        %p1576 = pneg %p1572
      $region939: #{tpu_custom_call.1} parent=512 // pred_check_branch
        %1578 = sbr.rel (%p1576) target = $region941
      $region940: #{tpu_custom_call.1} parent=512 // pred_region
        %s1579 = sshll.u32 1, 1
        %s1580 = ssub.s32 %s1579, 1
        loop: start=0, step=1, limit=1
        $region942: #{tpu_custom_call.1} parent=940 // loop_pre_header
          _
        $region943: #{tpu_custom_call.1} parent=940 // loop_header
          %s1582 = sphi 0, %s1586
          %p1583 = scmp.ge.s32.totalorder %s1582, 1
          %s1587 = sphi %s1569, %s1569
          %s1588 = sphi %s1570, %s1570
        $region944: #{tpu_custom_call.1} parent=940 // loop_header_branch
          %1585 = sbr.rel (%p1583) target = $region948
        $region945: #{tpu_custom_call.1} parent=940 // loop_body
          %v1589 = vld [vmem:[%s1587] sm:%s1580]
          %1590 = vst [vmem:[%s1588] sm:%s1580] %v1589
        $region946: #{tpu_custom_call.1} parent=940 // loop_footer
          %s1586 = sadd.s32 1, %s1582
        $region947: #{tpu_custom_call.1} parent=940 // loop_footer_branch
          %1581 = sbr.rel target = $region943
        $region948: #{tpu_custom_call.1} parent=940 // loop_exit
          _
      $region941: #{tpu_custom_call.1} parent=512 // pred_fallthru
        _
      // Predicated region
      $region960: #{tpu_custom_call.1} parent=512 // pred_check
        _
      $region961: #{tpu_custom_call.1} parent=512 // pred_check_branch
        %1615 = sbr.rel (0) target = $region963
      $region962: #{tpu_custom_call.1} parent=512 // pred_region
        %1616 = vsyncadd %s868, 16
      $region963: #{tpu_custom_call.1} parent=512 // pred_fallthru
        _
      %s1617 = scalar_lea.vmem %s3, %s1567
      %s1618 = scalar_lea.vmem [#allocation3], %s1568
      %p1620 = scmp.lt.u32.totalorder 1, 8
      %p1621 = pneg %p1620
      // Predicated region
      $region964: #{tpu_custom_call.1} parent=512 // pred_check
        _
      $region965: #{tpu_custom_call.1} parent=512 // pred_check_branch
        %1623 = sbr.rel (%p1620) target = $region967
      $region966: #{tpu_custom_call.1} parent=512 // pred_region
        %s1639 = sand.u32 1, 7
        %p1640 = scmp.eq.s32.totalorder %s1639, 0
        %p1641 = pneg %p1640
        // Predicated region
        $region979: #{tpu_custom_call.1} parent=966 // pred_check
          _
        $region980: #{tpu_custom_call.1} parent=966 // pred_check_branch
          %1643 = sbr.rel (%p1640) target = $region982
        $region981: #{tpu_custom_call.1} parent=966 // pred_region
          %s1644 = sand.u32 1, 7
          %s1645 = ssub.s32 1, %s1644
          %s1646 = scalar_lea.vmem %s1617, %s1645
          %s1647 = ssub.s32 1, %s1644
          %s1648 = scalar_lea.vmem %s1618, %s1647 [#allocation3]
          %s1649 = sshll.u32 1, %s1644
          %s1650 = ssub.s32 %s1649, 1
          loop: start=0, step=1, limit=1
          $region983: #{tpu_custom_call.1} parent=981 // loop_pre_header
            _
          $region984: #{tpu_custom_call.1} parent=981 // loop_header
            %s1652 = sphi 0, %s1656
            %p1653 = scmp.ge.s32.totalorder %s1652, 1
            %s1657 = sphi %s1646, %s1646
            %s1658 = sphi %s1648, %s1648
          $region985: #{tpu_custom_call.1} parent=981 // loop_header_branch
            %1655 = sbr.rel (%p1653) target = $region989
          $region986: #{tpu_custom_call.1} parent=981 // loop_body
            %v1659 = vld [vmem:[%s1657] sm:%s1650]
            %1660 = vst [vmem:[%s1658] sm:%s1650] %v1659
          $region987: #{tpu_custom_call.1} parent=981 // loop_footer
            %s1656 = sadd.s32 1, %s1652
          $region988: #{tpu_custom_call.1} parent=981 // loop_footer_branch
            %1651 = sbr.rel target = $region984
          $region989: #{tpu_custom_call.1} parent=981 // loop_exit
            _
        $region982: #{tpu_custom_call.1} parent=966 // pred_fallthru
          _
      $region967: #{tpu_custom_call.1} parent=512 // pred_fallthru
        _
      // Predicated region
      $region968: #{tpu_custom_call.1} parent=512 // pred_check
        %p1624 = pneg %p1620
      $region969: #{tpu_custom_call.1} parent=512 // pred_check_branch
        %1626 = sbr.rel (%p1624) target = $region971
      $region970: #{tpu_custom_call.1} parent=512 // pred_region
        %s1627 = sshll.u32 1, 1
        %s1628 = ssub.s32 %s1627, 1
        loop: start=0, step=1, limit=1
        $region972: #{tpu_custom_call.1} parent=970 // loop_pre_header
          _
        $region973: #{tpu_custom_call.1} parent=970 // loop_header
          %s1630 = sphi 0, %s1634
          %p1631 = scmp.ge.s32.totalorder %s1630, 1
          %s1635 = sphi %s1617, %s1617
          %s1636 = sphi %s1618, %s1618
        $region974: #{tpu_custom_call.1} parent=970 // loop_header_branch
          %1633 = sbr.rel (%p1631) target = $region978
        $region975: #{tpu_custom_call.1} parent=970 // loop_body
          %v1637 = vld [vmem:[%s1635] sm:%s1628]
          %1638 = vst [vmem:[%s1636] sm:%s1628] %v1637
        $region976: #{tpu_custom_call.1} parent=970 // loop_footer
          %s1634 = sadd.s32 1, %s1630
        $region977: #{tpu_custom_call.1} parent=970 // loop_footer_branch
          %1629 = sbr.rel target = $region973
        $region978: #{tpu_custom_call.1} parent=970 // loop_exit
          _
      $region971: #{tpu_custom_call.1} parent=512 // pred_fallthru
        _
      // Predicated region
      $region990: #{tpu_custom_call.1} parent=512 // pred_check
        _
      $region991: #{tpu_custom_call.1} parent=512 // pred_check_branch
        %1663 = sbr.rel (0) target = $region993
      $region992: #{tpu_custom_call.1} parent=512 // pred_region
        %1664 = vsyncadd %s918, 16
      $region993: #{tpu_custom_call.1} parent=512 // pred_fallthru
        _
    $region513: #{tpu_custom_call.1} parent=1 // pred_fallthru
      _
    %s1665 = smul.u32 %s46, 8
    %s1666 = smul.u32 %s46, 2
    %s1667 = scalar_lea.sflag [#allocation4], %s1666
    %s1668 = smul.u32 8, 1
    %s1669 = sshll.u32 %s1668, 4
    %1670 = dma.done %s1667, %s1669
    %s1671 = sadd.s32 1, %s1666
    %s1672 = scalar_lea.sflag [#allocation4], %s1671
    %s1673 = sshll.u32 %s1668, 4
    %1674 = dma.done %s1672, %s1673
    %s1675 = scalar_lea.vmem [#allocation2], %s1665
    %v1676 = vld [vmem:[%s1675] sm:$0xff]
    %v1677 = vpack.c.bf16 %v1676, %v1676
    %s1678 = scalar_lea.vmem [#allocation3], %s1665
    %v1679 = vld [vmem:[%s1678] sm:$0xff]
    %v1680 = vpack.c.bf16 %v1679, %v1679
    %v1681 = vld [vmem:[%s4] sm:$0xf]
    %v1682 = vld [vmem:[%s4 + $0x4] sm:$0xf]
    %v1683 = vld [vmem:[%s4 + $0x8] sm:$0xf]
    %v1684 = vld [vmem:[%s4 + $0xc] sm:$0xf]
    %v1685 = vld [vmem:[%s5] sm:$0xf]
    %v1686 = vld [vmem:[%s5 + $0x4] sm:$0xf]
    %v1687 = vld [vmem:[%s5 + $0x8] sm:$0xf]
    %v1688 = vld [vmem:[%s5 + $0xc] sm:$0xf]
    %v1693 = vunpack.c.l.b16 %v1685
    %v1694 = vunpack.c.l.b16 %v1686
    %v1695 = vunpack.c.l.b16 %v1687
    %v1696 = vunpack.c.l.b16 %v1688
    %v1697 = vpack.c.b16 %v1694, %v1693
    %v1698 = vpack.c.b16 %v1696, %v1695
    %vm1701 = vcmask 261120
    %v1703 = vsel %vm1701, %v1680, 0
    %1705 = vmatprep.subr.bf16.mxu0 0
    %1706 = vmatpush1.bf16.msra.mxu0 0
    %1707 = vmatprep.subr.bf16.mxu0 0
    %1708 = vmatpush1.bf16.msra.mxu0 0
    %1709 = vmatprep.subr.bf16.mxu0 0
    %1710 = vmatpush1.bf16.msra.mxu0 0
    %1711 = vmatprep.subr.bf16.mxu0 0
    %1712 = vmatpush1.bf16.msra.mxu0 0
    %1713 = vmatprep.subr.bf16.mxu0 0
    %1714 = vmatpush1.bf16.msra.mxu0 0
    %1715 = vmatprep.subr.bf16.mxu0 0
    %1716 = vmatpush1.bf16.msra.mxu0 0
    %1717 = vmatprep.subr.bf16.mxu0 0
    %1718 = vmatpush1.bf16.msra.mxu0 %v1698
    %1719 = vmatprep.subr.bf16.mxu0 0
    %1720 = vmatpush1.bf16.msra.mxu0 %v1697
    %1721 = vmatprep.subr.bf16.mxu0 0
    %1722 = vmatpush2.bf16.msra.mxu0 0
    %1723 = vmatprep.subr.bf16.mxu0 0
    %1724 = vmatpush2.bf16.msra.mxu0 0
    %1725 = vmatprep.subr.bf16.mxu0 0
    %1726 = vmatpush2.bf16.msra.mxu0 0
    %1727 = vmatprep.subr.bf16.mxu0 0
    %1728 = vmatpush2.bf16.msra.mxu0 0
    %1729 = vmatprep.subr.bf16.mxu0 0
    %1730 = vmatpush2.bf16.msra.mxu0 0
    %1731 = vmatprep.subr.bf16.mxu0 0
    %1732 = vmatpush2.bf16.msra.mxu0 0
    %1733 = vmatprep.subr.bf16.mxu0 0
    %1734 = vmatpush2.bf16.msra.mxu0 0
    %1735 = vmatprep.subr.bf16.mxu0 0
    %1736 = vmatpush2.bf16.msra.mxu0 0
    %1737 = vmatprep.mubr.bf16.mxu0 0
    %1738 = vmatmul.mubr.bf16.gmra.mxu0 %v1703
    %v1739 = vpop.f32.mrf.mxu0
    %v1740 = vadd.f32 0.0, %v1739
    %v1741 = vpop.f32.mrf.mxu0
    %v1742 = vpop.f32.mrf.mxu0
    %v1743 = vpop.f32.mrf.mxu0
    %1744 = vdwg.mxu0
    %v1749 = vunpack.c.l.b16 %v1681
    %v1750 = vunpack.c.l.b16 %v1682
    %v1751 = vunpack.c.l.b16 %v1683
    %v1752 = vunpack.c.l.b16 %v1684
    %v1753 = vpack.c.b16 %v1750, %v1749
    %v1754 = vpack.c.b16 %v1752, %v1751
    %v1758 = vsel %vm1701, %v1677, 0
    %1760 = vmatprep.subr.bf16.mxu0 0
    %1761 = vmatpush1.bf16.msra.mxu0 0
    %1762 = vmatprep.subr.bf16.mxu0 0
    %1763 = vmatpush1.bf16.msra.mxu0 0
    %1764 = vmatprep.subr.bf16.mxu0 0
    %1765 = vmatpush1.bf16.msra.mxu0 0
    %1766 = vmatprep.subr.bf16.mxu0 0
    %1767 = vmatpush1.bf16.msra.mxu0 0
    %1768 = vmatprep.subr.bf16.mxu0 0
    %1769 = vmatpush1.bf16.msra.mxu0 0
    %1770 = vmatprep.subr.bf16.mxu0 0
    %1771 = vmatpush1.bf16.msra.mxu0 0
    %1772 = vmatprep.subr.bf16.mxu0 0
    %1773 = vmatpush1.bf16.msra.mxu0 %v1754
    %1774 = vmatprep.subr.bf16.mxu0 0
    %1775 = vmatpush1.bf16.msra.mxu0 %v1753
    %1776 = vmatprep.subr.bf16.mxu0 0
    %1777 = vmatpush2.bf16.msra.mxu0 0
    %1778 = vmatprep.subr.bf16.mxu0 0
    %1779 = vmatpush2.bf16.msra.mxu0 0
    %1780 = vmatprep.subr.bf16.mxu0 0
    %1781 = vmatpush2.bf16.msra.mxu0 0
    %1782 = vmatprep.subr.bf16.mxu0 0
    %1783 = vmatpush2.bf16.msra.mxu0 0
    %1784 = vmatprep.subr.bf16.mxu0 0
    %1785 = vmatpush2.bf16.msra.mxu0 0
    %1786 = vmatprep.subr.bf16.mxu0 0
    %1787 = vmatpush2.bf16.msra.mxu0 0
    %1788 = vmatprep.subr.bf16.mxu0 0
    %1789 = vmatpush2.bf16.msra.mxu0 0
    %1790 = vmatprep.subr.bf16.mxu0 0
    %1791 = vmatpush2.bf16.msra.mxu0 0
    %1792 = vmatprep.mubr.bf16.mxu0 0
    %1793 = vmatmul.mubr.bf16.gmra.mxu0 %v1758
    %v1794 = vpop.f32.mrf.mxu0
    %v1795 = vadd.f32 %v1740, %v1794
    %v1796 = vpop.f32.mrf.mxu0
    %v1797 = vpop.f32.mrf.mxu0
    %v1798 = vpop.f32.mrf.mxu0
    %1799 = vdwg.mxu0
    %v1800 = vld [vmem:[%s6] sm:$0x1]
    %v1802 = vlaneseq
    %v1803 = vshrl.u32 %v1802, 7
    %v1804 = vsub.s32 0, %v1803
    %v1805 = vrot.slane %v1800, %v1804
    %v1807 = vadd.f32 %v1795, %v1805
    %v1808 = vmax.f32 %v1807, 0.0
    %v1809 = vpack.c.bf16 %v1808, %v1808
    %v1810 = vld [vmem:[%s7] sm:$0xf]
    %v1811 = vld [vmem:[%s7 + $0x4] sm:$0xf]
    %v1812 = vld [vmem:[%s7 + $0x8] sm:$0xf]
    %v1813 = vld [vmem:[%s7 + $0xc] sm:$0xf]
    %v1814 = vld [vmem:[%s7 + $0x10] sm:$0xf]
    %v1815 = vld [vmem:[%s7 + $0x14] sm:$0xf]
    %v1816 = vld [vmem:[%s7 + $0x18] sm:$0xf]
    %v1817 = vld [vmem:[%s7 + $0x1c] sm:$0xf]
    %v1818 = vld [vmem:[%s7 + $0x20] sm:$0xf]
    %v1819 = vld [vmem:[%s7 + $0x24] sm:$0xf]
    %v1820 = vld [vmem:[%s7 + $0x28] sm:$0xf]
    %v1821 = vld [vmem:[%s7 + $0x2c] sm:$0xf]
    %v1822 = vld [vmem:[%s7 + $0x30] sm:$0xf]
    %v1823 = vld [vmem:[%s7 + $0x34] sm:$0xf]
    %v1824 = vld [vmem:[%s7 + $0x38] sm:$0xf]
    %v1825 = vld [vmem:[%s7 + $0x3c] sm:$0xf]
    %v1826 = vld [vmem:[%s8] sm:$0x1]
    %v1828 = vlaneseq
    %v1829 = vshrl.u32 %v1828, 7
    %v1830 = vsub.s32 0, %v1829
    %v1831 = vrot.slane %v1826, %v1830
    %v1849 = vunpack.c.l.b16 %v1810
    %v1850 = vunpack.c.l.b16 %v1811
    %v1851 = vunpack.c.l.b16 %v1812
    %v1852 = vunpack.c.l.b16 %v1813
    %v1853 = vunpack.c.l.b16 %v1814
    %v1854 = vunpack.c.l.b16 %v1815
    %v1855 = vunpack.c.l.b16 %v1816
    %v1856 = vunpack.c.l.b16 %v1817
    %v1857 = vunpack.c.l.b16 %v1818
    %v1858 = vunpack.c.l.b16 %v1819
    %v1859 = vunpack.c.l.b16 %v1820
    %v1860 = vunpack.c.l.b16 %v1821
    %v1861 = vunpack.c.l.b16 %v1822
    %v1862 = vunpack.c.l.b16 %v1823
    %v1863 = vunpack.c.l.b16 %v1824
    %v1864 = vunpack.c.l.b16 %v1825
    %v1865 = vpack.c.b16 %v1850, %v1849
    %v1866 = vpack.c.b16 %v1852, %v1851
    %v1867 = vpack.c.b16 %v1854, %v1853
    %v1868 = vpack.c.b16 %v1856, %v1855
    %v1869 = vpack.c.b16 %v1858, %v1857
    %v1870 = vpack.c.b16 %v1860, %v1859
    %v1871 = vpack.c.b16 %v1862, %v1861
    %v1872 = vpack.c.b16 %v1864, %v1863
    %1881 = vmatprep.subr.bf16.mxu0 0
    %1882 = vmatpush1.bf16.msra.mxu0 %v1872
    %1883 = vmatprep.subr.bf16.mxu0 0
    %1884 = vmatpush1.bf16.msra.mxu0 %v1871
    %1885 = vmatprep.subr.bf16.mxu0 0
    %1886 = vmatpush1.bf16.msra.mxu0 %v1870
    %1887 = vmatprep.subr.bf16.mxu0 0
    %1888 = vmatpush1.bf16.msra.mxu0 %v1869
    %1889 = vmatprep.subr.bf16.mxu0 0
    %1890 = vmatpush1.bf16.msra.mxu0 %v1868
    %1891 = vmatprep.subr.bf16.mxu0 0
    %1892 = vmatpush1.bf16.msra.mxu0 %v1867
    %1893 = vmatprep.subr.bf16.mxu0 0
    %1894 = vmatpush1.bf16.msra.mxu0 %v1866
    %1895 = vmatprep.subr.bf16.mxu0 0
    %1896 = vmatpush1.bf16.msra.mxu0 %v1865
    %1897 = vmatprep.subr.bf16.mxu0 0
    %1898 = vmatpush2.bf16.msra.mxu0 0
    %1899 = vmatprep.subr.bf16.mxu0 0
    %1900 = vmatpush2.bf16.msra.mxu0 0
    %1901 = vmatprep.subr.bf16.mxu0 0
    %1902 = vmatpush2.bf16.msra.mxu0 0
    %1903 = vmatprep.subr.bf16.mxu0 0
    %1904 = vmatpush2.bf16.msra.mxu0 0
    %1905 = vmatprep.subr.bf16.mxu0 0
    %1906 = vmatpush2.bf16.msra.mxu0 0
    %1907 = vmatprep.subr.bf16.mxu0 0
    %1908 = vmatpush2.bf16.msra.mxu0 0
    %1909 = vmatprep.subr.bf16.mxu0 0
    %1910 = vmatpush2.bf16.msra.mxu0 0
    %1911 = vmatprep.subr.bf16.mxu0 0
    %1912 = vmatpush2.bf16.msra.mxu0 0
    %1913 = vmatprep.mubr.bf16.mxu0 0
    %1914 = vmatmul.mubr.bf16.gmra.mxu0 %v1809
    %v1915 = vpop.f32.mrf.mxu0
    %v1916 = vadd.f32 %v1831, %v1915
    %v1917 = vpop.f32.mrf.mxu0
    %v1918 = vpop.f32.mrf.mxu0
    %v1919 = vpop.f32.mrf.mxu0
    %1920 = vdwg.mxu0
    %v1921 = vmax.f32 %v1916, 0.0
    %v1922 = vld [vmem:[%s9] sm:$0x1]
    %v1923 = vpack.c.bf16 %v1921, %v1921
    %1924 = vmatprep.subr.bf16.mxu0 0
    %1925 = vmatpush1.bf16.xpose.msra.mxu0 0
    %1926 = vmatprep.subr.bf16.mxu0 0
    %1927 = vmatpush1.bf16.xpose.msra.mxu0 0
    %1928 = vmatprep.subr.bf16.mxu0 0
    %1929 = vmatpush1.bf16.xpose.msra.mxu0 0
    %1930 = vmatprep.subr.bf16.mxu0 0
    %1931 = vmatpush1.bf16.xpose.msra.mxu0 0
    %1932 = vmatprep.subr.bf16.mxu0 0
    %1933 = vmatpush1.bf16.xpose.msra.mxu0 0
    %1934 = vmatprep.subr.bf16.mxu0 0
    %1935 = vmatpush1.bf16.xpose.msra.mxu0 0
    %1936 = vmatprep.subr.bf16.mxu0 0
    %1937 = vmatpush1.bf16.xpose.msra.mxu0 0
    %1938 = vmatprep.subr.bf16.mxu0 0
    %1939 = vmatpush1.bf16.xpose.msra.mxu0 %v1923
    %1940 = vmatprep.subr.bf16.mxu0 0
    %1941 = vmatpush2.bf16.xpose.msra.mxu0 0
    %1942 = vmatprep.subr.bf16.mxu0 0
    %1943 = vmatpush2.bf16.xpose.msra.mxu0 0
    %1944 = vmatprep.subr.bf16.mxu0 0
    %1945 = vmatpush2.bf16.xpose.msra.mxu0 0
    %1946 = vmatprep.subr.bf16.mxu0 0
    %1947 = vmatpush2.bf16.xpose.msra.mxu0 0
    %1948 = vmatprep.subr.bf16.mxu0 0
    %1949 = vmatpush2.bf16.xpose.msra.mxu0 0
    %1950 = vmatprep.subr.bf16.mxu0 0
    %1951 = vmatpush2.bf16.xpose.msra.mxu0 0
    %1952 = vmatprep.subr.bf16.mxu0 0
    %1953 = vmatpush2.bf16.xpose.msra.mxu0 0
    %1954 = vmatprep.subr.bf16.mxu0 0
    %1955 = vmatpush2.bf16.xpose.msra.mxu0 0
    %1956 = vmatprep.mubr.bf16.mxu0 0
    %1957 = vmatmul.mubr.bf16.gmra.mxu0 %v1922
    %v1958 = vpop.f32.mrf.mxu0
    %v1959 = vadd.f32 0.0, %v1958
    %v1960 = vpop.f32.mrf.mxu0
    %v1961 = vpop.f32.mrf.mxu0
    %v1962 = vpop.f32.mrf.mxu0
    %1963 = vdwg.mxu0
    %vm1964 = vcmask 57344
    %1965 = vst.msk [vmem:[#allocation8] sm:$0x1] %vm1964, %v1959
    // Predicated region
    $region994: #{tpu_custom_call.1} parent=1 // pred_check
      _
    $region995: #{tpu_custom_call.1} parent=1 // pred_check_branch
      %1967 = sbr.rel (0) target = $region997
    $region996: #{tpu_custom_call.1} parent=1 // pred_region
      %s1969 = ssub.s32 16, 16
      %1970 = vsyncadd [#allocation9], %s1969
      %s1972 = sshll.u32 [#allocation8], 4
      %s1973 = int_to_ptr.vmem [resolvable:$true] %s1972
      %1975 = dma.vmem_to_hbm [thread:$0]  %s1973, 16, %s10, [#allocation9]
    $region997: #{tpu_custom_call.1} parent=1 // pred_fallthru
      _
    // Predicated region
    $region998: #{tpu_custom_call.1} parent=1 // pred_check
      _
    $region999: #{tpu_custom_call.1} parent=1 // pred_check_branch
      %1977 = sbr.rel (0) target = $region1001
    $region1000: #{tpu_custom_call.1} parent=1 // pred_region
      %1978 = dma.done [#allocation9], 16
    $region1001: #{tpu_custom_call.1} parent=1 // pred_fallthru
      _
    %1979 = vsyncpa [#allocation9], 1
  %1980 = vsyncmov [#allocation4]
  %s1981 = vpop.sfrf %1980
  %p1982 = scmp.eq.s32.totalorder %s1981, 0
  %p1983 = pneg %p1982
  %1985 = shalt.err (%p1983)
  %s1986 = scalar_lea.sflag [#allocation4], 1
  %1987 = vsyncmov %s1986
  %s1988 = vpop.sfrf %1987
  %p1989 = scmp.eq.s32.totalorder %s1988, 0
  %p1990 = pneg %p1989
  %1992 = shalt.err (%p1990)
  %s1993 = scalar_lea.sflag [#allocation4], 2
  %1994 = vsyncmov %s1993
  %s1995 = vpop.sfrf %1994
  %p1996 = scmp.eq.s32.totalorder %s1995, 0
  %p1997 = pneg %p1996
  %1999 = shalt.err (%p1997)
  %s2000 = scalar_lea.sflag [#allocation4], 3
  %2001 = vsyncmov %s2000
  %s2002 = vpop.sfrf %2001
  %p2003 = scmp.eq.s32.totalorder %s2002, 0
  %p2004 = pneg %p2003
  %2006 = shalt.err (%p2004)

</llo_original>
